<compile_context>
chip_gen: v7x
topology: tpu7x:2x2x1
jax: 0.10.0
libtpu: 0.0.40
codegen_flags: <defaults>
</compile_context>

<pallas_src>
import jax
import jax.numpy as jnp
from jax.experimental import pallas as pl
from jax.experimental.pallas import tpu as pltpu

# ---- model dimensions (small, consistent with the module's forward) ----
B, S, D = 2, 8, 32          # batch, seq, transformer hidden_size
NUM_HEADS = 4
DH = D // NUM_HEADS
FFN = 64                    # transformer intermediate size
N_LAYERS = 2                # transformer encoder layers
VOCAB = 50
HC = 32                     # classifier hidden_dim
NC = 4                      # n_classes
NC_PAD = 128                # lane-dense padded logits width (sliced to NC outside)

F32 = jnp.float32
BF16 = jnp.bfloat16


def _full_spec(shape):
    # whole-array block; grid=(1,) so index_map always maps to block (0, 0, ...)
    return pl.BlockSpec(shape, lambda i, n=len(shape): (0,) * n)


def _layer_norm(x, gamma, beta, eps=1e-5):
    # x: (B, S, D) f32; gamma/beta: (1, D) f32
    mu = jnp.mean(x, axis=-1, keepdims=True)
    var = jnp.mean((x - mu) ** 2, axis=-1, keepdims=True)
    xhat = (x - mu) * jax.lax.rsqrt(var + eps)
    return xhat * gamma.reshape(1, 1, -1) + beta.reshape(1, 1, -1)


# ------------------------- fully fused forward kernel -------------------------
def fused_forward_kernel(x_ref, mask_ref,
                         wq_ref, bq_ref, wk_ref, bk_ref, wv_ref, bv_ref,
                         woh_ref, bo_ref, g1_ref, be1_ref,
                         w1_ref, b1_ref, w2_ref, b2_ref, g2_ref, be2_ref,
                         cw0_ref, cb0_ref, cw1_ref, cb1_ref, cw2_ref, cb2_ref,
                         o_ref):
    x = x_ref[...]                 # (B, S, D) f32 — stays resident all forward
    mask = mask_ref[...]           # (B, S)    f32

    # hoisted once for all layers / heads
    attn_bias = (jnp.float32(1.0) - mask)[:, None, :] * jnp.float32(-1e9)   # (B,1,S)
    scale = jnp.float32(1.0) / jnp.sqrt(jnp.float32(DH))

    for l in range(N_LAYERS):                         # static unroll over layers
        x2 = x.reshape(B * S, D).astype(BF16)

        def proj(w_ref, b_ref):
            return (jnp.dot(x2, w_ref[l], preferred_element_type=F32)
                    + b_ref[l]).reshape(B, S, D)

        q = proj(wq_ref, bq_ref)
        k = proj(wk_ref, bk_ref)
        v = proj(wv_ref, bv_ref)

        attn_acc = jnp.zeros((B * S, D), F32)
        for h in range(NUM_HEADS):                    # static unroll over heads
            sl = slice(h * DH, (h + 1) * DH)
            qh = q[:, :, sl].astype(BF16)
            kh = k[:, :, sl].astype(BF16)
            vh = v[:, :, sl].astype(BF16)
            s = (jnp.einsum('bqd,bkd->bqk', qh, kh,
                            preferred_element_type=F32) * scale + attn_bias)
            m = jnp.max(s, axis=-1, keepdims=True)
            p = jnp.exp(s - m)
            p = p * pl.reciprocal(jnp.sum(p, axis=-1, keepdims=True), approx=True)
            ctx = jnp.einsum('bqk,bkd->bqd', p.astype(BF16), vh,
                             preferred_element_type=F32)             # (B, S, DH)
            # per-head output projection, accumulated (no lane-axis concat)
            attn_acc = attn_acc + jnp.dot(
                ctx.reshape(B * S, DH).astype(BF16), woh_ref[l, h],
                preferred_element_type=F32)

        attn_out = (attn_acc + bo_ref[l]).reshape(B, S, D)
        x = _layer_norm(x + attn_out, g1_ref[l], be1_ref[l])

        h1 = (jnp.dot(x.reshape(B * S, D).astype(BF16), w1_ref[l],
                      preferred_element_type=F32) + b1_ref[l])
        # TODO(synk): PyTorch nn.GELU defaults to exact erf; tanh approximation is
        # used here because erf has no guaranteed Mosaic lowering.
        h1 = jax.nn.gelu(h1, approximate=True)
        ffn_out = (jnp.dot(h1.astype(BF16), w2_ref[l],
                           preferred_element_type=F32) + b2_ref[l]).reshape(B, S, D)
        x = _layer_norm(x + ffn_out, g2_ref[l], be2_ref[l])

    # ---- PoolingLayer('mean'): exact PyTorch semantics (f32, exact divide) ----
    pooled = (jnp.sum(x * mask[:, :, None], axis=1)
              / jnp.sum(mask, axis=1, keepdims=True))                 # (B, D)

    # ---- classifier MLP (dropout_rate = 0.0 -> identity, omitted) ----
    h0 = jnp.maximum(jnp.dot(pooled.astype(BF16), cw0_ref[...],
                             preferred_element_type=F32) + cb0_ref[...], 0.0)
    h1c = jnp.maximum(jnp.dot(h0.astype(BF16), cw1_ref[...],
                              preferred_element_type=F32) + cb1_ref[...], 0.0)
    # final weight is zero-padded to NC_PAD lanes -> full-width (lane-dense) store
    o_ref[...] = jnp.dot(h1c.astype(BF16), cw2_ref[...],
                         preferred_element_type=F32) + cb2_ref[...]


def fused_forward(x, mask, p):
    args = (x, mask,
            p['WQ'], p['BQ'], p['WK'], p['BK'], p['WV'], p['BV'],
            p['WOH'], p['BO'], p['G1'], p['BE1'],
            p['W1'], p['B1'], p['W2'], p['B2'], p['G2'], p['BE2'],
            p['CW0'], p['CB0'], p['CW1'], p['CB1'], p['CW2'], p['CB2'])
    out = pl.pallas_call(
        fused_forward_kernel,
        out_shape=jax.ShapeDtypeStruct((B, NC_PAD), jnp.float32),
        # Whole model (<100 KB) fits in VMEM on every TPU generation, so a single
        # grid step with full-array blocks is the right shape for this size.
        # TODO(synk): for large B shard the grid over batch with
        # dimension_semantics=('parallel',) (v7x 2-TC megacore); for large S/D
        # switch to (8,128)-aligned BlockSpec tiling + vmem_limit_bytes.
        grid=(1,),
        in_specs=[_full_spec(a.shape) for a in args],
        out_specs=_full_spec((B, NC_PAD)),
        compiler_params=pltpu.CompilerParams(dimension_semantics=("arbitrary",)),
    )(*args)
    return out[:, :NC]


# --------------------------- deterministic parameter init ---------------------------
def init_params(key):
    ks = iter(jax.random.split(key, 32))

    def nrm(shape, scale=0.02, dtype=jnp.float32):
        return (scale * jax.random.normal(next(ks), shape)).astype(dtype)

    zeros = lambda shape: jnp.zeros(shape, jnp.float32)
    ones = lambda shape: jnp.ones(shape, jnp.float32)
    L = N_LAYERS

    # final classifier weight zero-padded to NC_PAD output lanes (lane-dense store)
    cw2 = jnp.zeros((HC, NC_PAD), BF16).at[:, :NC].set(nrm((HC, NC), dtype=BF16))

    return {
        'word_emb': nrm((VOCAB, D)),
        'pos_emb': nrm((S, D)),
        # encoder: matmul weights bf16 (halved DMA bytes), biases / LN params f32,
        # stacked over layers so the whole forward is one pallas_call.
        'WQ': nrm((L, D, D), dtype=BF16), 'BQ': zeros((L, 1, D)),
        'WK': nrm((L, D, D), dtype=BF16), 'BK': zeros((L, 1, D)),
        'WV': nrm((L, D, D), dtype=BF16), 'BV': zeros((L, 1, D)),
        'WOH': nrm((L, NUM_HEADS, DH, D), dtype=BF16), 'BO': zeros((L, 1, D)),
        'G1': ones((L, 1, D)), 'BE1': zeros((L, 1, D)),
        'W1': nrm((L, D, FFN), dtype=BF16), 'B1': zeros((L, 1, FFN)),
        'W2': nrm((L, FFN, D), dtype=BF16), 'B2': zeros((L, 1, D)),
        'G2': ones((L, 1, D)), 'BE2': zeros((L, 1, D)),
        # classifier: Linear+ReLU, Linear+ReLU, Linear (dropout_rate = 0.0)
        'CW0': nrm((D, HC), dtype=BF16), 'CB0': zeros((1, HC)),
        'CW1': nrm((HC, HC), dtype=BF16), 'CB1': zeros((1, HC)),
        'CW2': cw2, 'CB2': zeros((1, NC_PAD)),
    }


def transformer_classifier_forward(params, input_ids, attention_mask):
    # glue: embedding lookup + positional embeddings (plain JAX)
    x = (params['word_emb'][input_ids] + params['pos_emb'][None, :, :]).astype(jnp.float32)
    # hot path: encoder layers + masked-mean pooling + classifier in ONE Pallas kernel
    return fused_forward(x, attention_mask, params)


if __name__ == "__main__":
    key = jax.random.PRNGKey(0)
    pkey, dkey = jax.random.split(key)
    params = init_params(pkey)

    input_ids = jax.random.randint(dkey, (B, S), 0, VOCAB, dtype=jnp.int32)
    attention_mask = jnp.array(
        [[1, 1, 1, 1, 1, 1, 1, 1],
         [1, 1, 1, 1, 1, 0, 0, 0]], dtype=jnp.float32)

    logits = transformer_classifier_forward(params, input_ids, attention_mask)
    logits = jax.block_until_ready(logits)
    assert logits.shape == (B, NC) and logits.dtype == jnp.float32
    assert bool(jnp.all(jnp.isfinite(logits)))
    print("KERNEL_OK")
</pallas_src>

<mosaic_0001>
module attributes {stable_mosaic.version = 11 : i64} {
  func.func @fused_forward_kernel(%arg0: i32, %arg1: memref<2x8x32xf32, #tpu.memory_space<vmem>>, %arg2: memref<2x8xf32, #tpu.memory_space<vmem>>, %arg3: memref<2x32x32xbf16, #tpu.memory_space<vmem>>, %arg4: memref<2x1x32xf32, #tpu.memory_space<vmem>>, %arg5: memref<2x32x32xbf16, #tpu.memory_space<vmem>>, %arg6: memref<2x1x32xf32, #tpu.memory_space<vmem>>, %arg7: memref<2x32x32xbf16, #tpu.memory_space<vmem>>, %arg8: memref<2x1x32xf32, #tpu.memory_space<vmem>>, %arg9: memref<2x4x8x32xbf16, #tpu.memory_space<vmem>>, %arg10: memref<2x1x32xf32, #tpu.memory_space<vmem>>, %arg11: memref<2x1x32xf32, #tpu.memory_space<vmem>>, %arg12: memref<2x1x32xf32, #tpu.memory_space<vmem>>, %arg13: memref<2x32x64xbf16, #tpu.memory_space<vmem>>, %arg14: memref<2x1x64xf32, #tpu.memory_space<vmem>>, %arg15: memref<2x64x32xbf16, #tpu.memory_space<vmem>>, %arg16: memref<2x1x32xf32, #tpu.memory_space<vmem>>, %arg17: memref<2x1x32xf32, #tpu.memory_space<vmem>>, %arg18: memref<2x1x32xf32, #tpu.memory_space<vmem>>, %arg19: memref<32x32xbf16, #tpu.memory_space<vmem>>, %arg20: memref<1x32xf32, #tpu.memory_space<vmem>>, %arg21: memref<32x32xbf16, #tpu.memory_space<vmem>>, %arg22: memref<1x32xf32, #tpu.memory_space<vmem>>, %arg23: memref<32x128xbf16, #tpu.memory_space<vmem>>, %arg24: memref<1x128xf32, #tpu.memory_space<vmem>>, %arg25: memref<2x128xf32, #tpu.memory_space<vmem>>) attributes {dimension_semantics = [#tpu.dimension_semantics<arbitrary>], iteration_bounds = array<i64: 1>, scalar_prefetch = 0 : i64, scratch_operands = 0 : i64, tpu.core_type = #tpu.core_type<tc>, window_params = [{pipeline_mode = #tpu.pipeline_mode<synchronous>, transform_indices = @transform_0, window_bounds = array<i64: 2, 8, 32>}, {pipeline_mode = #tpu.pipeline_mode<synchronous>, transform_indices = @transform_1, window_bounds = array<i64: 2, 8>}, {pipeline_mode = #tpu.pipeline_mode<synchronous>, transform_indices = @transform_2, window_bounds = array<i64: 2, 32, 32>}, {pipeline_mode = #tpu.pipeline_mode<synchronous>, transform_indices = @transform_3, window_bounds = array<i64: 2, 1, 32>}, {pipeline_mode = #tpu.pipeline_mode<synchronous>, transform_indices = @transform_4, window_bounds = array<i64: 2, 32, 32>}, {pipeline_mode = #tpu.pipeline_mode<synchronous>, transform_indices = @transform_5, window_bounds = array<i64: 2, 1, 32>}, {pipeline_mode = #tpu.pipeline_mode<synchronous>, transform_indices = @transform_6, window_bounds = array<i64: 2, 32, 32>}, {pipeline_mode = #tpu.pipeline_mode<synchronous>, transform_indices = @transform_7, window_bounds = array<i64: 2, 1, 32>}, {pipeline_mode = #tpu.pipeline_mode<synchronous>, transform_indices = @transform_8, window_bounds = array<i64: 2, 4, 8, 32>}, {pipeline_mode = #tpu.pipeline_mode<synchronous>, transform_indices = @transform_9, window_bounds = array<i64: 2, 1, 32>}, {pipeline_mode = #tpu.pipeline_mode<synchronous>, transform_indices = @transform_10, window_bounds = array<i64: 2, 1, 32>}, {pipeline_mode = #tpu.pipeline_mode<synchronous>, transform_indices = @transform_11, window_bounds = array<i64: 2, 1, 32>}, {pipeline_mode = #tpu.pipeline_mode<synchronous>, transform_indices = @transform_12, window_bounds = array<i64: 2, 32, 64>}, {pipeline_mode = #tpu.pipeline_mode<synchronous>, transform_indices = @transform_13, window_bounds = array<i64: 2, 1, 64>}, {pipeline_mode = #tpu.pipeline_mode<synchronous>, transform_indices = @transform_14, window_bounds = array<i64: 2, 64, 32>}, {pipeline_mode = #tpu.pipeline_mode<synchronous>, transform_indices = @transform_15, window_bounds = array<i64: 2, 1, 32>}, {pipeline_mode = #tpu.pipeline_mode<synchronous>, transform_indices = @transform_16, window_bounds = array<i64: 2, 1, 32>}, {pipeline_mode = #tpu.pipeline_mode<synchronous>, transform_indices = @transform_17, window_bounds = array<i64: 2, 1, 32>}, {pipeline_mode = #tpu.pipeline_mode<synchronous>, transform_indices = @transform_18, window_bounds = array<i64: 32, 32>}, {pipeline_mode = #tpu.pipeline_mode<synchronous>, transform_indices = @transform_19, window_bounds = array<i64: 1, 32>}, {pipeline_mode = #tpu.pipeline_mode<synchronous>, transform_indices = @transform_20, window_bounds = array<i64: 32, 32>}, {pipeline_mode = #tpu.pipeline_mode<synchronous>, transform_indices = @transform_21, window_bounds = array<i64: 1, 32>}, {pipeline_mode = #tpu.pipeline_mode<synchronous>, transform_indices = @transform_22, window_bounds = array<i64: 32, 128>}, {pipeline_mode = #tpu.pipeline_mode<synchronous>, transform_indices = @transform_23, window_bounds = array<i64: 1, 128>}, {pipeline_mode = #tpu.pipeline_mode<synchronous>, transform_indices = @transform_24, window_bounds = array<i64: 2, 128>}]} {
    %c0 = arith.constant 0 : index
    %c0_0 = arith.constant 0 : index
    %c0_1 = arith.constant 0 : index
    %0 = vector.load %arg1[%c0, %c0_0, %c0_1] : memref<2x8x32xf32, #tpu.memory_space<vmem>>, vector<2x8x32xf32>
    %c0_2 = arith.constant 0 : index
    %c0_3 = arith.constant 0 : index
    %1 = vector.load %arg2[%c0_2, %c0_3] : memref<2x8xf32, #tpu.memory_space<vmem>>, vector<2x8xf32>
    %cst = arith.constant 1.000000e+00 : f32
    %2 = vector.broadcast %cst : f32 to vector<2x8xf32>
    %3 = arith.subf %2, %1 : vector<2x8xf32>
    %4 = vector.shape_cast %3 : vector<2x8xf32> to vector<2x1x8xf32>
    %cst_4 = arith.constant -1.000000e+09 : f32
    %5 = vector.broadcast %cst_4 : f32 to vector<2x1x8xf32>
    %6 = arith.mulf %4, %5 : vector<2x1x8xf32>
    %cst_5 = arith.constant 8.000000e+00 : f32
    %7 = math.sqrt %cst_5 : f32
    %cst_6 = arith.constant 1.000000e+00 : f32
    %8 = arith.divf %cst_6, %7 : f32
    %9 = vector.shape_cast %0 : vector<2x8x32xf32> to vector<16x32xf32>
    %10 = arith.truncf %9 : vector<16x32xf32> to vector<16x32xbf16>
    %c0_7 = arith.constant 0 : index
    %c0_8 = arith.constant 0 : index
    %c0_9 = arith.constant 0 : index
    %11 = vector.load %arg3[%c0_7, %c0_8, %c0_9] : memref<2x32x32xbf16, #tpu.memory_space<vmem>>, vector<1x32x32xbf16>
    %12 = vector.shape_cast %11 : vector<1x32x32xbf16> to vector<32x32xbf16>
    %cst_10 = arith.constant dense<0.000000e+00> : vector<16x32xf32>
    %13 = tpu.matmul %10, %12, %cst_10 {dimension_numbers = #tpu.dot_dimension_numbers<[1], [0], [0], [1], [0, 0, 1, 1], [], []>} : vector<16x32xbf16>, vector<32x32xbf16>, vector<16x32xf32> -> vector<16x32xf32>
    %c0_11 = arith.constant 0 : index
    %c0_12 = arith.constant 0 : index
    %c0_13 = arith.constant 0 : index
    %14 = vector.load %arg4[%c0_11, %c0_12, %c0_13] : memref<2x1x32xf32, #tpu.memory_space<vmem>>, vector<1x1x32xf32>
    %15 = vector.shape_cast %14 : vector<1x1x32xf32> to vector<1x32xf32>
    %16 = vector.broadcast %15 : vector<1x32xf32> to vector<16x32xf32>
    %17 = arith.addf %13, %16 : vector<16x32xf32>
    %18 = vector.shape_cast %17 : vector<16x32xf32> to vector<2x8x32xf32>
    %c0_14 = arith.constant 0 : index
    %c0_15 = arith.constant 0 : index
    %c0_16 = arith.constant 0 : index
    %19 = vector.load %arg5[%c0_14, %c0_15, %c0_16] : memref<2x32x32xbf16, #tpu.memory_space<vmem>>, vector<1x32x32xbf16>
    %20 = vector.shape_cast %19 : vector<1x32x32xbf16> to vector<32x32xbf16>
    %cst_17 = arith.constant dense<0.000000e+00> : vector<16x32xf32>
    %21 = tpu.matmul %10, %20, %cst_17 {dimension_numbers = #tpu.dot_dimension_numbers<[1], [0], [0], [1], [0, 0, 1, 1], [], []>} : vector<16x32xbf16>, vector<32x32xbf16>, vector<16x32xf32> -> vector<16x32xf32>
    %c0_18 = arith.constant 0 : index
    %c0_19 = arith.constant 0 : index
    %c0_20 = arith.constant 0 : index
    %22 = vector.load %arg6[%c0_18, %c0_19, %c0_20] : memref<2x1x32xf32, #tpu.memory_space<vmem>>, vector<1x1x32xf32>
    %23 = vector.shape_cast %22 : vector<1x1x32xf32> to vector<1x32xf32>
    %24 = vector.broadcast %23 : vector<1x32xf32> to vector<16x32xf32>
    %25 = arith.addf %21, %24 : vector<16x32xf32>
    %26 = vector.shape_cast %25 : vector<16x32xf32> to vector<2x8x32xf32>
    %c0_21 = arith.constant 0 : index
    %c0_22 = arith.constant 0 : index
    %c0_23 = arith.constant 0 : index
    %27 = vector.load %arg7[%c0_21, %c0_22, %c0_23] : memref<2x32x32xbf16, #tpu.memory_space<vmem>>, vector<1x32x32xbf16>
    %28 = vector.shape_cast %27 : vector<1x32x32xbf16> to vector<32x32xbf16>
    %cst_24 = arith.constant dense<0.000000e+00> : vector<16x32xf32>
    %29 = tpu.matmul %10, %28, %cst_24 {dimension_numbers = #tpu.dot_dimension_numbers<[1], [0], [0], [1], [0, 0, 1, 1], [], []>} : vector<16x32xbf16>, vector<32x32xbf16>, vector<16x32xf32> -> vector<16x32xf32>
    %c0_25 = arith.constant 0 : index
    %c0_26 = arith.constant 0 : index
    %c0_27 = arith.constant 0 : index
    %30 = vector.load %arg8[%c0_25, %c0_26, %c0_27] : memref<2x1x32xf32, #tpu.memory_space<vmem>>, vector<1x1x32xf32>
    %31 = vector.shape_cast %30 : vector<1x1x32xf32> to vector<1x32xf32>
    %32 = vector.broadcast %31 : vector<1x32xf32> to vector<16x32xf32>
    %33 = arith.addf %29, %32 : vector<16x32xf32>
    %34 = vector.shape_cast %33 : vector<16x32xf32> to vector<2x8x32xf32>
    %cst_28 = arith.constant 0.000000e+00 : f32
    %35 = vector.broadcast %cst_28 : f32 to vector<16x32xf32>
    %36 = vector.extract_strided_slice %18 {offsets = [0, 0, 0], sizes = [2, 8, 8], strides = [1, 1, 1]} : vector<2x8x32xf32> to vector<2x8x8xf32>
    %37 = arith.truncf %36 : vector<2x8x8xf32> to vector<2x8x8xbf16>
    %38 = vector.extract_strided_slice %26 {offsets = [0, 0, 0], sizes = [2, 8, 8], strides = [1, 1, 1]} : vector<2x8x32xf32> to vector<2x8x8xf32>
    %39 = arith.truncf %38 : vector<2x8x8xf32> to vector<2x8x8xbf16>
    %40 = vector.extract_strided_slice %34 {offsets = [0, 0, 0], sizes = [2, 8, 8], strides = [1, 1, 1]} : vector<2x8x32xf32> to vector<2x8x8xf32>
    %41 = arith.truncf %40 : vector<2x8x8xf32> to vector<2x8x8xbf16>
    "tpu.trace_start"() <{level = 10 : i32, message = "bqd,bkd->bqk"}> : () -> ()
    %cst_29 = arith.constant dense<0.000000e+00> : vector<2x8x8xf32>
    %42 = tpu.matmul %37, %39, %cst_29 {dimension_numbers = #tpu.dot_dimension_numbers<[2], [2], [1], [1], [0, 0, 0, 1, 1, 1], [0], [0]>} : vector<2x8x8xbf16>, vector<2x8x8xbf16>, vector<2x8x8xf32> -> vector<2x8x8xf32>
    "tpu.trace_stop"() : () -> ()
    %43 = vector.broadcast %8 : f32 to vector<2x8x8xf32>
    %44 = arith.mulf %42, %43 : vector<2x8x8xf32>
    %45 = vector.broadcast %6 : vector<2x1x8xf32> to vector<2x8x8xf32>
    %46 = arith.addf %44, %45 : vector<2x8x8xf32>
    %cst_30 = arith.constant dense<0xFF800000> : vector<2x8xf32>
    %47 = vector.multi_reduction <maximumf>, %46, %cst_30 [2] : vector<2x8x8xf32> to vector<2x8xf32>
    %48 = vector.shape_cast %47 : vector<2x8xf32> to vector<2x8x1xf32>
    %49 = vector.broadcast %48 : vector<2x8x1xf32> to vector<2x8x8xf32>
    %50 = arith.subf %46, %49 : vector<2x8x8xf32>
    %51 = math.exp %50 : vector<2x8x8xf32>
    %cst_31 = arith.constant dense<0.000000e+00> : vector<2x8xf32>
    %52 = vector.multi_reduction <add>, %51, %cst_31 [2] : vector<2x8x8xf32> to vector<2x8xf32>
    %53 = vector.shape_cast %52 : vector<2x8xf32> to vector<2x8x1xf32>
    %54 = tpu.reciprocal %53 {approx = true} : vector<2x8x1xf32> -> vector<2x8x1xf32>
    %55 = vector.broadcast %54 : vector<2x8x1xf32> to vector<2x8x8xf32>
    %56 = arith.mulf %51, %55 : vector<2x8x8xf32>
    %57 = arith.truncf %56 : vector<2x8x8xf32> to vector<2x8x8xbf16>
    "tpu.trace_start"() <{level = 10 : i32, message = "bqk,bkd->bqd"}> : () -> ()
    %cst_32 = arith.constant dense<0.000000e+00> : vector<2x8x8xf32>
    %58 = tpu.matmul %57, %41, %cst_32 {dimension_numbers = #tpu.dot_dimension_numbers<[2], [1], [1], [2], [0, 0, 0, 1, 1, 2], [0], [0]>} : vector<2x8x8xbf16>, vector<2x8x8xbf16>, vector<2x8x8xf32> -> vector<2x8x8xf32>
    "tpu.trace_stop"() : () -> ()
    %59 = vector.shape_cast %58 : vector<2x8x8xf32> to vector<16x8xf32>
    %60 = arith.truncf %59 : vector<16x8xf32> to vector<16x8xbf16>
    %c0_33 = arith.constant 0 : index
    %c0_34 = arith.constant 0 : index
    %c0_35 = arith.constant 0 : index
    %c0_36 = arith.constant 0 : index
    %61 = vector.load %arg9[%c0_33, %c0_34, %c0_35, %c0_36] : memref<2x4x8x32xbf16, #tpu.memory_space<vmem>>, vector<1x1x8x32xbf16>
    %62 = vector.shape_cast %61 : vector<1x1x8x32xbf16> to vector<8x32xbf16>
    %cst_37 = arith.constant dense<0.000000e+00> : vector<16x32xf32>
    %63 = tpu.matmul %60, %62, %cst_37 {dimension_numbers = #tpu.dot_dimension_numbers<[1], [0], [0], [1], [0, 0, 1, 1], [], []>} : vector<16x8xbf16>, vector<8x32xbf16>, vector<16x32xf32> -> vector<16x32xf32>
    %64 = arith.addf %35, %63 : vector<16x32xf32>
    %65 = vector.extract_strided_slice %18 {offsets = [0, 0, 8], sizes = [2, 8, 8], strides = [1, 1, 1]} : vector<2x8x32xf32> to vector<2x8x8xf32>
    %66 = arith.truncf %65 : vector<2x8x8xf32> to vector<2x8x8xbf16>
    %67 = vector.extract_strided_slice %26 {offsets = [0, 0, 8], sizes = [2, 8, 8], strides = [1, 1, 1]} : vector<2x8x32xf32> to vector<2x8x8xf32>
    %68 = arith.truncf %67 : vector<2x8x8xf32> to vector<2x8x8xbf16>
    %69 = vector.extract_strided_slice %34 {offsets = [0, 0, 8], sizes = [2, 8, 8], strides = [1, 1, 1]} : vector<2x8x32xf32> to vector<2x8x8xf32>
    %70 = arith.truncf %69 : vector<2x8x8xf32> to vector<2x8x8xbf16>
    "tpu.trace_start"() <{level = 10 : i32, message = "bqd,bkd->bqk"}> : () -> ()
    %cst_38 = arith.constant dense<0.000000e+00> : vector<2x8x8xf32>
    %71 = tpu.matmul %66, %68, %cst_38 {dimension_numbers = #tpu.dot_dimension_numbers<[2], [2], [1], [1], [0, 0, 0, 1, 1, 1], [0], [0]>} : vector<2x8x8xbf16>, vector<2x8x8xbf16>, vector<2x8x8xf32> -> vector<2x8x8xf32>
    "tpu.trace_stop"() : () -> ()
    %72 = vector.broadcast %8 : f32 to vector<2x8x8xf32>
    %73 = arith.mulf %71, %72 : vector<2x8x8xf32>
    %74 = vector.broadcast %6 : vector<2x1x8xf32> to vector<2x8x8xf32>
    %75 = arith.addf %73, %74 : vector<2x8x8xf32>
    %cst_39 = arith.constant dense<0xFF800000> : vector<2x8xf32>
    %76 = vector.multi_reduction <maximumf>, %75, %cst_39 [2] : vector<2x8x8xf32> to vector<2x8xf32>
    %77 = vector.shape_cast %76 : vector<2x8xf32> to vector<2x8x1xf32>
    %78 = vector.broadcast %77 : vector<2x8x1xf32> to vector<2x8x8xf32>
    %79 = arith.subf %75, %78 : vector<2x8x8xf32>
    %80 = math.exp %79 : vector<2x8x8xf32>
    %cst_40 = arith.constant dense<0.000000e+00> : vector<2x8xf32>
    %81 = vector.multi_reduction <add>, %80, %cst_40 [2] : vector<2x8x8xf32> to vector<2x8xf32>
    %82 = vector.shape_cast %81 : vector<2x8xf32> to vector<2x8x1xf32>
    %83 = tpu.reciprocal %82 {approx = true} : vector<2x8x1xf32> -> vector<2x8x1xf32>
    %84 = vector.broadcast %83 : vector<2x8x1xf32> to vector<2x8x8xf32>
    %85 = arith.mulf %80, %84 : vector<2x8x8xf32>
    %86 = arith.truncf %85 : vector<2x8x8xf32> to vector<2x8x8xbf16>
    "tpu.trace_start"() <{level = 10 : i32, message = "bqk,bkd->bqd"}> : () -> ()
    %cst_41 = arith.constant dense<0.000000e+00> : vector<2x8x8xf32>
    %87 = tpu.matmul %86, %70, %cst_41 {dimension_numbers = #tpu.dot_dimension_numbers<[2], [1], [1], [2], [0, 0, 0, 1, 1, 2], [0], [0]>} : vector<2x8x8xbf16>, vector<2x8x8xbf16>, vector<2x8x8xf32> -> vector<2x8x8xf32>
    "tpu.trace_stop"() : () -> ()
    %88 = vector.shape_cast %87 : vector<2x8x8xf32> to vector<16x8xf32>
    %89 = arith.truncf %88 : vector<16x8xf32> to vector<16x8xbf16>
    %c0_42 = arith.constant 0 : index
    %c1 = arith.constant 1 : index
    %c0_43 = arith.constant 0 : index
    %c0_44 = arith.constant 0 : index
    %90 = vector.load %arg9[%c0_42, %c1, %c0_43, %c0_44] : memref<2x4x8x32xbf16, #tpu.memory_space<vmem>>, vector<1x1x8x32xbf16>
    %91 = vector.shape_cast %90 : vector<1x1x8x32xbf16> to vector<8x32xbf16>
    %cst_45 = arith.constant dense<0.000000e+00> : vector<16x32xf32>
    %92 = tpu.matmul %89, %91, %cst_45 {dimension_numbers = #tpu.dot_dimension_numbers<[1], [0], [0], [1], [0, 0, 1, 1], [], []>} : vector<16x8xbf16>, vector<8x32xbf16>, vector<16x32xf32> -> vector<16x32xf32>
    %93 = arith.addf %64, %92 : vector<16x32xf32>
    %94 = vector.extract_strided_slice %18 {offsets = [0, 0, 16], sizes = [2, 8, 8], strides = [1, 1, 1]} : vector<2x8x32xf32> to vector<2x8x8xf32>
    %95 = arith.truncf %94 : vector<2x8x8xf32> to vector<2x8x8xbf16>
    %96 = vector.extract_strided_slice %26 {offsets = [0, 0, 16], sizes = [2, 8, 8], strides = [1, 1, 1]} : vector<2x8x32xf32> to vector<2x8x8xf32>
    %97 = arith.truncf %96 : vector<2x8x8xf32> to vector<2x8x8xbf16>
    %98 = vector.extract_strided_slice %34 {offsets = [0, 0, 16], sizes = [2, 8, 8], strides = [1, 1, 1]} : vector<2x8x32xf32> to vector<2x8x8xf32>
    %99 = arith.truncf %98 : vector<2x8x8xf32> to vector<2x8x8xbf16>
    "tpu.trace_start"() <{level = 10 : i32, message = "bqd,bkd->bqk"}> : () -> ()
    %cst_46 = arith.constant dense<0.000000e+00> : vector<2x8x8xf32>
    %100 = tpu.matmul %95, %97, %cst_46 {dimension_numbers = #tpu.dot_dimension_numbers<[2], [2], [1], [1], [0, 0, 0, 1, 1, 1], [0], [0]>} : vector<2x8x8xbf16>, vector<2x8x8xbf16>, vector<2x8x8xf32> -> vector<2x8x8xf32>
    "tpu.trace_stop"() : () -> ()
    %101 = vector.broadcast %8 : f32 to vector<2x8x8xf32>
    %102 = arith.mulf %100, %101 : vector<2x8x8xf32>
    %103 = vector.broadcast %6 : vector<2x1x8xf32> to vector<2x8x8xf32>
    %104 = arith.addf %102, %103 : vector<2x8x8xf32>
    %cst_47 = arith.constant dense<0xFF800000> : vector<2x8xf32>
    %105 = vector.multi_reduction <maximumf>, %104, %cst_47 [2] : vector<2x8x8xf32> to vector<2x8xf32>
    %106 = vector.shape_cast %105 : vector<2x8xf32> to vector<2x8x1xf32>
    %107 = vector.broadcast %106 : vector<2x8x1xf32> to vector<2x8x8xf32>
    %108 = arith.subf %104, %107 : vector<2x8x8xf32>
    %109 = math.exp %108 : vector<2x8x8xf32>
    %cst_48 = arith.constant dense<0.000000e+00> : vector<2x8xf32>
    %110 = vector.multi_reduction <add>, %109, %cst_48 [2] : vector<2x8x8xf32> to vector<2x8xf32>
    %111 = vector.shape_cast %110 : vector<2x8xf32> to vector<2x8x1xf32>
    %112 = tpu.reciprocal %111 {approx = true} : vector<2x8x1xf32> -> vector<2x8x1xf32>
    %113 = vector.broadcast %112 : vector<2x8x1xf32> to vector<2x8x8xf32>
    %114 = arith.mulf %109, %113 : vector<2x8x8xf32>
    %115 = arith.truncf %114 : vector<2x8x8xf32> to vector<2x8x8xbf16>
    "tpu.trace_start"() <{level = 10 : i32, message = "bqk,bkd->bqd"}> : () -> ()
    %cst_49 = arith.constant dense<0.000000e+00> : vector<2x8x8xf32>
    %116 = tpu.matmul %115, %99, %cst_49 {dimension_numbers = #tpu.dot_dimension_numbers<[2], [1], [1], [2], [0, 0, 0, 1, 1, 2], [0], [0]>} : vector<2x8x8xbf16>, vector<2x8x8xbf16>, vector<2x8x8xf32> -> vector<2x8x8xf32>
    "tpu.trace_stop"() : () -> ()
    %117 = vector.shape_cast %116 : vector<2x8x8xf32> to vector<16x8xf32>
    %118 = arith.truncf %117 : vector<16x8xf32> to vector<16x8xbf16>
    %c0_50 = arith.constant 0 : index
    %c2 = arith.constant 2 : index
    %c0_51 = arith.constant 0 : index
    %c0_52 = arith.constant 0 : index
    %119 = vector.load %arg9[%c0_50, %c2, %c0_51, %c0_52] : memref<2x4x8x32xbf16, #tpu.memory_space<vmem>>, vector<1x1x8x32xbf16>
    %120 = vector.shape_cast %119 : vector<1x1x8x32xbf16> to vector<8x32xbf16>
    %cst_53 = arith.constant dense<0.000000e+00> : vector<16x32xf32>
    %121 = tpu.matmul %118, %120, %cst_53 {dimension_numbers = #tpu.dot_dimension_numbers<[1], [0], [0], [1], [0, 0, 1, 1], [], []>} : vector<16x8xbf16>, vector<8x32xbf16>, vector<16x32xf32> -> vector<16x32xf32>
    %122 = arith.addf %93, %121 : vector<16x32xf32>
    %123 = vector.extract_strided_slice %18 {offsets = [0, 0, 24], sizes = [2, 8, 8], strides = [1, 1, 1]} : vector<2x8x32xf32> to vector<2x8x8xf32>
    %124 = arith.truncf %123 : vector<2x8x8xf32> to vector<2x8x8xbf16>
    %125 = vector.extract_strided_slice %26 {offsets = [0, 0, 24], sizes = [2, 8, 8], strides = [1, 1, 1]} : vector<2x8x32xf32> to vector<2x8x8xf32>
    %126 = arith.truncf %125 : vector<2x8x8xf32> to vector<2x8x8xbf16>
    %127 = vector.extract_strided_slice %34 {offsets = [0, 0, 24], sizes = [2, 8, 8], strides = [1, 1, 1]} : vector<2x8x32xf32> to vector<2x8x8xf32>
    %128 = arith.truncf %127 : vector<2x8x8xf32> to vector<2x8x8xbf16>
    "tpu.trace_start"() <{level = 10 : i32, message = "bqd,bkd->bqk"}> : () -> ()
    %cst_54 = arith.constant dense<0.000000e+00> : vector<2x8x8xf32>
    %129 = tpu.matmul %124, %126, %cst_54 {dimension_numbers = #tpu.dot_dimension_numbers<[2], [2], [1], [1], [0, 0, 0, 1, 1, 1], [0], [0]>} : vector<2x8x8xbf16>, vector<2x8x8xbf16>, vector<2x8x8xf32> -> vector<2x8x8xf32>
    "tpu.trace_stop"() : () -> ()
    %130 = vector.broadcast %8 : f32 to vector<2x8x8xf32>
    %131 = arith.mulf %129, %130 : vector<2x8x8xf32>
    %132 = vector.broadcast %6 : vector<2x1x8xf32> to vector<2x8x8xf32>
    %133 = arith.addf %131, %132 : vector<2x8x8xf32>
    %cst_55 = arith.constant dense<0xFF800000> : vector<2x8xf32>
    %134 = vector.multi_reduction <maximumf>, %133, %cst_55 [2] : vector<2x8x8xf32> to vector<2x8xf32>
    %135 = vector.shape_cast %134 : vector<2x8xf32> to vector<2x8x1xf32>
    %136 = vector.broadcast %135 : vector<2x8x1xf32> to vector<2x8x8xf32>
    %137 = arith.subf %133, %136 : vector<2x8x8xf32>
    %138 = math.exp %137 : vector<2x8x8xf32>
    %cst_56 = arith.constant dense<0.000000e+00> : vector<2x8xf32>
    %139 = vector.multi_reduction <add>, %138, %cst_56 [2] : vector<2x8x8xf32> to vector<2x8xf32>
    %140 = vector.shape_cast %139 : vector<2x8xf32> to vector<2x8x1xf32>
    %141 = tpu.reciprocal %140 {approx = true} : vector<2x8x1xf32> -> vector<2x8x1xf32>
    %142 = vector.broadcast %141 : vector<2x8x1xf32> to vector<2x8x8xf32>
    %143 = arith.mulf %138, %142 : vector<2x8x8xf32>
    %144 = arith.truncf %143 : vector<2x8x8xf32> to vector<2x8x8xbf16>
    "tpu.trace_start"() <{level = 10 : i32, message = "bqk,bkd->bqd"}> : () -> ()
    %cst_57 = arith.constant dense<0.000000e+00> : vector<2x8x8xf32>
    %145 = tpu.matmul %144, %128, %cst_57 {dimension_numbers = #tpu.dot_dimension_numbers<[2], [1], [1], [2], [0, 0, 0, 1, 1, 2], [0], [0]>} : vector<2x8x8xbf16>, vector<2x8x8xbf16>, vector<2x8x8xf32> -> vector<2x8x8xf32>
    "tpu.trace_stop"() : () -> ()
    %146 = vector.shape_cast %145 : vector<2x8x8xf32> to vector<16x8xf32>
    %147 = arith.truncf %146 : vector<16x8xf32> to vector<16x8xbf16>
    %c0_58 = arith.constant 0 : index
    %c3 = arith.constant 3 : index
    %c0_59 = arith.constant 0 : index
    %c0_60 = arith.constant 0 : index
    %148 = vector.load %arg9[%c0_58, %c3, %c0_59, %c0_60] : memref<2x4x8x32xbf16, #tpu.memory_space<vmem>>, vector<1x1x8x32xbf16>
    %149 = vector.shape_cast %148 : vector<1x1x8x32xbf16> to vector<8x32xbf16>
    %cst_61 = arith.constant dense<0.000000e+00> : vector<16x32xf32>
    %150 = tpu.matmul %147, %149, %cst_61 {dimension_numbers = #tpu.dot_dimension_numbers<[1], [0], [0], [1], [0, 0, 1, 1], [], []>} : vector<16x8xbf16>, vector<8x32xbf16>, vector<16x32xf32> -> vector<16x32xf32>
    %151 = arith.addf %122, %150 : vector<16x32xf32>
    %c0_62 = arith.constant 0 : index
    %c0_63 = arith.constant 0 : index
    %c0_64 = arith.constant 0 : index
    %152 = vector.load %arg10[%c0_62, %c0_63, %c0_64] : memref<2x1x32xf32, #tpu.memory_space<vmem>>, vector<1x1x32xf32>
    %153 = vector.shape_cast %152 : vector<1x1x32xf32> to vector<1x32xf32>
    %154 = vector.broadcast %153 : vector<1x32xf32> to vector<16x32xf32>
    %155 = arith.addf %151, %154 : vector<16x32xf32>
    %156 = vector.shape_cast %155 : vector<16x32xf32> to vector<2x8x32xf32>
    %157 = arith.addf %0, %156 : vector<2x8x32xf32>
    %c0_65 = arith.constant 0 : index
    %c0_66 = arith.constant 0 : index
    %c0_67 = arith.constant 0 : index
    %158 = vector.load %arg11[%c0_65, %c0_66, %c0_67] : memref<2x1x32xf32, #tpu.memory_space<vmem>>, vector<1x1x32xf32>
    %159 = vector.shape_cast %158 : vector<1x1x32xf32> to vector<1x32xf32>
    %c0_68 = arith.constant 0 : index
    %c0_69 = arith.constant 0 : index
    %c0_70 = arith.constant 0 : index
    %160 = vector.load %arg12[%c0_68, %c0_69, %c0_70] : memref<2x1x32xf32, #tpu.memory_space<vmem>>, vector<1x1x32xf32>
    %161 = vector.shape_cast %160 : vector<1x1x32xf32> to vector<1x32xf32>
    %cst_71 = arith.constant dense<0.000000e+00> : vector<2x8xf32>
    %162 = vector.multi_reduction <add>, %157, %cst_71 [2] : vector<2x8x32xf32> to vector<2x8xf32>
    %163 = vector.shape_cast %162 : vector<2x8xf32> to vector<2x8x1xf32>
    %cst_72 = arith.constant 3.200000e+01 : f32
    %164 = vector.broadcast %cst_72 : f32 to vector<2x8x1xf32>
    %165 = arith.divf %163, %164 : vector<2x8x1xf32>
    %166 = vector.broadcast %165 : vector<2x8x1xf32> to vector<2x8x32xf32>
    %167 = arith.subf %157, %166 : vector<2x8x32xf32>
    %168 = arith.mulf %167, %167 : vector<2x8x32xf32>
    %cst_73 = arith.constant dense<0.000000e+00> : vector<2x8xf32>
    %169 = vector.multi_reduction <add>, %168, %cst_73 [2] : vector<2x8x32xf32> to vector<2x8xf32>
    %170 = vector.shape_cast %169 : vector<2x8xf32> to vector<2x8x1xf32>
    %cst_74 = arith.constant 3.200000e+01 : f32
    %171 = vector.broadcast %cst_74 : f32 to vector<2x8x1xf32>
    %172 = arith.divf %170, %171 : vector<2x8x1xf32>
    %173 = vector.broadcast %165 : vector<2x8x1xf32> to vector<2x8x32xf32>
    %174 = arith.subf %157, %173 : vector<2x8x32xf32>
    %cst_75 = arith.constant 9.99999974E-6 : f32
    %175 = vector.broadcast %cst_75 : f32 to vector<2x8x1xf32>
    %176 = arith.addf %172, %175 : vector<2x8x1xf32>
    %177 = math.rsqrt %176 : vector<2x8x1xf32>
    %178 = vector.broadcast %177 : vector<2x8x1xf32> to vector<2x8x32xf32>
    %179 = arith.mulf %174, %178 : vector<2x8x32xf32>
    %180 = vector.shape_cast %159 : vector<1x32xf32> to vector<1x1x32xf32>
    %181 = vector.broadcast %180 : vector<1x1x32xf32> to vector<2x8x32xf32>
    %182 = arith.mulf %179, %181 : vector<2x8x32xf32>
    %183 = vector.shape_cast %161 : vector<1x32xf32> to vector<1x1x32xf32>
    %184 = vector.broadcast %183 : vector<1x1x32xf32> to vector<2x8x32xf32>
    %185 = arith.addf %182, %184 : vector<2x8x32xf32>
    %186 = vector.shape_cast %185 : vector<2x8x32xf32> to vector<16x32xf32>
    %187 = arith.truncf %186 : vector<16x32xf32> to vector<16x32xbf16>
    %c0_76 = arith.constant 0 : index
    %c0_77 = arith.constant 0 : index
    %c0_78 = arith.constant 0 : index
    %188 = vector.load %arg13[%c0_76, %c0_77, %c0_78] : memref<2x32x64xbf16, #tpu.memory_space<vmem>>, vector<1x32x64xbf16>
    %189 = vector.shape_cast %188 : vector<1x32x64xbf16> to vector<32x64xbf16>
    %cst_79 = arith.constant dense<0.000000e+00> : vector<16x64xf32>
    %190 = tpu.matmul %187, %189, %cst_79 {dimension_numbers = #tpu.dot_dimension_numbers<[1], [0], [0], [1], [0, 0, 1, 1], [], []>} : vector<16x32xbf16>, vector<32x64xbf16>, vector<16x64xf32> -> vector<16x64xf32>
    %c0_80 = arith.constant 0 : index
    %c0_81 = arith.constant 0 : index
    %c0_82 = arith.constant 0 : index
    %191 = vector.load %arg14[%c0_80, %c0_81, %c0_82] : memref<2x1x64xf32, #tpu.memory_space<vmem>>, vector<1x1x64xf32>
    %192 = vector.shape_cast %191 : vector<1x1x64xf32> to vector<1x64xf32>
    %193 = vector.broadcast %192 : vector<1x64xf32> to vector<16x64xf32>
    %194 = arith.addf %190, %193 : vector<16x64xf32>
    %195 = arith.mulf %194, %194 : vector<16x64xf32>
    %196 = arith.mulf %194, %195 : vector<16x64xf32>
    %cst_83 = arith.constant 4.471500e-02 : f32
    %197 = vector.broadcast %cst_83 : f32 to vector<16x64xf32>
    %198 = arith.mulf %197, %196 : vector<16x64xf32>
    %199 = arith.addf %194, %198 : vector<16x64xf32>
    %cst_84 = arith.constant 0.797884583 : f32
    %200 = vector.broadcast %cst_84 : f32 to vector<16x64xf32>
    %201 = arith.mulf %200, %199 : vector<16x64xf32>
    %202 = math.tanh %201 : vector<16x64xf32>
    %cst_85 = arith.constant 1.000000e+00 : f32
    %203 = vector.broadcast %cst_85 : f32 to vector<16x64xf32>
    %204 = arith.addf %203, %202 : vector<16x64xf32>
    %cst_86 = arith.constant 5.000000e-01 : f32
    %205 = vector.broadcast %cst_86 : f32 to vector<16x64xf32>
    %206 = arith.mulf %205, %204 : vector<16x64xf32>
    %207 = arith.mulf %194, %206 : vector<16x64xf32>
    %208 = arith.truncf %207 : vector<16x64xf32> to vector<16x64xbf16>
    %c0_87 = arith.constant 0 : index
    %c0_88 = arith.constant 0 : index
    %c0_89 = arith.constant 0 : index
    %209 = vector.load %arg15[%c0_87, %c0_88, %c0_89] : memref<2x64x32xbf16, #tpu.memory_space<vmem>>, vector<1x64x32xbf16>
    %210 = vector.shape_cast %209 : vector<1x64x32xbf16> to vector<64x32xbf16>
    %cst_90 = arith.constant dense<0.000000e+00> : vector<16x32xf32>
    %211 = tpu.matmul %208, %210, %cst_90 {dimension_numbers = #tpu.dot_dimension_numbers<[1], [0], [0], [1], [0, 0, 1, 1], [], []>} : vector<16x64xbf16>, vector<64x32xbf16>, vector<16x32xf32> -> vector<16x32xf32>
    %c0_91 = arith.constant 0 : index
    %c0_92 = arith.constant 0 : index
    %c0_93 = arith.constant 0 : index
    %212 = vector.load %arg16[%c0_91, %c0_92, %c0_93] : memref<2x1x32xf32, #tpu.memory_space<vmem>>, vector<1x1x32xf32>
    %213 = vector.shape_cast %212 : vector<1x1x32xf32> to vector<1x32xf32>
    %214 = vector.broadcast %213 : vector<1x32xf32> to vector<16x32xf32>
    %215 = arith.addf %211, %214 : vector<16x32xf32>
    %216 = vector.shape_cast %215 : vector<16x32xf32> to vector<2x8x32xf32>
    %217 = arith.addf %185, %216 : vector<2x8x32xf32>
    %c0_94 = arith.constant 0 : index
    %c0_95 = arith.constant 0 : index
    %c0_96 = arith.constant 0 : index
    %218 = vector.load %arg17[%c0_94, %c0_95, %c0_96] : memref<2x1x32xf32, #tpu.memory_space<vmem>>, vector<1x1x32xf32>
    %219 = vector.shape_cast %218 : vector<1x1x32xf32> to vector<1x32xf32>
    %c0_97 = arith.constant 0 : index
    %c0_98 = arith.constant 0 : index
    %c0_99 = arith.constant 0 : index
    %220 = vector.load %arg18[%c0_97, %c0_98, %c0_99] : memref<2x1x32xf32, #tpu.memory_space<vmem>>, vector<1x1x32xf32>
    %221 = vector.shape_cast %220 : vector<1x1x32xf32> to vector<1x32xf32>
    %cst_100 = arith.constant dense<0.000000e+00> : vector<2x8xf32>
    %222 = vector.multi_reduction <add>, %217, %cst_100 [2] : vector<2x8x32xf32> to vector<2x8xf32>
    %223 = vector.shape_cast %222 : vector<2x8xf32> to vector<2x8x1xf32>
    %cst_101 = arith.constant 3.200000e+01 : f32
    %224 = vector.broadcast %cst_101 : f32 to vector<2x8x1xf32>
    %225 = arith.divf %223, %224 : vector<2x8x1xf32>
    %226 = vector.broadcast %225 : vector<2x8x1xf32> to vector<2x8x32xf32>
    %227 = arith.subf %217, %226 : vector<2x8x32xf32>
    %228 = arith.mulf %227, %227 : vector<2x8x32xf32>
    %cst_102 = arith.constant dense<0.000000e+00> : vector<2x8xf32>
    %229 = vector.multi_reduction <add>, %228, %cst_102 [2] : vector<2x8x32xf32> to vector<2x8xf32>
    %230 = vector.shape_cast %229 : vector<2x8xf32> to vector<2x8x1xf32>
    %cst_103 = arith.constant 3.200000e+01 : f32
    %231 = vector.broadcast %cst_103 : f32 to vector<2x8x1xf32>
    %232 = arith.divf %230, %231 : vector<2x8x1xf32>
    %233 = vector.broadcast %225 : vector<2x8x1xf32> to vector<2x8x32xf32>
    %234 = arith.subf %217, %233 : vector<2x8x32xf32>
    %cst_104 = arith.constant 9.99999974E-6 : f32
    %235 = vector.broadcast %cst_104 : f32 to vector<2x8x1xf32>
    %236 = arith.addf %232, %235 : vector<2x8x1xf32>
    %237 = math.rsqrt %236 : vector<2x8x1xf32>
    %238 = vector.broadcast %237 : vector<2x8x1xf32> to vector<2x8x32xf32>
    %239 = arith.mulf %234, %238 : vector<2x8x32xf32>
    %240 = vector.shape_cast %219 : vector<1x32xf32> to vector<1x1x32xf32>
    %241 = vector.broadcast %240 : vector<1x1x32xf32> to vector<2x8x32xf32>
    %242 = arith.mulf %239, %241 : vector<2x8x32xf32>
    %243 = vector.shape_cast %221 : vector<1x32xf32> to vector<1x1x32xf32>
    %244 = vector.broadcast %243 : vector<1x1x32xf32> to vector<2x8x32xf32>
    %245 = arith.addf %242, %244 : vector<2x8x32xf32>
    %246 = vector.shape_cast %245 : vector<2x8x32xf32> to vector<16x32xf32>
    %247 = arith.truncf %246 : vector<16x32xf32> to vector<16x32xbf16>
    %c1_105 = arith.constant 1 : index
    %c0_106 = arith.constant 0 : index
    %c0_107 = arith.constant 0 : index
    %248 = vector.load %arg3[%c1_105, %c0_106, %c0_107] : memref<2x32x32xbf16, #tpu.memory_space<vmem>>, vector<1x32x32xbf16>
    %249 = vector.shape_cast %248 : vector<1x32x32xbf16> to vector<32x32xbf16>
    %cst_108 = arith.constant dense<0.000000e+00> : vector<16x32xf32>
    %250 = tpu.matmul %247, %249, %cst_108 {dimension_numbers = #tpu.dot_dimension_numbers<[1], [0], [0], [1], [0, 0, 1, 1], [], []>} : vector<16x32xbf16>, vector<32x32xbf16>, vector<16x32xf32> -> vector<16x32xf32>
    %c1_109 = arith.constant 1 : index
    %c0_110 = arith.constant 0 : index
    %c0_111 = arith.constant 0 : index
    %251 = vector.load %arg4[%c1_109, %c0_110, %c0_111] : memref<2x1x32xf32, #tpu.memory_space<vmem>>, vector<1x1x32xf32>
    %252 = vector.shape_cast %251 : vector<1x1x32xf32> to vector<1x32xf32>
    %253 = vector.broadcast %252 : vector<1x32xf32> to vector<16x32xf32>
    %254 = arith.addf %250, %253 : vector<16x32xf32>
    %255 = vector.shape_cast %254 : vector<16x32xf32> to vector<2x8x32xf32>
    %c1_112 = arith.constant 1 : index
    %c0_113 = arith.constant 0 : index
    %c0_114 = arith.constant 0 : index
    %256 = vector.load %arg5[%c1_112, %c0_113, %c0_114] : memref<2x32x32xbf16, #tpu.memory_space<vmem>>, vector<1x32x32xbf16>
    %257 = vector.shape_cast %256 : vector<1x32x32xbf16> to vector<32x32xbf16>
    %cst_115 = arith.constant dense<0.000000e+00> : vector<16x32xf32>
    %258 = tpu.matmul %247, %257, %cst_115 {dimension_numbers = #tpu.dot_dimension_numbers<[1], [0], [0], [1], [0, 0, 1, 1], [], []>} : vector<16x32xbf16>, vector<32x32xbf16>, vector<16x32xf32> -> vector<16x32xf32>
    %c1_116 = arith.constant 1 : index
    %c0_117 = arith.constant 0 : index
    %c0_118 = arith.constant 0 : index
    %259 = vector.load %arg6[%c1_116, %c0_117, %c0_118] : memref<2x1x32xf32, #tpu.memory_space<vmem>>, vector<1x1x32xf32>
    %260 = vector.shape_cast %259 : vector<1x1x32xf32> to vector<1x32xf32>
    %261 = vector.broadcast %260 : vector<1x32xf32> to vector<16x32xf32>
    %262 = arith.addf %258, %261 : vector<16x32xf32>
    %263 = vector.shape_cast %262 : vector<16x32xf32> to vector<2x8x32xf32>
    %c1_119 = arith.constant 1 : index
    %c0_120 = arith.constant 0 : index
    %c0_121 = arith.constant 0 : index
    %264 = vector.load %arg7[%c1_119, %c0_120, %c0_121] : memref<2x32x32xbf16, #tpu.memory_space<vmem>>, vector<1x32x32xbf16>
    %265 = vector.shape_cast %264 : vector<1x32x32xbf16> to vector<32x32xbf16>
    %cst_122 = arith.constant dense<0.000000e+00> : vector<16x32xf32>
    %266 = tpu.matmul %247, %265, %cst_122 {dimension_numbers = #tpu.dot_dimension_numbers<[1], [0], [0], [1], [0, 0, 1, 1], [], []>} : vector<16x32xbf16>, vector<32x32xbf16>, vector<16x32xf32> -> vector<16x32xf32>
    %c1_123 = arith.constant 1 : index
    %c0_124 = arith.constant 0 : index
    %c0_125 = arith.constant 0 : index
    %267 = vector.load %arg8[%c1_123, %c0_124, %c0_125] : memref<2x1x32xf32, #tpu.memory_space<vmem>>, vector<1x1x32xf32>
    %268 = vector.shape_cast %267 : vector<1x1x32xf32> to vector<1x32xf32>
    %269 = vector.broadcast %268 : vector<1x32xf32> to vector<16x32xf32>
    %270 = arith.addf %266, %269 : vector<16x32xf32>
    %271 = vector.shape_cast %270 : vector<16x32xf32> to vector<2x8x32xf32>
    %cst_126 = arith.constant 0.000000e+00 : f32
    %272 = vector.broadcast %cst_126 : f32 to vector<16x32xf32>
    %273 = vector.extract_strided_slice %255 {offsets = [0, 0, 0], sizes = [2, 8, 8], strides = [1, 1, 1]} : vector<2x8x32xf32> to vector<2x8x8xf32>
    %274 = arith.truncf %273 : vector<2x8x8xf32> to vector<2x8x8xbf16>
    %275 = vector.extract_strided_slice %263 {offsets = [0, 0, 0], sizes = [2, 8, 8], strides = [1, 1, 1]} : vector<2x8x32xf32> to vector<2x8x8xf32>
    %276 = arith.truncf %275 : vector<2x8x8xf32> to vector<2x8x8xbf16>
    %277 = vector.extract_strided_slice %271 {offsets = [0, 0, 0], sizes = [2, 8, 8], strides = [1, 1, 1]} : vector<2x8x32xf32> to vector<2x8x8xf32>
    %278 = arith.truncf %277 : vector<2x8x8xf32> to vector<2x8x8xbf16>
    "tpu.trace_start"() <{level = 10 : i32, message = "bqd,bkd->bqk"}> : () -> ()
    %cst_127 = arith.constant dense<0.000000e+00> : vector<2x8x8xf32>
    %279 = tpu.matmul %274, %276, %cst_127 {dimension_numbers = #tpu.dot_dimension_numbers<[2], [2], [1], [1], [0, 0, 0, 1, 1, 1], [0], [0]>} : vector<2x8x8xbf16>, vector<2x8x8xbf16>, vector<2x8x8xf32> -> vector<2x8x8xf32>
    "tpu.trace_stop"() : () -> ()
    %280 = vector.broadcast %8 : f32 to vector<2x8x8xf32>
    %281 = arith.mulf %279, %280 : vector<2x8x8xf32>
    %282 = vector.broadcast %6 : vector<2x1x8xf32> to vector<2x8x8xf32>
    %283 = arith.addf %281, %282 : vector<2x8x8xf32>
    %cst_128 = arith.constant dense<0xFF800000> : vector<2x8xf32>
    %284 = vector.multi_reduction <maximumf>, %283, %cst_128 [2] : vector<2x8x8xf32> to vector<2x8xf32>
    %285 = vector.shape_cast %284 : vector<2x8xf32> to vector<2x8x1xf32>
    %286 = vector.broadcast %285 : vector<2x8x1xf32> to vector<2x8x8xf32>
    %287 = arith.subf %283, %286 : vector<2x8x8xf32>
    %288 = math.exp %287 : vector<2x8x8xf32>
    %cst_129 = arith.constant dense<0.000000e+00> : vector<2x8xf32>
    %289 = vector.multi_reduction <add>, %288, %cst_129 [2] : vector<2x8x8xf32> to vector<2x8xf32>
    %290 = vector.shape_cast %289 : vector<2x8xf32> to vector<2x8x1xf32>
    %291 = tpu.reciprocal %290 {approx = true} : vector<2x8x1xf32> -> vector<2x8x1xf32>
    %292 = vector.broadcast %291 : vector<2x8x1xf32> to vector<2x8x8xf32>
    %293 = arith.mulf %288, %292 : vector<2x8x8xf32>
    %294 = arith.truncf %293 : vector<2x8x8xf32> to vector<2x8x8xbf16>
    "tpu.trace_start"() <{level = 10 : i32, message = "bqk,bkd->bqd"}> : () -> ()
    %cst_130 = arith.constant dense<0.000000e+00> : vector<2x8x8xf32>
    %295 = tpu.matmul %294, %278, %cst_130 {dimension_numbers = #tpu.dot_dimension_numbers<[2], [1], [1], [2], [0, 0, 0, 1, 1, 2], [0], [0]>} : vector<2x8x8xbf16>, vector<2x8x8xbf16>, vector<2x8x8xf32> -> vector<2x8x8xf32>
    "tpu.trace_stop"() : () -> ()
    %296 = vector.shape_cast %295 : vector<2x8x8xf32> to vector<16x8xf32>
    %297 = arith.truncf %296 : vector<16x8xf32> to vector<16x8xbf16>
    %c1_131 = arith.constant 1 : index
    %c0_132 = arith.constant 0 : index
    %c0_133 = arith.constant 0 : index
    %c0_134 = arith.constant 0 : index
    %298 = vector.load %arg9[%c1_131, %c0_132, %c0_133, %c0_134] : memref<2x4x8x32xbf16, #tpu.memory_space<vmem>>, vector<1x1x8x32xbf16>
    %299 = vector.shape_cast %298 : vector<1x1x8x32xbf16> to vector<8x32xbf16>
    %cst_135 = arith.constant dense<0.000000e+00> : vector<16x32xf32>
    %300 = tpu.matmul %297, %299, %cst_135 {dimension_numbers = #tpu.dot_dimension_numbers<[1], [0], [0], [1], [0, 0, 1, 1], [], []>} : vector<16x8xbf16>, vector<8x32xbf16>, vector<16x32xf32> -> vector<16x32xf32>
    %301 = arith.addf %272, %300 : vector<16x32xf32>
    %302 = vector.extract_strided_slice %255 {offsets = [0, 0, 8], sizes = [2, 8, 8], strides = [1, 1, 1]} : vector<2x8x32xf32> to vector<2x8x8xf32>
    %303 = arith.truncf %302 : vector<2x8x8xf32> to vector<2x8x8xbf16>
    %304 = vector.extract_strided_slice %263 {offsets = [0, 0, 8], sizes = [2, 8, 8], strides = [1, 1, 1]} : vector<2x8x32xf32> to vector<2x8x8xf32>
    %305 = arith.truncf %304 : vector<2x8x8xf32> to vector<2x8x8xbf16>
    %306 = vector.extract_strided_slice %271 {offsets = [0, 0, 8], sizes = [2, 8, 8], strides = [1, 1, 1]} : vector<2x8x32xf32> to vector<2x8x8xf32>
    %307 = arith.truncf %306 : vector<2x8x8xf32> to vector<2x8x8xbf16>
    "tpu.trace_start"() <{level = 10 : i32, message = "bqd,bkd->bqk"}> : () -> ()
    %cst_136 = arith.constant dense<0.000000e+00> : vector<2x8x8xf32>
    %308 = tpu.matmul %303, %305, %cst_136 {dimension_numbers = #tpu.dot_dimension_numbers<[2], [2], [1], [1], [0, 0, 0, 1, 1, 1], [0], [0]>} : vector<2x8x8xbf16>, vector<2x8x8xbf16>, vector<2x8x8xf32> -> vector<2x8x8xf32>
    "tpu.trace_stop"() : () -> ()
    %309 = vector.broadcast %8 : f32 to vector<2x8x8xf32>
    %310 = arith.mulf %308, %309 : vector<2x8x8xf32>
    %311 = vector.broadcast %6 : vector<2x1x8xf32> to vector<2x8x8xf32>
    %312 = arith.addf %310, %311 : vector<2x8x8xf32>
    %cst_137 = arith.constant dense<0xFF800000> : vector<2x8xf32>
    %313 = vector.multi_reduction <maximumf>, %312, %cst_137 [2] : vector<2x8x8xf32> to vector<2x8xf32>
    %314 = vector.shape_cast %313 : vector<2x8xf32> to vector<2x8x1xf32>
    %315 = vector.broadcast %314 : vector<2x8x1xf32> to vector<2x8x8xf32>
    %316 = arith.subf %312, %315 : vector<2x8x8xf32>
    %317 = math.exp %316 : vector<2x8x8xf32>
    %cst_138 = arith.constant dense<0.000000e+00> : vector<2x8xf32>
    %318 = vector.multi_reduction <add>, %317, %cst_138 [2] : vector<2x8x8xf32> to vector<2x8xf32>
    %319 = vector.shape_cast %318 : vector<2x8xf32> to vector<2x8x1xf32>
    %320 = tpu.reciprocal %319 {approx = true} : vector<2x8x1xf32> -> vector<2x8x1xf32>
    %321 = vector.broadcast %320 : vector<2x8x1xf32> to vector<2x8x8xf32>
    %322 = arith.mulf %317, %321 : vector<2x8x8xf32>
    %323 = arith.truncf %322 : vector<2x8x8xf32> to vector<2x8x8xbf16>
    "tpu.trace_start"() <{level = 10 : i32, message = "bqk,bkd->bqd"}> : () -> ()
    %cst_139 = arith.constant dense<0.000000e+00> : vector<2x8x8xf32>
    %324 = tpu.matmul %323, %307, %cst_139 {dimension_numbers = #tpu.dot_dimension_numbers<[2], [1], [1], [2], [0, 0, 0, 1, 1, 2], [0], [0]>} : vector<2x8x8xbf16>, vector<2x8x8xbf16>, vector<2x8x8xf32> -> vector<2x8x8xf32>
    "tpu.trace_stop"() : () -> ()
    %325 = vector.shape_cast %324 : vector<2x8x8xf32> to vector<16x8xf32>
    %326 = arith.truncf %325 : vector<16x8xf32> to vector<16x8xbf16>
    %c1_140 = arith.constant 1 : index
    %c1_141 = arith.constant 1 : index
    %c0_142 = arith.constant 0 : index
    %c0_143 = arith.constant 0 : index
    %327 = vector.load %arg9[%c1_140, %c1_141, %c0_142, %c0_143] : memref<2x4x8x32xbf16, #tpu.memory_space<vmem>>, vector<1x1x8x32xbf16>
    %328 = vector.shape_cast %327 : vector<1x1x8x32xbf16> to vector<8x32xbf16>
    %cst_144 = arith.constant dense<0.000000e+00> : vector<16x32xf32>
    %329 = tpu.matmul %326, %328, %cst_144 {dimension_numbers = #tpu.dot_dimension_numbers<[1], [0], [0], [1], [0, 0, 1, 1], [], []>} : vector<16x8xbf16>, vector<8x32xbf16>, vector<16x32xf32> -> vector<16x32xf32>
    %330 = arith.addf %301, %329 : vector<16x32xf32>
    %331 = vector.extract_strided_slice %255 {offsets = [0, 0, 16], sizes = [2, 8, 8], strides = [1, 1, 1]} : vector<2x8x32xf32> to vector<2x8x8xf32>
    %332 = arith.truncf %331 : vector<2x8x8xf32> to vector<2x8x8xbf16>
    %333 = vector.extract_strided_slice %263 {offsets = [0, 0, 16], sizes = [2, 8, 8], strides = [1, 1, 1]} : vector<2x8x32xf32> to vector<2x8x8xf32>
    %334 = arith.truncf %333 : vector<2x8x8xf32> to vector<2x8x8xbf16>
    %335 = vector.extract_strided_slice %271 {offsets = [0, 0, 16], sizes = [2, 8, 8], strides = [1, 1, 1]} : vector<2x8x32xf32> to vector<2x8x8xf32>
    %336 = arith.truncf %335 : vector<2x8x8xf32> to vector<2x8x8xbf16>
    "tpu.trace_start"() <{level = 10 : i32, message = "bqd,bkd->bqk"}> : () -> ()
    %cst_145 = arith.constant dense<0.000000e+00> : vector<2x8x8xf32>
    %337 = tpu.matmul %332, %334, %cst_145 {dimension_numbers = #tpu.dot_dimension_numbers<[2], [2], [1], [1], [0, 0, 0, 1, 1, 1], [0], [0]>} : vector<2x8x8xbf16>, vector<2x8x8xbf16>, vector<2x8x8xf32> -> vector<2x8x8xf32>
    "tpu.trace_stop"() : () -> ()
    %338 = vector.broadcast %8 : f32 to vector<2x8x8xf32>
    %339 = arith.mulf %337, %338 : vector<2x8x8xf32>
    %340 = vector.broadcast %6 : vector<2x1x8xf32> to vector<2x8x8xf32>
    %341 = arith.addf %339, %340 : vector<2x8x8xf32>
    %cst_146 = arith.constant dense<0xFF800000> : vector<2x8xf32>
    %342 = vector.multi_reduction <maximumf>, %341, %cst_146 [2] : vector<2x8x8xf32> to vector<2x8xf32>
    %343 = vector.shape_cast %342 : vector<2x8xf32> to vector<2x8x1xf32>
    %344 = vector.broadcast %343 : vector<2x8x1xf32> to vector<2x8x8xf32>
    %345 = arith.subf %341, %344 : vector<2x8x8xf32>
    %346 = math.exp %345 : vector<2x8x8xf32>
    %cst_147 = arith.constant dense<0.000000e+00> : vector<2x8xf32>
    %347 = vector.multi_reduction <add>, %346, %cst_147 [2] : vector<2x8x8xf32> to vector<2x8xf32>
    %348 = vector.shape_cast %347 : vector<2x8xf32> to vector<2x8x1xf32>
    %349 = tpu.reciprocal %348 {approx = true} : vector<2x8x1xf32> -> vector<2x8x1xf32>
    %350 = vector.broadcast %349 : vector<2x8x1xf32> to vector<2x8x8xf32>
    %351 = arith.mulf %346, %350 : vector<2x8x8xf32>
    %352 = arith.truncf %351 : vector<2x8x8xf32> to vector<2x8x8xbf16>
    "tpu.trace_start"() <{level = 10 : i32, message = "bqk,bkd->bqd"}> : () -> ()
    %cst_148 = arith.constant dense<0.000000e+00> : vector<2x8x8xf32>
    %353 = tpu.matmul %352, %336, %cst_148 {dimension_numbers = #tpu.dot_dimension_numbers<[2], [1], [1], [2], [0, 0, 0, 1, 1, 2], [0], [0]>} : vector<2x8x8xbf16>, vector<2x8x8xbf16>, vector<2x8x8xf32> -> vector<2x8x8xf32>
    "tpu.trace_stop"() : () -> ()
    %354 = vector.shape_cast %353 : vector<2x8x8xf32> to vector<16x8xf32>
    %355 = arith.truncf %354 : vector<16x8xf32> to vector<16x8xbf16>
    %c1_149 = arith.constant 1 : index
    %c2_150 = arith.constant 2 : index
    %c0_151 = arith.constant 0 : index
    %c0_152 = arith.constant 0 : index
    %356 = vector.load %arg9[%c1_149, %c2_150, %c0_151, %c0_152] : memref<2x4x8x32xbf16, #tpu.memory_space<vmem>>, vector<1x1x8x32xbf16>
    %357 = vector.shape_cast %356 : vector<1x1x8x32xbf16> to vector<8x32xbf16>
    %cst_153 = arith.constant dense<0.000000e+00> : vector<16x32xf32>
    %358 = tpu.matmul %355, %357, %cst_153 {dimension_numbers = #tpu.dot_dimension_numbers<[1], [0], [0], [1], [0, 0, 1, 1], [], []>} : vector<16x8xbf16>, vector<8x32xbf16>, vector<16x32xf32> -> vector<16x32xf32>
    %359 = arith.addf %330, %358 : vector<16x32xf32>
    %360 = vector.extract_strided_slice %255 {offsets = [0, 0, 24], sizes = [2, 8, 8], strides = [1, 1, 1]} : vector<2x8x32xf32> to vector<2x8x8xf32>
    %361 = arith.truncf %360 : vector<2x8x8xf32> to vector<2x8x8xbf16>
    %362 = vector.extract_strided_slice %263 {offsets = [0, 0, 24], sizes = [2, 8, 8], strides = [1, 1, 1]} : vector<2x8x32xf32> to vector<2x8x8xf32>
    %363 = arith.truncf %362 : vector<2x8x8xf32> to vector<2x8x8xbf16>
    %364 = vector.extract_strided_slice %271 {offsets = [0, 0, 24], sizes = [2, 8, 8], strides = [1, 1, 1]} : vector<2x8x32xf32> to vector<2x8x8xf32>
    %365 = arith.truncf %364 : vector<2x8x8xf32> to vector<2x8x8xbf16>
    "tpu.trace_start"() <{level = 10 : i32, message = "bqd,bkd->bqk"}> : () -> ()
    %cst_154 = arith.constant dense<0.000000e+00> : vector<2x8x8xf32>
    %366 = tpu.matmul %361, %363, %cst_154 {dimension_numbers = #tpu.dot_dimension_numbers<[2], [2], [1], [1], [0, 0, 0, 1, 1, 1], [0], [0]>} : vector<2x8x8xbf16>, vector<2x8x8xbf16>, vector<2x8x8xf32> -> vector<2x8x8xf32>
    "tpu.trace_stop"() : () -> ()
    %367 = vector.broadcast %8 : f32 to vector<2x8x8xf32>
    %368 = arith.mulf %366, %367 : vector<2x8x8xf32>
    %369 = vector.broadcast %6 : vector<2x1x8xf32> to vector<2x8x8xf32>
    %370 = arith.addf %368, %369 : vector<2x8x8xf32>
    %cst_155 = arith.constant dense<0xFF800000> : vector<2x8xf32>
    %371 = vector.multi_reduction <maximumf>, %370, %cst_155 [2] : vector<2x8x8xf32> to vector<2x8xf32>
    %372 = vector.shape_cast %371 : vector<2x8xf32> to vector<2x8x1xf32>
    %373 = vector.broadcast %372 : vector<2x8x1xf32> to vector<2x8x8xf32>
    %374 = arith.subf %370, %373 : vector<2x8x8xf32>
    %375 = math.exp %374 : vector<2x8x8xf32>
    %cst_156 = arith.constant dense<0.000000e+00> : vector<2x8xf32>
    %376 = vector.multi_reduction <add>, %375, %cst_156 [2] : vector<2x8x8xf32> to vector<2x8xf32>
    %377 = vector.shape_cast %376 : vector<2x8xf32> to vector<2x8x1xf32>
    %378 = tpu.reciprocal %377 {approx = true} : vector<2x8x1xf32> -> vector<2x8x1xf32>
    %379 = vector.broadcast %378 : vector<2x8x1xf32> to vector<2x8x8xf32>
    %380 = arith.mulf %375, %379 : vector<2x8x8xf32>
    %381 = arith.truncf %380 : vector<2x8x8xf32> to vector<2x8x8xbf16>
    "tpu.trace_start"() <{level = 10 : i32, message = "bqk,bkd->bqd"}> : () -> ()
    %cst_157 = arith.constant dense<0.000000e+00> : vector<2x8x8xf32>
    %382 = tpu.matmul %381, %365, %cst_157 {dimension_numbers = #tpu.dot_dimension_numbers<[2], [1], [1], [2], [0, 0, 0, 1, 1, 2], [0], [0]>} : vector<2x8x8xbf16>, vector<2x8x8xbf16>, vector<2x8x8xf32> -> vector<2x8x8xf32>
    "tpu.trace_stop"() : () -> ()
    %383 = vector.shape_cast %382 : vector<2x8x8xf32> to vector<16x8xf32>
    %384 = arith.truncf %383 : vector<16x8xf32> to vector<16x8xbf16>
    %c1_158 = arith.constant 1 : index
    %c3_159 = arith.constant 3 : index
    %c0_160 = arith.constant 0 : index
    %c0_161 = arith.constant 0 : index
    %385 = vector.load %arg9[%c1_158, %c3_159, %c0_160, %c0_161] : memref<2x4x8x32xbf16, #tpu.memory_space<vmem>>, vector<1x1x8x32xbf16>
    %386 = vector.shape_cast %385 : vector<1x1x8x32xbf16> to vector<8x32xbf16>
    %cst_162 = arith.constant dense<0.000000e+00> : vector<16x32xf32>
    %387 = tpu.matmul %384, %386, %cst_162 {dimension_numbers = #tpu.dot_dimension_numbers<[1], [0], [0], [1], [0, 0, 1, 1], [], []>} : vector<16x8xbf16>, vector<8x32xbf16>, vector<16x32xf32> -> vector<16x32xf32>
    %388 = arith.addf %359, %387 : vector<16x32xf32>
    %c1_163 = arith.constant 1 : index
    %c0_164 = arith.constant 0 : index
    %c0_165 = arith.constant 0 : index
    %389 = vector.load %arg10[%c1_163, %c0_164, %c0_165] : memref<2x1x32xf32, #tpu.memory_space<vmem>>, vector<1x1x32xf32>
    %390 = vector.shape_cast %389 : vector<1x1x32xf32> to vector<1x32xf32>
    %391 = vector.broadcast %390 : vector<1x32xf32> to vector<16x32xf32>
    %392 = arith.addf %388, %391 : vector<16x32xf32>
    %393 = vector.shape_cast %392 : vector<16x32xf32> to vector<2x8x32xf32>
    %394 = arith.addf %245, %393 : vector<2x8x32xf32>
    %c1_166 = arith.constant 1 : index
    %c0_167 = arith.constant 0 : index
    %c0_168 = arith.constant 0 : index
    %395 = vector.load %arg11[%c1_166, %c0_167, %c0_168] : memref<2x1x32xf32, #tpu.memory_space<vmem>>, vector<1x1x32xf32>
    %396 = vector.shape_cast %395 : vector<1x1x32xf32> to vector<1x32xf32>
    %c1_169 = arith.constant 1 : index
    %c0_170 = arith.constant 0 : index
    %c0_171 = arith.constant 0 : index
    %397 = vector.load %arg12[%c1_169, %c0_170, %c0_171] : memref<2x1x32xf32, #tpu.memory_space<vmem>>, vector<1x1x32xf32>
    %398 = vector.shape_cast %397 : vector<1x1x32xf32> to vector<1x32xf32>
    %cst_172 = arith.constant dense<0.000000e+00> : vector<2x8xf32>
    %399 = vector.multi_reduction <add>, %394, %cst_172 [2] : vector<2x8x32xf32> to vector<2x8xf32>
    %400 = vector.shape_cast %399 : vector<2x8xf32> to vector<2x8x1xf32>
    %cst_173 = arith.constant 3.200000e+01 : f32
    %401 = vector.broadcast %cst_173 : f32 to vector<2x8x1xf32>
    %402 = arith.divf %400, %401 : vector<2x8x1xf32>
    %403 = vector.broadcast %402 : vector<2x8x1xf32> to vector<2x8x32xf32>
    %404 = arith.subf %394, %403 : vector<2x8x32xf32>
    %405 = arith.mulf %404, %404 : vector<2x8x32xf32>
    %cst_174 = arith.constant dense<0.000000e+00> : vector<2x8xf32>
    %406 = vector.multi_reduction <add>, %405, %cst_174 [2] : vector<2x8x32xf32> to vector<2x8xf32>
    %407 = vector.shape_cast %406 : vector<2x8xf32> to vector<2x8x1xf32>
    %cst_175 = arith.constant 3.200000e+01 : f32
    %408 = vector.broadcast %cst_175 : f32 to vector<2x8x1xf32>
    %409 = arith.divf %407, %408 : vector<2x8x1xf32>
    %410 = vector.broadcast %402 : vector<2x8x1xf32> to vector<2x8x32xf32>
    %411 = arith.subf %394, %410 : vector<2x8x32xf32>
    %cst_176 = arith.constant 9.99999974E-6 : f32
    %412 = vector.broadcast %cst_176 : f32 to vector<2x8x1xf32>
    %413 = arith.addf %409, %412 : vector<2x8x1xf32>
    %414 = math.rsqrt %413 : vector<2x8x1xf32>
    %415 = vector.broadcast %414 : vector<2x8x1xf32> to vector<2x8x32xf32>
    %416 = arith.mulf %411, %415 : vector<2x8x32xf32>
    %417 = vector.shape_cast %396 : vector<1x32xf32> to vector<1x1x32xf32>
    %418 = vector.broadcast %417 : vector<1x1x32xf32> to vector<2x8x32xf32>
    %419 = arith.mulf %416, %418 : vector<2x8x32xf32>
    %420 = vector.shape_cast %398 : vector<1x32xf32> to vector<1x1x32xf32>
    %421 = vector.broadcast %420 : vector<1x1x32xf32> to vector<2x8x32xf32>
    %422 = arith.addf %419, %421 : vector<2x8x32xf32>
    %423 = vector.shape_cast %422 : vector<2x8x32xf32> to vector<16x32xf32>
    %424 = arith.truncf %423 : vector<16x32xf32> to vector<16x32xbf16>
    %c1_177 = arith.constant 1 : index
    %c0_178 = arith.constant 0 : index
    %c0_179 = arith.constant 0 : index
    %425 = vector.load %arg13[%c1_177, %c0_178, %c0_179] : memref<2x32x64xbf16, #tpu.memory_space<vmem>>, vector<1x32x64xbf16>
    %426 = vector.shape_cast %425 : vector<1x32x64xbf16> to vector<32x64xbf16>
    %cst_180 = arith.constant dense<0.000000e+00> : vector<16x64xf32>
    %427 = tpu.matmul %424, %426, %cst_180 {dimension_numbers = #tpu.dot_dimension_numbers<[1], [0], [0], [1], [0, 0, 1, 1], [], []>} : vector<16x32xbf16>, vector<32x64xbf16>, vector<16x64xf32> -> vector<16x64xf32>
    %c1_181 = arith.constant 1 : index
    %c0_182 = arith.constant 0 : index
    %c0_183 = arith.constant 0 : index
    %428 = vector.load %arg14[%c1_181, %c0_182, %c0_183] : memref<2x1x64xf32, #tpu.memory_space<vmem>>, vector<1x1x64xf32>
    %429 = vector.shape_cast %428 : vector<1x1x64xf32> to vector<1x64xf32>
    %430 = vector.broadcast %429 : vector<1x64xf32> to vector<16x64xf32>
    %431 = arith.addf %427, %430 : vector<16x64xf32>
    %432 = arith.mulf %431, %431 : vector<16x64xf32>
    %433 = arith.mulf %431, %432 : vector<16x64xf32>
    %cst_184 = arith.constant 4.471500e-02 : f32
    %434 = vector.broadcast %cst_184 : f32 to vector<16x64xf32>
    %435 = arith.mulf %434, %433 : vector<16x64xf32>
    %436 = arith.addf %431, %435 : vector<16x64xf32>
    %cst_185 = arith.constant 0.797884583 : f32
    %437 = vector.broadcast %cst_185 : f32 to vector<16x64xf32>
    %438 = arith.mulf %437, %436 : vector<16x64xf32>
    %439 = math.tanh %438 : vector<16x64xf32>
    %cst_186 = arith.constant 1.000000e+00 : f32
    %440 = vector.broadcast %cst_186 : f32 to vector<16x64xf32>
    %441 = arith.addf %440, %439 : vector<16x64xf32>
    %cst_187 = arith.constant 5.000000e-01 : f32
    %442 = vector.broadcast %cst_187 : f32 to vector<16x64xf32>
    %443 = arith.mulf %442, %441 : vector<16x64xf32>
    %444 = arith.mulf %431, %443 : vector<16x64xf32>
    %445 = arith.truncf %444 : vector<16x64xf32> to vector<16x64xbf16>
    %c1_188 = arith.constant 1 : index
    %c0_189 = arith.constant 0 : index
    %c0_190 = arith.constant 0 : index
    %446 = vector.load %arg15[%c1_188, %c0_189, %c0_190] : memref<2x64x32xbf16, #tpu.memory_space<vmem>>, vector<1x64x32xbf16>
    %447 = vector.shape_cast %446 : vector<1x64x32xbf16> to vector<64x32xbf16>
    %cst_191 = arith.constant dense<0.000000e+00> : vector<16x32xf32>
    %448 = tpu.matmul %445, %447, %cst_191 {dimension_numbers = #tpu.dot_dimension_numbers<[1], [0], [0], [1], [0, 0, 1, 1], [], []>} : vector<16x64xbf16>, vector<64x32xbf16>, vector<16x32xf32> -> vector<16x32xf32>
    %c1_192 = arith.constant 1 : index
    %c0_193 = arith.constant 0 : index
    %c0_194 = arith.constant 0 : index
    %449 = vector.load %arg16[%c1_192, %c0_193, %c0_194] : memref<2x1x32xf32, #tpu.memory_space<vmem>>, vector<1x1x32xf32>
    %450 = vector.shape_cast %449 : vector<1x1x32xf32> to vector<1x32xf32>
    %451 = vector.broadcast %450 : vector<1x32xf32> to vector<16x32xf32>
    %452 = arith.addf %448, %451 : vector<16x32xf32>
    %453 = vector.shape_cast %452 : vector<16x32xf32> to vector<2x8x32xf32>
    %454 = arith.addf %422, %453 : vector<2x8x32xf32>
    %c1_195 = arith.constant 1 : index
    %c0_196 = arith.constant 0 : index
    %c0_197 = arith.constant 0 : index
    %455 = vector.load %arg17[%c1_195, %c0_196, %c0_197] : memref<2x1x32xf32, #tpu.memory_space<vmem>>, vector<1x1x32xf32>
    %456 = vector.shape_cast %455 : vector<1x1x32xf32> to vector<1x32xf32>
    %c1_198 = arith.constant 1 : index
    %c0_199 = arith.constant 0 : index
    %c0_200 = arith.constant 0 : index
    %457 = vector.load %arg18[%c1_198, %c0_199, %c0_200] : memref<2x1x32xf32, #tpu.memory_space<vmem>>, vector<1x1x32xf32>
    %458 = vector.shape_cast %457 : vector<1x1x32xf32> to vector<1x32xf32>
    %cst_201 = arith.constant dense<0.000000e+00> : vector<2x8xf32>
    %459 = vector.multi_reduction <add>, %454, %cst_201 [2] : vector<2x8x32xf32> to vector<2x8xf32>
    %460 = vector.shape_cast %459 : vector<2x8xf32> to vector<2x8x1xf32>
    %cst_202 = arith.constant 3.200000e+01 : f32
    %461 = vector.broadcast %cst_202 : f32 to vector<2x8x1xf32>
    %462 = arith.divf %460, %461 : vector<2x8x1xf32>
    %463 = vector.broadcast %462 : vector<2x8x1xf32> to vector<2x8x32xf32>
    %464 = arith.subf %454, %463 : vector<2x8x32xf32>
    %465 = arith.mulf %464, %464 : vector<2x8x32xf32>
    %cst_203 = arith.constant dense<0.000000e+00> : vector<2x8xf32>
    %466 = vector.multi_reduction <add>, %465, %cst_203 [2] : vector<2x8x32xf32> to vector<2x8xf32>
    %467 = vector.shape_cast %466 : vector<2x8xf32> to vector<2x8x1xf32>
    %cst_204 = arith.constant 3.200000e+01 : f32
    %468 = vector.broadcast %cst_204 : f32 to vector<2x8x1xf32>
    %469 = arith.divf %467, %468 : vector<2x8x1xf32>
    %470 = vector.broadcast %462 : vector<2x8x1xf32> to vector<2x8x32xf32>
    %471 = arith.subf %454, %470 : vector<2x8x32xf32>
    %cst_205 = arith.constant 9.99999974E-6 : f32
    %472 = vector.broadcast %cst_205 : f32 to vector<2x8x1xf32>
    %473 = arith.addf %469, %472 : vector<2x8x1xf32>
    %474 = math.rsqrt %473 : vector<2x8x1xf32>
    %475 = vector.broadcast %474 : vector<2x8x1xf32> to vector<2x8x32xf32>
    %476 = arith.mulf %471, %475 : vector<2x8x32xf32>
    %477 = vector.shape_cast %456 : vector<1x32xf32> to vector<1x1x32xf32>
    %478 = vector.broadcast %477 : vector<1x1x32xf32> to vector<2x8x32xf32>
    %479 = arith.mulf %476, %478 : vector<2x8x32xf32>
    %480 = vector.shape_cast %458 : vector<1x32xf32> to vector<1x1x32xf32>
    %481 = vector.broadcast %480 : vector<1x1x32xf32> to vector<2x8x32xf32>
    %482 = arith.addf %479, %481 : vector<2x8x32xf32>
    %483 = vector.shape_cast %1 : vector<2x8xf32> to vector<2x8x1xf32>
    %484 = vector.broadcast %483 : vector<2x8x1xf32> to vector<2x8x32xf32>
    %485 = arith.mulf %482, %484 : vector<2x8x32xf32>
    %cst_206 = arith.constant dense<0.000000e+00> : vector<2x32xf32>
    %486 = vector.multi_reduction <add>, %485, %cst_206 [1] : vector<2x8x32xf32> to vector<2x32xf32>
    %cst_207 = arith.constant dense<0.000000e+00> : vector<2xf32>
    %487 = vector.multi_reduction <add>, %1, %cst_207 [1] : vector<2x8xf32> to vector<2xf32>
    %488 = vector.shape_cast %487 : vector<2xf32> to vector<2x1xf32>
    %489 = vector.broadcast %488 : vector<2x1xf32> to vector<2x32xf32>
    %490 = arith.divf %486, %489 : vector<2x32xf32>
    %491 = arith.truncf %490 : vector<2x32xf32> to vector<2x32xbf16>
    %c0_208 = arith.constant 0 : index
    %c0_209 = arith.constant 0 : index
    %492 = vector.load %arg19[%c0_208, %c0_209] : memref<32x32xbf16, #tpu.memory_space<vmem>>, vector<32x32xbf16>
    %cst_210 = arith.constant dense<0.000000e+00> : vector<2x32xf32>
    %493 = tpu.matmul %491, %492, %cst_210 {dimension_numbers = #tpu.dot_dimension_numbers<[1], [0], [0], [1], [0, 0, 1, 1], [], []>} : vector<2x32xbf16>, vector<32x32xbf16>, vector<2x32xf32> -> vector<2x32xf32>
    %c0_211 = arith.constant 0 : index
    %c0_212 = arith.constant 0 : index
    %494 = vector.load %arg20[%c0_211, %c0_212] : memref<1x32xf32, #tpu.memory_space<vmem>>, vector<1x32xf32>
    %495 = vector.broadcast %494 : vector<1x32xf32> to vector<2x32xf32>
    %496 = arith.addf %493, %495 : vector<2x32xf32>
    %cst_213 = arith.constant 0.000000e+00 : f32
    %497 = vector.broadcast %cst_213 : f32 to vector<2x32xf32>
    %498 = arith.maximumf %496, %497 : vector<2x32xf32>
    %499 = arith.truncf %498 : vector<2x32xf32> to vector<2x32xbf16>
    %c0_214 = arith.constant 0 : index
    %c0_215 = arith.constant 0 : index
    %500 = vector.load %arg21[%c0_214, %c0_215] : memref<32x32xbf16, #tpu.memory_space<vmem>>, vector<32x32xbf16>
    %cst_216 = arith.constant dense<0.000000e+00> : vector<2x32xf32>
    %501 = tpu.matmul %499, %500, %cst_216 {dimension_numbers = #tpu.dot_dimension_numbers<[1], [0], [0], [1], [0, 0, 1, 1], [], []>} : vector<2x32xbf16>, vector<32x32xbf16>, vector<2x32xf32> -> vector<2x32xf32>
    %c0_217 = arith.constant 0 : index
    %c0_218 = arith.constant 0 : index
    %502 = vector.load %arg22[%c0_217, %c0_218] : memref<1x32xf32, #tpu.memory_space<vmem>>, vector<1x32xf32>
    %503 = vector.broadcast %502 : vector<1x32xf32> to vector<2x32xf32>
    %504 = arith.addf %501, %503 : vector<2x32xf32>
    %cst_219 = arith.constant 0.000000e+00 : f32
    %505 = vector.broadcast %cst_219 : f32 to vector<2x32xf32>
    %506 = arith.maximumf %504, %505 : vector<2x32xf32>
    %507 = arith.truncf %506 : vector<2x32xf32> to vector<2x32xbf16>
    %c0_220 = arith.constant 0 : index
    %c0_221 = arith.constant 0 : index
    %508 = vector.load %arg23[%c0_220, %c0_221] : memref<32x128xbf16, #tpu.memory_space<vmem>>, vector<32x128xbf16>
    %cst_222 = arith.constant dense<0.000000e+00> : vector<2x128xf32>
    %509 = tpu.matmul %507, %508, %cst_222 {dimension_numbers = #tpu.dot_dimension_numbers<[1], [0], [0], [1], [0, 0, 1, 1], [], []>} : vector<2x32xbf16>, vector<32x128xbf16>, vector<2x128xf32> -> vector<2x128xf32>
    %c0_223 = arith.constant 0 : index
    %c0_224 = arith.constant 0 : index
    %510 = vector.load %arg24[%c0_223, %c0_224] : memref<1x128xf32, #tpu.memory_space<vmem>>, vector<1x128xf32>
    %511 = vector.broadcast %510 : vector<1x128xf32> to vector<2x128xf32>
    %512 = arith.addf %509, %511 : vector<2x128xf32>
    %c0_225 = arith.constant 0 : index
    %c0_226 = arith.constant 0 : index
    %513 = vector.load %arg25[%c0_225, %c0_226] : memref<2x128xf32, #tpu.memory_space<vmem>>, vector<2x128xf32>
    tpu.vector_store %arg25[%c0_225, %c0_226], %512 {strides = array<i32>} : memref<2x128xf32, #tpu.memory_space<vmem>>, vector<2x128xf32>,
    return
  }
  func.func @transform_0(%arg0: i32) -> (i32, i32, i32) {
    %c0_i32 = arith.constant 0 : i32
    %c0_i32_0 = arith.constant 0 : i32
    %c0_i32_1 = arith.constant 0 : i32
    %c0_i32_2 = arith.constant 0 : i32
    return %c0_i32, %c0_i32_0, %c0_i32_1 : i32, i32, i32
  }
  func.func @transform_1(%arg0: i32) -> (i32, i32) {
    %c0_i32 = arith.constant 0 : i32
    %c0_i32_0 = arith.constant 0 : i32
    %c0_i32_1 = arith.constant 0 : i32
    return %c0_i32, %c0_i32_0 : i32, i32
  }
  func.func @transform_2(%arg0: i32) -> (i32, i32, i32) {
    %c0_i32 = arith.constant 0 : i32
    %c0_i32_0 = arith.constant 0 : i32
    %c0_i32_1 = arith.constant 0 : i32
    %c0_i32_2 = arith.constant 0 : i32
    return %c0_i32, %c0_i32_0, %c0_i32_1 : i32, i32, i32
  }
  func.func @transform_3(%arg0: i32) -> (i32, i32, i32) {
    %c0_i32 = arith.constant 0 : i32
    %c0_i32_0 = arith.constant 0 : i32
    %c0_i32_1 = arith.constant 0 : i32
    %c0_i32_2 = arith.constant 0 : i32
    return %c0_i32, %c0_i32_0, %c0_i32_1 : i32, i32, i32
  }
  func.func @transform_4(%arg0: i32) -> (i32, i32, i32) {
    %c0_i32 = arith.constant 0 : i32
    %c0_i32_0 = arith.constant 0 : i32
    %c0_i32_1 = arith.constant 0 : i32
    %c0_i32_2 = arith.constant 0 : i32
    return %c0_i32, %c0_i32_0, %c0_i32_1 : i32, i32, i32
  }
  func.func @transform_5(%arg0: i32) -> (i32, i32, i32) {
    %c0_i32 = arith.constant 0 : i32
    %c0_i32_0 = arith.constant 0 : i32
    %c0_i32_1 = arith.constant 0 : i32
    %c0_i32_2 = arith.constant 0 : i32
    return %c0_i32, %c0_i32_0, %c0_i32_1 : i32, i32, i32
  }
  func.func @transform_6(%arg0: i32) -> (i32, i32, i32) {
    %c0_i32 = arith.constant 0 : i32
    %c0_i32_0 = arith.constant 0 : i32
    %c0_i32_1 = arith.constant 0 : i32
    %c0_i32_2 = arith.constant 0 : i32
    return %c0_i32, %c0_i32_0, %c0_i32_1 : i32, i32, i32
  }
  func.func @transform_7(%arg0: i32) -> (i32, i32, i32) {
    %c0_i32 = arith.constant 0 : i32
    %c0_i32_0 = arith.constant 0 : i32
    %c0_i32_1 = arith.constant 0 : i32
    %c0_i32_2 = arith.constant 0 : i32
    return %c0_i32, %c0_i32_0, %c0_i32_1 : i32, i32, i32
  }
  func.func @transform_8(%arg0: i32) -> (i32, i32, i32, i32) {
    %c0_i32 = arith.constant 0 : i32
    %c0_i32_0 = arith.constant 0 : i32
    %c0_i32_1 = arith.constant 0 : i32
    %c0_i32_2 = arith.constant 0 : i32
    %c0_i32_3 = arith.constant 0 : i32
    return %c0_i32, %c0_i32_0, %c0_i32_1, %c0_i32_2 : i32, i32, i32, i32
  }
  func.func @transform_9(%arg0: i32) -> (i32, i32, i32) {
    %c0_i32 = arith.constant 0 : i32
    %c0_i32_0 = arith.constant 0 : i32
    %c0_i32_1 = arith.constant 0 : i32
    %c0_i32_2 = arith.constant 0 : i32
    return %c0_i32, %c0_i32_0, %c0_i32_1 : i32, i32, i32
  }
  func.func @transform_10(%arg0: i32) -> (i32, i32, i32) {
    %c0_i32 = arith.constant 0 : i32
    %c0_i32_0 = arith.constant 0 : i32
    %c0_i32_1 = arith.constant 0 : i32
    %c0_i32_2 = arith.constant 0 : i32
    return %c0_i32, %c0_i32_0, %c0_i32_1 : i32, i32, i32
  }
  func.func @transform_11(%arg0: i32) -> (i32, i32, i32) {
    %c0_i32 = arith.constant 0 : i32
    %c0_i32_0 = arith.constant 0 : i32
    %c0_i32_1 = arith.constant 0 : i32
    %c0_i32_2 = arith.constant 0 : i32
    return %c0_i32, %c0_i32_0, %c0_i32_1 : i32, i32, i32
  }
  func.func @transform_12(%arg0: i32) -> (i32, i32, i32) {
    %c0_i32 = arith.constant 0 : i32
    %c0_i32_0 = arith.constant 0 : i32
    %c0_i32_1 = arith.constant 0 : i32
    %c0_i32_2 = arith.constant 0 : i32
    return %c0_i32, %c0_i32_0, %c0_i32_1 : i32, i32, i32
  }
  func.func @transform_13(%arg0: i32) -> (i32, i32, i32) {
    %c0_i32 = arith.constant 0 : i32
    %c0_i32_0 = arith.constant 0 : i32
    %c0_i32_1 = arith.constant 0 : i32
    %c0_i32_2 = arith.constant 0 : i32
    return %c0_i32, %c0_i32_0, %c0_i32_1 : i32, i32, i32
  }
  func.func @transform_14(%arg0: i32) -> (i32, i32, i32) {
    %c0_i32 = arith.constant 0 : i32
    %c0_i32_0 = arith.constant 0 : i32
    %c0_i32_1 = arith.constant 0 : i32
    %c0_i32_2 = arith.constant 0 : i32
    return %c0_i32, %c0_i32_0, %c0_i32_1 : i32, i32, i32
  }
  func.func @transform_15(%arg0: i32) -> (i32, i32, i32) {
    %c0_i32 = arith.constant 0 : i32
    %c0_i32_0 = arith.constant 0 : i32
    %c0_i32_1 = arith.constant 0 : i32
    %c0_i32_2 = arith.constant 0 : i32
    return %c0_i32, %c0_i32_0, %c0_i32_1 : i32, i32, i32
  }
  func.func @transform_16(%arg0: i32) -> (i32, i32, i32) {
    %c0_i32 = arith.constant 0 : i32
    %c0_i32_0 = arith.constant 0 : i32
    %c0_i32_1 = arith.constant 0 : i32
    %c0_i32_2 = arith.constant 0 : i32
    return %c0_i32, %c0_i32_0, %c0_i32_1 : i32, i32, i32
  }
  func.func @transform_17(%arg0: i32) -> (i32, i32, i32) {
    %c0_i32 = arith.constant 0 : i32
    %c0_i32_0 = arith.constant 0 : i32
    %c0_i32_1 = arith.constant 0 : i32
    %c0_i32_2 = arith.constant 0 : i32
    return %c0_i32, %c0_i32_0, %c0_i32_1 : i32, i32, i32
  }
  func.func @transform_18(%arg0: i32) -> (i32, i32) {
    %c0_i32 = arith.constant 0 : i32
    %c0_i32_0 = arith.constant 0 : i32
    %c0_i32_1 = arith.constant 0 : i32
    return %c0_i32, %c0_i32_0 : i32, i32
  }
  func.func @transform_19(%arg0: i32) -> (i32, i32) {
    %c0_i32 = arith.constant 0 : i32
    %c0_i32_0 = arith.constant 0 : i32
    %c0_i32_1 = arith.constant 0 : i32
    return %c0_i32, %c0_i32_0 : i32, i32
  }
  func.func @transform_20(%arg0: i32) -> (i32, i32) {
    %c0_i32 = arith.constant 0 : i32
    %c0_i32_0 = arith.constant 0 : i32
    %c0_i32_1 = arith.constant 0 : i32
    return %c0_i32, %c0_i32_0 : i32, i32
  }
  func.func @transform_21(%arg0: i32) -> (i32, i32) {
    %c0_i32 = arith.constant 0 : i32
    %c0_i32_0 = arith.constant 0 : i32
    %c0_i32_1 = arith.constant 0 : i32
    return %c0_i32, %c0_i32_0 : i32, i32
  }
  func.func @transform_22(%arg0: i32) -> (i32, i32) {
    %c0_i32 = arith.constant 0 : i32
    %c0_i32_0 = arith.constant 0 : i32
    %c0_i32_1 = arith.constant 0 : i32
    return %c0_i32, %c0_i32_0 : i32, i32
  }
  func.func @transform_23(%arg0: i32) -> (i32, i32) {
    %c0_i32 = arith.constant 0 : i32
    %c0_i32_0 = arith.constant 0 : i32
    %c0_i32_1 = arith.constant 0 : i32
    return %c0_i32, %c0_i32_0 : i32, i32
  }
  func.func @transform_24(%arg0: i32) -> (i32, i32) {
    %c0_i32 = arith.constant 0 : i32
    %c0_i32_0 = arith.constant 0 : i32
    %c0_i32_1 = arith.constant 0 : i32
    return %c0_i32, %c0_i32_0 : i32, i32
  }
}

</mosaic_0001>

<llo_original>
// kernel: tpu_custom_call.1
$region0: #{tpu_custom_call.1}
  #allocation0 [shape = 'u32[]', space=smem, size = 0x4, offset = 0x4, fixed_abs, tag = 'smem constant byte address 0x4 - core index']
  #allocation1 [shape = 'u32[144,128]{1,0:T(1,128)}', space=vmem, size = 0x12000, scoped, tag = 'internal scratch']
  %s0 = inlined_call_operand.hbm [shape: f32[2,8,32], index: 0, kind: input, shape index: {}]
  %s1 = inlined_call_operand.hbm [shape: f32[2,8], index: 1, kind: input, shape index: {}]
  %s2 = inlined_call_operand.vmem [shape: bf16[2,32,32], index: 2, kind: input, shape index: {}]
  %s3 = inlined_call_operand.hbm [shape: f32[2,1,32], index: 3, kind: input, shape index: {}]
  %s4 = inlined_call_operand.vmem [shape: bf16[2,32,32], index: 4, kind: input, shape index: {}]
  %s5 = inlined_call_operand.hbm [shape: f32[2,1,32], index: 5, kind: input, shape index: {}]
  %s6 = inlined_call_operand.vmem [shape: bf16[2,32,32], index: 6, kind: input, shape index: {}]
  %s7 = inlined_call_operand.hbm [shape: f32[2,1,32], index: 7, kind: input, shape index: {}]
  %s8 = inlined_call_operand.hbm [shape: bf16[2,4,8,32], index: 8, kind: input, shape index: {}]
  %s9 = inlined_call_operand.hbm [shape: f32[2,1,32], index: 9, kind: input, shape index: {}]
  %s10 = inlined_call_operand.hbm [shape: f32[2,1,32], index: 10, kind: input, shape index: {}]
  %s11 = inlined_call_operand.hbm [shape: f32[2,1,32], index: 11, kind: input, shape index: {}]
  %s12 = inlined_call_operand.hbm [shape: bf16[2,32,64], index: 12, kind: input, shape index: {}]
  %s13 = inlined_call_operand.hbm [shape: f32[2,1,64], index: 13, kind: input, shape index: {}]
  %s14 = inlined_call_operand.vmem [shape: bf16[2,64,32], index: 14, kind: input, shape index: {}]
  %s15 = inlined_call_operand.hbm [shape: f32[2,1,32], index: 15, kind: input, shape index: {}]
  %s16 = inlined_call_operand.hbm [shape: f32[2,1,32], index: 16, kind: input, shape index: {}]
  %s17 = inlined_call_operand.hbm [shape: f32[2,1,32], index: 17, kind: input, shape index: {}]
  %s18 = inlined_call_operand.vmem [shape: bf16[32,32], index: 18, kind: input, shape index: {}]
  %s19 = inlined_call_operand.vmem [shape: f32[1,32], index: 19, kind: input, shape index: {}]
  %s20 = inlined_call_operand.vmem [shape: bf16[32,32], index: 20, kind: input, shape index: {}]
  %s21 = inlined_call_operand.vmem [shape: f32[1,32], index: 21, kind: input, shape index: {}]
  %s22 = inlined_call_operand.vmem [shape: bf16[32,128], index: 22, kind: input, shape index: {}]
  %s23 = inlined_call_operand.vmem [shape: f32[1,128], index: 23, kind: input, shape index: {}]
  %s24 = inlined_call_operand.hbm [shape: f32[2,128], index: 24, kind: output, shape index: {}]
  %s25 = sld [smem:[#allocation0]]
  $region162: #{tpu_custom_call.1} parent=0
    _
  %s27 = ssub.s32 1, %s25
  %s28 = scalar_select 0, %s27, %s25
  $region1: #{tpu_custom_call.1} parent=0
    #allocation2 [shape = 'u8[8192]{0}', space=vmem, size = 0x2000, scoped, tag = 'input window, operand 0, single buffered']
    #allocation3 [shape = 's32[1]{0}', space=sflag, size = 0x4, scoped, tag = 'scoped memory for tpu_custom_call.1']
    #allocation4 [shape = 's32[1]{0}', space=sflag, size = 0x4, scoped, tag = 'scoped memory for tpu_custom_call.1']
    #allocation5 [shape = 'u8[1024]{0}', space=vmem, size = 0x400, scoped, tag = 'input window, operand 1, single buffered']
    #allocation6 [shape = 's32[1]{0}', space=sflag, size = 0x4, scoped, tag = 'scoped memory for tpu_custom_call.1']
    #allocation7 [shape = 'u8[1024]{0}', space=vmem, size = 0x400, scoped, tag = 'input window, operand 3, single buffered']
    #allocation8 [shape = 'u8[1024]{0}', space=vmem, size = 0x400, scoped, tag = 'input window, operand 5, single buffered']
    #allocation9 [shape = 's32[1]{0}', space=sflag, size = 0x4, scoped, tag = 'scoped memory for tpu_custom_call.1']
    #allocation10 [shape = 'u8[1024]{0}', space=vmem, size = 0x400, scoped, tag = 'input window, operand 7, single buffered']
    #allocation11 [shape = 'u8[16384]{0}', space=vmem, size = 0x4000, scoped, tag = 'input window, operand 8, single buffered']
    #allocation12 [shape = 's32[1]{0}', space=sflag, size = 0x4, scoped, tag = 'scoped memory for tpu_custom_call.1']
    #allocation13 [shape = 'u8[1024]{0}', space=vmem, size = 0x400, scoped, tag = 'input window, operand 9, single buffered']
    #allocation14 [shape = 'u8[1024]{0}', space=vmem, size = 0x400, scoped, tag = 'input window, operand 10, single buffered']
    #allocation15 [shape = 's32[1]{0}', space=sflag, size = 0x4, scoped, tag = 'scoped memory for tpu_custom_call.1']
    #allocation16 [shape = 'u8[1024]{0}', space=vmem, size = 0x400, scoped, tag = 'input window, operand 11, single buffered']
    #allocation17 [shape = 'u8[16384]{0}', space=vmem, size = 0x4000, scoped, tag = 'input window, operand 12, single buffered']
    #allocation18 [shape = 's32[1]{0}', space=sflag, size = 0x4, scoped, tag = 'scoped memory for tpu_custom_call.1']
    #allocation19 [shape = 'u8[1024]{0}', space=vmem, size = 0x400, scoped, tag = 'input window, operand 13, single buffered']
    #allocation20 [shape = 'u8[1024]{0}', space=vmem, size = 0x400, scoped, tag = 'input window, operand 15, single buffered']
    #allocation21 [shape = 's32[1]{0}', space=sflag, size = 0x4, scoped, tag = 'scoped memory for tpu_custom_call.1']
    #allocation22 [shape = 'u8[1024]{0}', space=vmem, size = 0x400, scoped, tag = 'input window, operand 16, single buffered']
    #allocation23 [shape = 'u8[1024]{0}', space=vmem, size = 0x400, scoped, tag = 'input window, operand 17, single buffered']
    #allocation24 [shape = 's32[1]{0}', space=sflag, size = 0x4, scoped, tag = 'scoped memory for tpu_custom_call.1']
    #allocation25 [shape = 'u8[1024]{0}', space=vmem, size = 0x400, scoped, tag = 'output window, operand 0, single buffered']
    %29 = vsyncpa [#allocation3], 0
    %30 = vsyncpa [#allocation6], 0
    %31 = vsyncpa [#allocation9], 0
    %32 = vsyncpa [#allocation12], 0
    %33 = vsyncpa [#allocation15], 0
    %34 = vsyncpa [#allocation18], 0
    %35 = vsyncpa [#allocation21], 0
    %36 = vsyncpa [#allocation24], 0
    %37 = vsyncpa [#allocation4], 0
    // Predicated region
    $region2: #{tpu_custom_call.1} parent=1 // pred_check
      _
    $region3: #{tpu_custom_call.1} parent=1 // pred_check_branch
      %39 = sbr.rel (0) target = $region5
    $region4: #{tpu_custom_call.1} parent=1 // pred_region
      %s41 = ssub.s32 256, 256
      %42 = vsyncadd [#allocation3], %s41
      %s43 = sshll.u32 [#allocation2], 4
      %s44 = int_to_ptr.vmem [resolvable:$true] %s43
      %49 = dma.hbm_to_vmem [thread:$0]  %s0, 256, %s44, [#allocation3], 128, 128, 8
    $region5: #{tpu_custom_call.1} parent=1 // pred_fallthru
      _
    // Predicated region
    $region6: #{tpu_custom_call.1} parent=1 // pred_check
      _
    $region7: #{tpu_custom_call.1} parent=1 // pred_check_branch
      %51 = sbr.rel (0) target = $region9
    $region8: #{tpu_custom_call.1} parent=1 // pred_region
      %s53 = ssub.s32 32, 32
      %54 = vsyncadd [#allocation6], %s53
      %s56 = sshll.u32 [#allocation5], 4
      %s57 = int_to_ptr.vmem [resolvable:$true] %s56
      %59 = dma.hbm_to_vmem [thread:$0]  %s1, 32, %s57, [#allocation6]
    $region9: #{tpu_custom_call.1} parent=1 // pred_fallthru
      _
    // Predicated region
    $region10: #{tpu_custom_call.1} parent=1 // pred_check
      _
    $region11: #{tpu_custom_call.1} parent=1 // pred_check_branch
      %61 = sbr.rel (0) target = $region13
    $region12: #{tpu_custom_call.1} parent=1 // pred_region
      _
    $region13: #{tpu_custom_call.1} parent=1 // pred_fallthru
      _
    // Predicated region
    $region14: #{tpu_custom_call.1} parent=1 // pred_check
      _
    $region15: #{tpu_custom_call.1} parent=1 // pred_check_branch
      %63 = sbr.rel (0) target = $region17
    $region16: #{tpu_custom_call.1} parent=1 // pred_region
      %s65 = ssub.s32 32, 32
      %66 = vsyncadd [#allocation6], %s65
      %s67 = sshll.u32 [#allocation7], 4
      %s68 = int_to_ptr.vmem [resolvable:$true] %s67
      %73 = dma.hbm_to_vmem [thread:$0]  %s3, 32, %s68, [#allocation6], 16, 16, 1
    $region17: #{tpu_custom_call.1} parent=1 // pred_fallthru
      _
    // Predicated region
    $region18: #{tpu_custom_call.1} parent=1 // pred_check
      _
    $region19: #{tpu_custom_call.1} parent=1 // pred_check_branch
      %75 = sbr.rel (0) target = $region21
    $region20: #{tpu_custom_call.1} parent=1 // pred_region
      _
    $region21: #{tpu_custom_call.1} parent=1 // pred_fallthru
      _
    // Predicated region
    $region22: #{tpu_custom_call.1} parent=1 // pred_check
      _
    $region23: #{tpu_custom_call.1} parent=1 // pred_check_branch
      %77 = sbr.rel (0) target = $region25
    $region24: #{tpu_custom_call.1} parent=1 // pred_region
      %s79 = ssub.s32 32, 32
      %80 = vsyncadd [#allocation9], %s79
      %s81 = sshll.u32 [#allocation8], 4
      %s82 = int_to_ptr.vmem [resolvable:$true] %s81
      %87 = dma.hbm_to_vmem [thread:$0]  %s5, 32, %s82, [#allocation9], 16, 16, 1
    $region25: #{tpu_custom_call.1} parent=1 // pred_fallthru
      _
    // Predicated region
    $region26: #{tpu_custom_call.1} parent=1 // pred_check
      _
    $region27: #{tpu_custom_call.1} parent=1 // pred_check_branch
      %89 = sbr.rel (0) target = $region29
    $region28: #{tpu_custom_call.1} parent=1 // pred_region
      _
    $region29: #{tpu_custom_call.1} parent=1 // pred_fallthru
      _
    // Predicated region
    $region30: #{tpu_custom_call.1} parent=1 // pred_check
      _
    $region31: #{tpu_custom_call.1} parent=1 // pred_check_branch
      %91 = sbr.rel (0) target = $region33
    $region32: #{tpu_custom_call.1} parent=1 // pred_region
      %s93 = ssub.s32 32, 32
      %94 = vsyncadd [#allocation9], %s93
      %s95 = sshll.u32 [#allocation10], 4
      %s96 = int_to_ptr.vmem [resolvable:$true] %s95
      %101 = dma.hbm_to_vmem [thread:$0]  %s7, 32, %s96, [#allocation9], 16, 16, 1
    $region33: #{tpu_custom_call.1} parent=1 // pred_fallthru
      _
    // Predicated region
    $region34: #{tpu_custom_call.1} parent=1 // pred_check
      _
    $region35: #{tpu_custom_call.1} parent=1 // pred_check_branch
      %103 = sbr.rel (0) target = $region37
    $region36: #{tpu_custom_call.1} parent=1 // pred_region
      %s105 = ssub.s32 512, 512
      %106 = vsyncadd [#allocation12], %s105
      %s107 = sshll.u32 [#allocation11], 4
      %s108 = int_to_ptr.vmem [resolvable:$true] %s107
      %113 = dma.hbm_to_vmem [thread:$0]  %s8, 512, %s108, [#allocation12], 64, 64, 4
    $region37: #{tpu_custom_call.1} parent=1 // pred_fallthru
      _
    // Predicated region
    $region38: #{tpu_custom_call.1} parent=1 // pred_check
      _
    $region39: #{tpu_custom_call.1} parent=1 // pred_check_branch
      %115 = sbr.rel (0) target = $region41
    $region40: #{tpu_custom_call.1} parent=1 // pred_region
      %s117 = ssub.s32 32, 32
      %118 = vsyncadd [#allocation12], %s117
      %s119 = sshll.u32 [#allocation13], 4
      %s120 = int_to_ptr.vmem [resolvable:$true] %s119
      %125 = dma.hbm_to_vmem [thread:$0]  %s9, 32, %s120, [#allocation12], 16, 16, 1
    $region41: #{tpu_custom_call.1} parent=1 // pred_fallthru
      _
    // Predicated region
    $region42: #{tpu_custom_call.1} parent=1 // pred_check
      _
    $region43: #{tpu_custom_call.1} parent=1 // pred_check_branch
      %127 = sbr.rel (0) target = $region45
    $region44: #{tpu_custom_call.1} parent=1 // pred_region
      %s129 = ssub.s32 32, 32
      %130 = vsyncadd [#allocation15], %s129
      %s131 = sshll.u32 [#allocation14], 4
      %s132 = int_to_ptr.vmem [resolvable:$true] %s131
      %137 = dma.hbm_to_vmem [thread:$0]  %s10, 32, %s132, [#allocation15], 16, 16, 1
    $region45: #{tpu_custom_call.1} parent=1 // pred_fallthru
      _
    // Predicated region
    $region46: #{tpu_custom_call.1} parent=1 // pred_check
      _
    $region47: #{tpu_custom_call.1} parent=1 // pred_check_branch
      %139 = sbr.rel (0) target = $region49
    $region48: #{tpu_custom_call.1} parent=1 // pred_region
      %s141 = ssub.s32 32, 32
      %142 = vsyncadd [#allocation15], %s141
      %s143 = sshll.u32 [#allocation16], 4
      %s144 = int_to_ptr.vmem [resolvable:$true] %s143
      %149 = dma.hbm_to_vmem [thread:$0]  %s11, 32, %s144, [#allocation15], 16, 16, 1
    $region49: #{tpu_custom_call.1} parent=1 // pred_fallthru
      _
    // Predicated region
    $region50: #{tpu_custom_call.1} parent=1 // pred_check
      _
    $region51: #{tpu_custom_call.1} parent=1 // pred_check_branch
      %151 = sbr.rel (0) target = $region53
    $region52: #{tpu_custom_call.1} parent=1 // pred_region
      %s153 = ssub.s32 512, 512
      %154 = vsyncadd [#allocation18], %s153
      %s155 = sshll.u32 [#allocation17], 4
      %s156 = int_to_ptr.vmem [resolvable:$true] %s155
      %161 = dma.hbm_to_vmem [thread:$0]  %s12, 512, %s156, [#allocation18], 64, 64, 4
    $region53: #{tpu_custom_call.1} parent=1 // pred_fallthru
      _
    // Predicated region
    $region54: #{tpu_custom_call.1} parent=1 // pred_check
      _
    $region55: #{tpu_custom_call.1} parent=1 // pred_check_branch
      %163 = sbr.rel (0) target = $region57
    $region56: #{tpu_custom_call.1} parent=1 // pred_region
      %s165 = ssub.s32 32, 32
      %166 = vsyncadd [#allocation18], %s165
      %s167 = sshll.u32 [#allocation19], 4
      %s168 = int_to_ptr.vmem [resolvable:$true] %s167
      %173 = dma.hbm_to_vmem [thread:$0]  %s13, 32, %s168, [#allocation18], 16, 16, 1
    $region57: #{tpu_custom_call.1} parent=1 // pred_fallthru
      _
    // Predicated region
    $region58: #{tpu_custom_call.1} parent=1 // pred_check
      _
    $region59: #{tpu_custom_call.1} parent=1 // pred_check_branch
      %175 = sbr.rel (0) target = $region61
    $region60: #{tpu_custom_call.1} parent=1 // pred_region
      _
    $region61: #{tpu_custom_call.1} parent=1 // pred_fallthru
      _
    // Predicated region
    $region62: #{tpu_custom_call.1} parent=1 // pred_check
      _
    $region63: #{tpu_custom_call.1} parent=1 // pred_check_branch
      %177 = sbr.rel (0) target = $region65
    $region64: #{tpu_custom_call.1} parent=1 // pred_region
      %s179 = ssub.s32 32, 32
      %180 = vsyncadd [#allocation21], %s179
      %s181 = sshll.u32 [#allocation20], 4
      %s182 = int_to_ptr.vmem [resolvable:$true] %s181
      %187 = dma.hbm_to_vmem [thread:$0]  %s15, 32, %s182, [#allocation21], 16, 16, 1
    $region65: #{tpu_custom_call.1} parent=1 // pred_fallthru
      _
    // Predicated region
    $region66: #{tpu_custom_call.1} parent=1 // pred_check
      _
    $region67: #{tpu_custom_call.1} parent=1 // pred_check_branch
      %189 = sbr.rel (0) target = $region69
    $region68: #{tpu_custom_call.1} parent=1 // pred_region
      %s191 = ssub.s32 32, 32
      %192 = vsyncadd [#allocation21], %s191
      %s193 = sshll.u32 [#allocation22], 4
      %s194 = int_to_ptr.vmem [resolvable:$true] %s193
      %199 = dma.hbm_to_vmem [thread:$0]  %s16, 32, %s194, [#allocation21], 16, 16, 1
    $region69: #{tpu_custom_call.1} parent=1 // pred_fallthru
      _
    // Predicated region
    $region70: #{tpu_custom_call.1} parent=1 // pred_check
      _
    $region71: #{tpu_custom_call.1} parent=1 // pred_check_branch
      %201 = sbr.rel (0) target = $region73
    $region72: #{tpu_custom_call.1} parent=1 // pred_region
      %s203 = ssub.s32 32, 32
      %204 = vsyncadd [#allocation24], %s203
      %s205 = sshll.u32 [#allocation23], 4
      %s206 = int_to_ptr.vmem [resolvable:$true] %s205
      %211 = dma.hbm_to_vmem [thread:$0]  %s17, 32, %s206, [#allocation24], 16, 16, 1
    $region73: #{tpu_custom_call.1} parent=1 // pred_fallthru
      _
    // Predicated region
    $region74: #{tpu_custom_call.1} parent=1 // pred_check
      _
    $region75: #{tpu_custom_call.1} parent=1 // pred_check_branch
      %213 = sbr.rel (0) target = $region77
    $region76: #{tpu_custom_call.1} parent=1 // pred_region
      _
    $region77: #{tpu_custom_call.1} parent=1 // pred_fallthru
      _
    // Predicated region
    $region78: #{tpu_custom_call.1} parent=1 // pred_check
      _
    $region79: #{tpu_custom_call.1} parent=1 // pred_check_branch
      %215 = sbr.rel (0) target = $region81
    $region80: #{tpu_custom_call.1} parent=1 // pred_region
      _
    $region81: #{tpu_custom_call.1} parent=1 // pred_fallthru
      _
    // Predicated region
    $region82: #{tpu_custom_call.1} parent=1 // pred_check
      _
    $region83: #{tpu_custom_call.1} parent=1 // pred_check_branch
      %217 = sbr.rel (0) target = $region85
    $region84: #{tpu_custom_call.1} parent=1 // pred_region
      _
    $region85: #{tpu_custom_call.1} parent=1 // pred_fallthru
      _
    // Predicated region
    $region86: #{tpu_custom_call.1} parent=1 // pred_check
      _
    $region87: #{tpu_custom_call.1} parent=1 // pred_check_branch
      %219 = sbr.rel (0) target = $region89
    $region88: #{tpu_custom_call.1} parent=1 // pred_region
      _
    $region89: #{tpu_custom_call.1} parent=1 // pred_fallthru
      _
    // Predicated region
    $region90: #{tpu_custom_call.1} parent=1 // pred_check
      _
    $region91: #{tpu_custom_call.1} parent=1 // pred_check_branch
      %221 = sbr.rel (0) target = $region93
    $region92: #{tpu_custom_call.1} parent=1 // pred_region
      _
    $region93: #{tpu_custom_call.1} parent=1 // pred_fallthru
      _
    // Predicated region
    $region94: #{tpu_custom_call.1} parent=1 // pred_check
      _
    $region95: #{tpu_custom_call.1} parent=1 // pred_check_branch
      %223 = sbr.rel (0) target = $region97
    $region96: #{tpu_custom_call.1} parent=1 // pred_region
      _
    $region97: #{tpu_custom_call.1} parent=1 // pred_fallthru
      _
    // Predicated region
    $region98: #{tpu_custom_call.1} parent=1 // pred_check
      _
    $region99: #{tpu_custom_call.1} parent=1 // pred_check_branch
      %225 = sbr.rel (0) target = $region101
    $region100: #{tpu_custom_call.1} parent=1 // pred_region
      %226 = dma.done [#allocation3], 256
    $region101: #{tpu_custom_call.1} parent=1 // pred_fallthru
      _
    // Predicated region
    $region102: #{tpu_custom_call.1} parent=1 // pred_check
      _
    $region103: #{tpu_custom_call.1} parent=1 // pred_check_branch
      %228 = sbr.rel (0) target = $region105
    $region104: #{tpu_custom_call.1} parent=1 // pred_region
      %229 = dma.done [#allocation6], 32
    $region105: #{tpu_custom_call.1} parent=1 // pred_fallthru
      _
    // Predicated region
    $region106: #{tpu_custom_call.1} parent=1 // pred_check
      _
    $region107: #{tpu_custom_call.1} parent=1 // pred_check_branch
      %231 = sbr.rel (0) target = $region109
    $region108: #{tpu_custom_call.1} parent=1 // pred_region
      %232 = dma.done [#allocation6], 32
    $region109: #{tpu_custom_call.1} parent=1 // pred_fallthru
      _
    // Predicated region
    $region110: #{tpu_custom_call.1} parent=1 // pred_check
      _
    $region111: #{tpu_custom_call.1} parent=1 // pred_check_branch
      %234 = sbr.rel (0) target = $region113
    $region112: #{tpu_custom_call.1} parent=1 // pred_region
      %235 = dma.done [#allocation9], 32
    $region113: #{tpu_custom_call.1} parent=1 // pred_fallthru
      _
    // Predicated region
    $region114: #{tpu_custom_call.1} parent=1 // pred_check
      _
    $region115: #{tpu_custom_call.1} parent=1 // pred_check_branch
      %237 = sbr.rel (0) target = $region117
    $region116: #{tpu_custom_call.1} parent=1 // pred_region
      %238 = dma.done [#allocation9], 32
    $region117: #{tpu_custom_call.1} parent=1 // pred_fallthru
      _
    // Predicated region
    $region118: #{tpu_custom_call.1} parent=1 // pred_check
      _
    $region119: #{tpu_custom_call.1} parent=1 // pred_check_branch
      %240 = sbr.rel (0) target = $region121
    $region120: #{tpu_custom_call.1} parent=1 // pred_region
      %241 = dma.done [#allocation12], 512
    $region121: #{tpu_custom_call.1} parent=1 // pred_fallthru
      _
    // Predicated region
    $region122: #{tpu_custom_call.1} parent=1 // pred_check
      _
    $region123: #{tpu_custom_call.1} parent=1 // pred_check_branch
      %243 = sbr.rel (0) target = $region125
    $region124: #{tpu_custom_call.1} parent=1 // pred_region
      %244 = dma.done [#allocation12], 32
    $region125: #{tpu_custom_call.1} parent=1 // pred_fallthru
      _
    // Predicated region
    $region126: #{tpu_custom_call.1} parent=1 // pred_check
      _
    $region127: #{tpu_custom_call.1} parent=1 // pred_check_branch
      %246 = sbr.rel (0) target = $region129
    $region128: #{tpu_custom_call.1} parent=1 // pred_region
      %247 = dma.done [#allocation15], 32
    $region129: #{tpu_custom_call.1} parent=1 // pred_fallthru
      _
    // Predicated region
    $region130: #{tpu_custom_call.1} parent=1 // pred_check
      _
    $region131: #{tpu_custom_call.1} parent=1 // pred_check_branch
      %249 = sbr.rel (0) target = $region133
    $region132: #{tpu_custom_call.1} parent=1 // pred_region
      %250 = dma.done [#allocation15], 32
    $region133: #{tpu_custom_call.1} parent=1 // pred_fallthru
      _
    // Predicated region
    $region134: #{tpu_custom_call.1} parent=1 // pred_check
      _
    $region135: #{tpu_custom_call.1} parent=1 // pred_check_branch
      %252 = sbr.rel (0) target = $region137
    $region136: #{tpu_custom_call.1} parent=1 // pred_region
      %253 = dma.done [#allocation18], 512
    $region137: #{tpu_custom_call.1} parent=1 // pred_fallthru
      _
    // Predicated region
    $region138: #{tpu_custom_call.1} parent=1 // pred_check
      _
    $region139: #{tpu_custom_call.1} parent=1 // pred_check_branch
      %255 = sbr.rel (0) target = $region141
    $region140: #{tpu_custom_call.1} parent=1 // pred_region
      %256 = dma.done [#allocation18], 32
    $region141: #{tpu_custom_call.1} parent=1 // pred_fallthru
      _
    // Predicated region
    $region142: #{tpu_custom_call.1} parent=1 // pred_check
      _
    $region143: #{tpu_custom_call.1} parent=1 // pred_check_branch
      %258 = sbr.rel (0) target = $region145
    $region144: #{tpu_custom_call.1} parent=1 // pred_region
      %259 = dma.done [#allocation21], 32
    $region145: #{tpu_custom_call.1} parent=1 // pred_fallthru
      _
    // Predicated region
    $region146: #{tpu_custom_call.1} parent=1 // pred_check
      _
    $region147: #{tpu_custom_call.1} parent=1 // pred_check_branch
      %261 = sbr.rel (0) target = $region149
    $region148: #{tpu_custom_call.1} parent=1 // pred_region
      %262 = dma.done [#allocation21], 32
    $region149: #{tpu_custom_call.1} parent=1 // pred_fallthru
      _
    // Predicated region
    $region150: #{tpu_custom_call.1} parent=1 // pred_check
      _
    $region151: #{tpu_custom_call.1} parent=1 // pred_check_branch
      %264 = sbr.rel (0) target = $region153
    $region152: #{tpu_custom_call.1} parent=1 // pred_region
      %265 = dma.done [#allocation24], 32
    $region153: #{tpu_custom_call.1} parent=1 // pred_fallthru
      _
    %v267 = vld [vmem:[#allocation2] sm:$0xff]
    %v268 = vld [vmem:[#allocation2 + $0x8] sm:$0xff]
    %v269 = vld [vmem:[#allocation5] sm:$0x3]
    %v270 = vsub.f32 1.0, %v269
    %v273 = vunpack.c.l.s4 1966171168
    %v274 = vunpack.c.0.s8 %v273
    %v275 = vlaneseq
    %v276 = vshrl.u32 %v275, 7
    %v277 = vsub.s32 %v274, %v276
    %v278 = vrot.slane %v270, %v277
    %v279 = vcombine.high %v278, %v278
    %v281 = vunpack.c.l.s4 1966171168
    %v282 = vunpack.c.0.s8 %v281
    %v283 = vlaneseq
    %v284 = vshrl.u32 %v283, 7
    %v285 = vsub.s32 %v282, %v284
    %v286 = vrot.slane %v278, %v285
    %v288 = vunpack.c.l.s4 1966171168
    %v289 = vunpack.c.0.s8 %v288
    %v290 = vlaneseq
    %v291 = vshrl.u32 %v290, 7
    %v292 = vsub.s32 %v289, %v291
    %v293 = vrot.slane %v279, %v292
    %v296 = vmul.f32 %v286, -1e+09
    %v297 = vmul.f32 %v293, -1e+09
    %v298 = vpack.c.bf16 %v268, %v267
    %v299 = vld [vmem:[%s2] sm:$0xf]
    %v300 = vld [vmem:[%s2 + $0x4] sm:$0xf]
    %v301 = vld [vmem:[%s2 + $0x8] sm:$0xf]
    %v302 = vld [vmem:[%s2 + $0xc] sm:$0xf]
    %v303 = vld [vmem:[#allocation7] sm:$0x1]
    %v305 = vlaneseq
    %v306 = vshrl.u32 %v305, 7
    %v307 = vsub.s32 0, %v306
    %v308 = vrot.slane %v303, %v307
    %v314 = vunpack.c.l.b16 %v299
    %v315 = vunpack.c.l.b16 %v300
    %v316 = vunpack.c.l.b16 %v301
    %v317 = vunpack.c.l.b16 %v302
    %v318 = vpack.c.b16 %v315, %v314
    %v319 = vpack.c.b16 %v317, %v316
    %vm322 = vcmask 261120
    %v324 = vsel %vm322, %v298, 0
    %326 = vmatprep.subr.bf16.mxu0 0
    %327 = vmatpush1.bf16.msra.mxu0 %v318
    %328 = vmatprep.subr.bf16.mxu0 0
    %329 = vmatpush1.bf16.msra.mxu0 %v319
    %330 = vmatprep.subr.bf16.mxu0 0
    %331 = vmatpush1.bf16.msra.mxu0 0
    %332 = vmatprep.subr.bf16.mxu0 0
    %333 = vmatpush1.bf16.msra.mxu0 0
    %334 = vmatprep.subr.bf16.mxu0 0
    %335 = vmatpush1.bf16.msra.mxu0 0
    %336 = vmatprep.subr.bf16.mxu0 0
    %337 = vmatpush1.bf16.msra.mxu0 0
    %338 = vmatprep.subr.bf16.mxu0 0
    %339 = vmatpush1.bf16.msra.mxu0 0
    %340 = vmatprep.subr.bf16.mxu0 0
    %341 = vmatpush1.bf16.msra.mxu0 0
    %342 = vmatprep.subr.bf16.mxu0 0
    %343 = vmatpush1.bf16.msra.mxu0 0
    %344 = vmatprep.subr.bf16.mxu0 0
    %345 = vmatpush1.bf16.msra.mxu0 0
    %346 = vmatprep.subr.bf16.mxu0 0
    %347 = vmatpush1.bf16.msra.mxu0 0
    %348 = vmatprep.subr.bf16.mxu0 0
    %349 = vmatpush1.bf16.msra.mxu0 0
    %350 = vmatprep.subr.bf16.mxu0 0
    %351 = vmatpush1.bf16.msra.mxu0 0
    %352 = vmatprep.subr.bf16.mxu0 0
    %353 = vmatpush1.bf16.msra.mxu0 0
    %354 = vmatprep.subr.bf16.mxu0 0
    %355 = vmatpush1.bf16.msra.mxu0 0
    %356 = vmatprep.subr.bf16.mxu0 0
    %357 = vmatpush1.bf16.msra.mxu0 0
    %358 = vmatprep.mubr.bf16.mxu0 0
    %359 = vmatmul.mubr.bf16.gmra.mrb[0].mxu0 %v324
    %v360 = vpop.f32.mrb[0].mxu0
    %v361 = vadd.f32 %v308, %v360
    %v362 = vpop.f32.mrb[0].mxu0
    %v363 = vpop.f32.mrb[0].mxu0
    %v364 = vadd.f32 %v308, %v363
    %v365 = vpop.f32.mrb[0].mxu0
    %366 = vdwg.mxu0
    %v367 = vld [vmem:[%s4] sm:$0xf]
    %v368 = vld [vmem:[%s4 + $0x4] sm:$0xf]
    %v369 = vld [vmem:[%s4 + $0x8] sm:$0xf]
    %v370 = vld [vmem:[%s4 + $0xc] sm:$0xf]
    %v371 = vld [vmem:[#allocation8] sm:$0x1]
    %v373 = vlaneseq
    %v374 = vshrl.u32 %v373, 7
    %v375 = vsub.s32 0, %v374
    %v376 = vrot.slane %v371, %v375
    %v382 = vunpack.c.l.b16 %v367
    %v383 = vunpack.c.l.b16 %v368
    %v384 = vunpack.c.l.b16 %v369
    %v385 = vunpack.c.l.b16 %v370
    %v386 = vpack.c.b16 %v383, %v382
    %v387 = vpack.c.b16 %v385, %v384
    %390 = vmatprep.subr.bf16.mxu0 0
    %391 = vmatpush1.bf16.msra.mxu0 %v386
    %392 = vmatprep.subr.bf16.mxu0 0
    %393 = vmatpush1.bf16.msra.mxu0 %v387
    %394 = vmatprep.subr.bf16.mxu0 0
    %395 = vmatpush1.bf16.msra.mxu0 0
    %396 = vmatprep.subr.bf16.mxu0 0
    %397 = vmatpush1.bf16.msra.mxu0 0
    %398 = vmatprep.subr.bf16.mxu0 0
    %399 = vmatpush1.bf16.msra.mxu0 0
    %400 = vmatprep.subr.bf16.mxu0 0
    %401 = vmatpush1.bf16.msra.mxu0 0
    %402 = vmatprep.subr.bf16.mxu0 0
    %403 = vmatpush1.bf16.msra.mxu0 0
    %404 = vmatprep.subr.bf16.mxu0 0
    %405 = vmatpush1.bf16.msra.mxu0 0
    %406 = vmatprep.subr.bf16.mxu0 0
    %407 = vmatpush1.bf16.msra.mxu0 0
    %408 = vmatprep.subr.bf16.mxu0 0
    %409 = vmatpush1.bf16.msra.mxu0 0
    %410 = vmatprep.subr.bf16.mxu0 0
    %411 = vmatpush1.bf16.msra.mxu0 0
    %412 = vmatprep.subr.bf16.mxu0 0
    %413 = vmatpush1.bf16.msra.mxu0 0
    %414 = vmatprep.subr.bf16.mxu0 0
    %415 = vmatpush1.bf16.msra.mxu0 0
    %416 = vmatprep.subr.bf16.mxu0 0
    %417 = vmatpush1.bf16.msra.mxu0 0
    %418 = vmatprep.subr.bf16.mxu0 0
    %419 = vmatpush1.bf16.msra.mxu0 0
    %420 = vmatprep.subr.bf16.mxu0 0
    %421 = vmatpush1.bf16.msra.mxu0 0
    %422 = vmatprep.mubr.bf16.mxu0 0
    %423 = vmatmul.mubr.bf16.gmra.mrb[0].mxu0 %v324
    %v424 = vpop.f32.mrb[0].mxu0
    %v425 = vadd.f32 %v376, %v424
    %v426 = vpop.f32.mrb[0].mxu0
    %v427 = vpop.f32.mrb[0].mxu0
    %v428 = vadd.f32 %v376, %v427
    %v429 = vpop.f32.mrb[0].mxu0
    %430 = vdwg.mxu0
    %v431 = vld [vmem:[%s6] sm:$0xf]
    %v432 = vld [vmem:[%s6 + $0x4] sm:$0xf]
    %v433 = vld [vmem:[%s6 + $0x8] sm:$0xf]
    %v434 = vld [vmem:[%s6 + $0xc] sm:$0xf]
    %v435 = vld [vmem:[#allocation10] sm:$0x1]
    %v437 = vlaneseq
    %v438 = vshrl.u32 %v437, 7
    %v439 = vsub.s32 0, %v438
    %v440 = vrot.slane %v435, %v439
    %v446 = vunpack.c.l.b16 %v431
    %v447 = vunpack.c.l.b16 %v432
    %v448 = vunpack.c.l.b16 %v433
    %v449 = vunpack.c.l.b16 %v434
    %v450 = vpack.c.b16 %v447, %v446
    %v451 = vpack.c.b16 %v449, %v448
    %454 = vmatprep.subr.bf16.mxu0 0
    %455 = vmatpush1.bf16.msra.mxu0 %v450
    %456 = vmatprep.subr.bf16.mxu0 0
    %457 = vmatpush1.bf16.msra.mxu0 %v451
    %458 = vmatprep.subr.bf16.mxu0 0
    %459 = vmatpush1.bf16.msra.mxu0 0
    %460 = vmatprep.subr.bf16.mxu0 0
    %461 = vmatpush1.bf16.msra.mxu0 0
    %462 = vmatprep.subr.bf16.mxu0 0
    %463 = vmatpush1.bf16.msra.mxu0 0
    %464 = vmatprep.subr.bf16.mxu0 0
    %465 = vmatpush1.bf16.msra.mxu0 0
    %466 = vmatprep.subr.bf16.mxu0 0
    %467 = vmatpush1.bf16.msra.mxu0 0
    %468 = vmatprep.subr.bf16.mxu0 0
    %469 = vmatpush1.bf16.msra.mxu0 0
    %470 = vmatprep.subr.bf16.mxu0 0
    %471 = vmatpush1.bf16.msra.mxu0 0
    %472 = vmatprep.subr.bf16.mxu0 0
    %473 = vmatpush1.bf16.msra.mxu0 0
    %474 = vmatprep.subr.bf16.mxu0 0
    %475 = vmatpush1.bf16.msra.mxu0 0
    %476 = vmatprep.subr.bf16.mxu0 0
    %477 = vmatpush1.bf16.msra.mxu0 0
    %478 = vmatprep.subr.bf16.mxu0 0
    %479 = vmatpush1.bf16.msra.mxu0 0
    %480 = vmatprep.subr.bf16.mxu0 0
    %481 = vmatpush1.bf16.msra.mxu0 0
    %482 = vmatprep.subr.bf16.mxu0 0
    %483 = vmatpush1.bf16.msra.mxu0 0
    %484 = vmatprep.subr.bf16.mxu0 0
    %485 = vmatpush1.bf16.msra.mxu0 0
    %486 = vmatprep.mubr.bf16.mxu0 0
    %487 = vmatmul.mubr.bf16.gmra.mrb[0].mxu0 %v324
    %v488 = vpop.f32.mrb[0].mxu0
    %v489 = vadd.f32 %v440, %v488
    %v490 = vpop.f32.mrb[0].mxu0
    %v491 = vpop.f32.mrb[0].mxu0
    %v492 = vadd.f32 %v440, %v491
    %v493 = vpop.f32.mrb[0].mxu0
    %494 = vdwg.mxu0
    %v495 = vpack.c.bf16 %v361, %v361
    %v496 = vpack.c.bf16 %v364, %v364
    %v497 = vpack.c.bf16 %v425, %v425
    %v498 = vpack.c.bf16 %v428, %v428
    %v499 = vpack.c.bf16 %v489, %v489
    %v500 = vpack.c.bf16 %v492, %v492
    %vm501 = vcmask 64512
    %v503 = vsel %vm501, %v495, 0
    %v506 = vsel %vm501, %v497, 0
    %508 = vmatprep.subr.bf16.mxu0 0
    %509 = vmatpush1.bf16.xpose.msra.mxu0 %v506
    %510 = vmatprep.subr.bf16.mxu0 0
    %511 = vmatpush1.bf16.xpose.msra.mxu0 0
    %512 = vmatprep.subr.bf16.mxu0 0
    %513 = vmatpush1.bf16.xpose.msra.mxu0 0
    %514 = vmatprep.subr.bf16.mxu0 0
    %515 = vmatpush1.bf16.xpose.msra.mxu0 0
    %516 = vmatprep.subr.bf16.mxu0 0
    %517 = vmatpush1.bf16.xpose.msra.mxu0 0
    %518 = vmatprep.subr.bf16.mxu0 0
    %519 = vmatpush1.bf16.xpose.msra.mxu0 0
    %520 = vmatprep.subr.bf16.mxu0 0
    %521 = vmatpush1.bf16.xpose.msra.mxu0 0
    %522 = vmatprep.subr.bf16.mxu0 0
    %523 = vmatpush1.bf16.xpose.msra.mxu0 0
    %524 = vmatprep.subr.bf16.mxu0 0
    %525 = vmatpush1.bf16.xpose.msra.mxu0 0
    %526 = vmatprep.subr.bf16.mxu0 0
    %527 = vmatpush1.bf16.xpose.msra.mxu0 0
    %528 = vmatprep.subr.bf16.mxu0 0
    %529 = vmatpush1.bf16.xpose.msra.mxu0 0
    %530 = vmatprep.subr.bf16.mxu0 0
    %531 = vmatpush1.bf16.xpose.msra.mxu0 0
    %532 = vmatprep.subr.bf16.mxu0 0
    %533 = vmatpush1.bf16.xpose.msra.mxu0 0
    %534 = vmatprep.subr.bf16.mxu0 0
    %535 = vmatpush1.bf16.xpose.msra.mxu0 0
    %536 = vmatprep.subr.bf16.mxu0 0
    %537 = vmatpush1.bf16.xpose.msra.mxu0 0
    %538 = vmatprep.subr.bf16.mxu0 0
    %539 = vmatpush1.bf16.xpose.msra.mxu0 0
    %540 = vmatprep.mubr.bf16.mxu0 0
    %541 = vmatmul.mubr.bf16.gmra.mrb[0].mxu0 %v503
    %v542 = vpop.f32.mrb[0].mxu0
    %v543 = vadd.f32 0.0, %v542
    %v544 = vpop.f32.mrb[0].mxu0
    %v545 = vpop.f32.mrb[0].mxu0
    %v546 = vpop.f32.mrb[0].mxu0
    %547 = vdwg.mxu0
    %v549 = vsel %vm501, %v496, 0
    %v552 = vsel %vm501, %v498, 0
    %554 = vmatprep.subr.bf16.mxu0 0
    %555 = vmatpush1.bf16.xpose.msra.mxu0 %v552
    %556 = vmatprep.subr.bf16.mxu0 0
    %557 = vmatpush1.bf16.xpose.msra.mxu0 0
    %558 = vmatprep.subr.bf16.mxu0 0
    %559 = vmatpush1.bf16.xpose.msra.mxu0 0
    %560 = vmatprep.subr.bf16.mxu0 0
    %561 = vmatpush1.bf16.xpose.msra.mxu0 0
    %562 = vmatprep.subr.bf16.mxu0 0
    %563 = vmatpush1.bf16.xpose.msra.mxu0 0
    %564 = vmatprep.subr.bf16.mxu0 0
    %565 = vmatpush1.bf16.xpose.msra.mxu0 0
    %566 = vmatprep.subr.bf16.mxu0 0
    %567 = vmatpush1.bf16.xpose.msra.mxu0 0
    %568 = vmatprep.subr.bf16.mxu0 0
    %569 = vmatpush1.bf16.xpose.msra.mxu0 0
    %570 = vmatprep.subr.bf16.mxu0 0
    %571 = vmatpush1.bf16.xpose.msra.mxu0 0
    %572 = vmatprep.subr.bf16.mxu0 0
    %573 = vmatpush1.bf16.xpose.msra.mxu0 0
    %574 = vmatprep.subr.bf16.mxu0 0
    %575 = vmatpush1.bf16.xpose.msra.mxu0 0
    %576 = vmatprep.subr.bf16.mxu0 0
    %577 = vmatpush1.bf16.xpose.msra.mxu0 0
    %578 = vmatprep.subr.bf16.mxu0 0
    %579 = vmatpush1.bf16.xpose.msra.mxu0 0
    %580 = vmatprep.subr.bf16.mxu0 0
    %581 = vmatpush1.bf16.xpose.msra.mxu0 0
    %582 = vmatprep.subr.bf16.mxu0 0
    %583 = vmatpush1.bf16.xpose.msra.mxu0 0
    %584 = vmatprep.subr.bf16.mxu0 0
    %585 = vmatpush1.bf16.xpose.msra.mxu0 0
    %586 = vmatprep.mubr.bf16.mxu0 0
    %587 = vmatmul.mubr.bf16.gmra.mrb[0].mxu0 %v549
    %v588 = vpop.f32.mrb[0].mxu0
    %v589 = vadd.f32 0.0, %v588
    %v590 = vpop.f32.mrb[0].mxu0
    %v591 = vpop.f32.mrb[0].mxu0
    %v592 = vpop.f32.mrb[0].mxu0
    %593 = vdwg.mxu0
    %v594 = vmul.f32 %v543, 0.35355338
    %v595 = vmul.f32 %v589, 0.35355338
    %v598 = vlaneseq
    %v599 = vshrl.u32 %v598, 7
    %v600 = vsub.s32 0, %v599
    %v601 = vrot.slane %v296, %v600
    %v602 = vlaneseq
    %v603 = vshrl.u32 %v602, 7
    %v604 = vsub.s32 0, %v603
    %v605 = vrot.slane %v297, %v604
    %v608 = vadd.f32 %v594, %v601
    %v609 = vadd.f32 %v595, %v605
    %v610 = vsel %vm501, %v608, -inf
    %611 = vmax.xlane.f32.xlu0 %v610
    %v612 = vpop.xlane.xlu0 %611
    %v613 = vsel %vm501, %v609, -inf
    %614 = vmax.xlane.f32.xlu0 %v613
    %v615 = vpop.xlane.xlu0 %614
    %v616 = vsub.f32 %v608, %v612
    %v617 = vsub.f32 %v609, %v615
    %v618 = vmul.f32 %v616, 1.442695
    %v619 = vpow.pop %v618
    %v620 = vmul.f32 %v617, 1.442695
    %v621 = vpow.pop %v620
    %v622 = vsel %vm501, %v619, 0.0
    %623 = vadd.xlane.f32.xlu0 %v622
    %v624 = vpop.xlane.xlu0 %623
    %v625 = vsel %vm501, %v621, 0.0
    %626 = vadd.xlane.f32.xlu0 %v625
    %v627 = vpop.xlane.xlu0 %626
    %v628 = vrcp.pop %v624
    %v629 = vrcp.pop %v627
    %v630 = vmul.f32 %v619, %v628
    %v631 = vmul.f32 %v621, %v629
    %v632 = vpack.c.bf16 %v630, %v630
    %v633 = vpack.c.bf16 %v631, %v631
    %v635 = vsel %vm501, %v632, 0
    %vm637 = vcmask 1043456
    %v639 = vsel %vm637, %v499, 0
    %641 = vmatprep.subr.bf16.mxu0 0
    %642 = vmatpush1.bf16.msra.mxu0 %v639
    %643 = vmatprep.subr.bf16.mxu0 0
    %644 = vmatpush1.bf16.msra.mxu0 0
    %645 = vmatprep.subr.bf16.mxu0 0
    %646 = vmatpush1.bf16.msra.mxu0 0
    %647 = vmatprep.subr.bf16.mxu0 0
    %648 = vmatpush1.bf16.msra.mxu0 0
    %649 = vmatprep.subr.bf16.mxu0 0
    %650 = vmatpush1.bf16.msra.mxu0 0
    %651 = vmatprep.subr.bf16.mxu0 0
    %652 = vmatpush1.bf16.msra.mxu0 0
    %653 = vmatprep.subr.bf16.mxu0 0
    %654 = vmatpush1.bf16.msra.mxu0 0
    %655 = vmatprep.subr.bf16.mxu0 0
    %656 = vmatpush1.bf16.msra.mxu0 0
    %657 = vmatprep.subr.bf16.mxu0 0
    %658 = vmatpush1.bf16.msra.mxu0 0
    %659 = vmatprep.subr.bf16.mxu0 0
    %660 = vmatpush1.bf16.msra.mxu0 0
    %661 = vmatprep.subr.bf16.mxu0 0
    %662 = vmatpush1.bf16.msra.mxu0 0
    %663 = vmatprep.subr.bf16.mxu0 0
    %664 = vmatpush1.bf16.msra.mxu0 0
    %665 = vmatprep.subr.bf16.mxu0 0
    %666 = vmatpush1.bf16.msra.mxu0 0
    %667 = vmatprep.subr.bf16.mxu0 0
    %668 = vmatpush1.bf16.msra.mxu0 0
    %669 = vmatprep.subr.bf16.mxu0 0
    %670 = vmatpush1.bf16.msra.mxu0 0
    %671 = vmatprep.subr.bf16.mxu0 0
    %672 = vmatpush1.bf16.msra.mxu0 0
    %673 = vmatprep.mubr.bf16.mxu0 0
    %674 = vmatmul.mubr.bf16.gmra.mrb[0].mxu0 %v635
    %v675 = vpop.f32.mrb[0].mxu0
    %v676 = vadd.f32 0.0, %v675
    %v677 = vpop.f32.mrb[0].mxu0
    %v678 = vpop.f32.mrb[0].mxu0
    %v679 = vpop.f32.mrb[0].mxu0
    %680 = vdwg.mxu0
    %v682 = vsel %vm501, %v633, 0
    %v685 = vsel %vm637, %v500, 0
    %687 = vmatprep.subr.bf16.mxu0 0
    %688 = vmatpush1.bf16.msra.mxu0 %v685
    %689 = vmatprep.subr.bf16.mxu0 0
    %690 = vmatpush1.bf16.msra.mxu0 0
    %691 = vmatprep.subr.bf16.mxu0 0
    %692 = vmatpush1.bf16.msra.mxu0 0
    %693 = vmatprep.subr.bf16.mxu0 0
    %694 = vmatpush1.bf16.msra.mxu0 0
    %695 = vmatprep.subr.bf16.mxu0 0
    %696 = vmatpush1.bf16.msra.mxu0 0
    %697 = vmatprep.subr.bf16.mxu0 0
    %698 = vmatpush1.bf16.msra.mxu0 0
    %699 = vmatprep.subr.bf16.mxu0 0
    %700 = vmatpush1.bf16.msra.mxu0 0
    %701 = vmatprep.subr.bf16.mxu0 0
    %702 = vmatpush1.bf16.msra.mxu0 0
    %703 = vmatprep.subr.bf16.mxu0 0
    %704 = vmatpush1.bf16.msra.mxu0 0
    %705 = vmatprep.subr.bf16.mxu0 0
    %706 = vmatpush1.bf16.msra.mxu0 0
    %707 = vmatprep.subr.bf16.mxu0 0
    %708 = vmatpush1.bf16.msra.mxu0 0
    %709 = vmatprep.subr.bf16.mxu0 0
    %710 = vmatpush1.bf16.msra.mxu0 0
    %711 = vmatprep.subr.bf16.mxu0 0
    %712 = vmatpush1.bf16.msra.mxu0 0
    %713 = vmatprep.subr.bf16.mxu0 0
    %714 = vmatpush1.bf16.msra.mxu0 0
    %715 = vmatprep.subr.bf16.mxu0 0
    %716 = vmatpush1.bf16.msra.mxu0 0
    %717 = vmatprep.subr.bf16.mxu0 0
    %718 = vmatpush1.bf16.msra.mxu0 0
    %719 = vmatprep.mubr.bf16.mxu0 0
    %720 = vmatmul.mubr.bf16.gmra.mrb[0].mxu0 %v682
    %v721 = vpop.f32.mrb[0].mxu0
    %v722 = vadd.f32 0.0, %v721
    %v723 = vpop.f32.mrb[0].mxu0
    %v724 = vpop.f32.mrb[0].mxu0
    %v725 = vpop.f32.mrb[0].mxu0
    %726 = vdwg.mxu0
    %v727 = vpack.c.bf16 %v722, %v676
    %v728 = vld [vmem:[#allocation11] sm:$0xf]
    %730 = vrot.lane.b32.xlu0 %v495, 120
    %v731 = vpop.permute.xlu0 %730
    %733 = vrot.lane.b32.xlu0 %v497, 120
    %v734 = vpop.permute.xlu0 %733
    %v736 = vsel %vm501, %v731, 0
    %v739 = vsel %vm501, %v734, 0
    %741 = vmatprep.subr.bf16.mxu0 0
    %742 = vmatpush1.bf16.xpose.msra.mxu0 %v739
    %743 = vmatprep.subr.bf16.mxu0 0
    %744 = vmatpush1.bf16.xpose.msra.mxu0 0
    %745 = vmatprep.subr.bf16.mxu0 0
    %746 = vmatpush1.bf16.xpose.msra.mxu0 0
    %747 = vmatprep.subr.bf16.mxu0 0
    %748 = vmatpush1.bf16.xpose.msra.mxu0 0
    %749 = vmatprep.subr.bf16.mxu0 0
    %750 = vmatpush1.bf16.xpose.msra.mxu0 0
    %751 = vmatprep.subr.bf16.mxu0 0
    %752 = vmatpush1.bf16.xpose.msra.mxu0 0
    %753 = vmatprep.subr.bf16.mxu0 0
    %754 = vmatpush1.bf16.xpose.msra.mxu0 0
    %755 = vmatprep.subr.bf16.mxu0 0
    %756 = vmatpush1.bf16.xpose.msra.mxu0 0
    %757 = vmatprep.subr.bf16.mxu0 0
    %758 = vmatpush1.bf16.xpose.msra.mxu0 0
    %759 = vmatprep.subr.bf16.mxu0 0
    %760 = vmatpush1.bf16.xpose.msra.mxu0 0
    %761 = vmatprep.subr.bf16.mxu0 0
    %762 = vmatpush1.bf16.xpose.msra.mxu0 0
    %763 = vmatprep.subr.bf16.mxu0 0
    %764 = vmatpush1.bf16.xpose.msra.mxu0 0
    %765 = vmatprep.subr.bf16.mxu0 0
    %766 = vmatpush1.bf16.xpose.msra.mxu0 0
    %767 = vmatprep.subr.bf16.mxu0 0
    %768 = vmatpush1.bf16.xpose.msra.mxu0 0
    %769 = vmatprep.subr.bf16.mxu0 0
    %770 = vmatpush1.bf16.xpose.msra.mxu0 0
    %771 = vmatprep.subr.bf16.mxu0 0
    %772 = vmatpush1.bf16.xpose.msra.mxu0 0
    %773 = vmatprep.mubr.bf16.mxu0 0
    %774 = vmatmul.mubr.bf16.gmra.mrb[0].mxu0 %v736
    %v775 = vpop.f32.mrb[0].mxu0
    %v776 = vadd.f32 0.0, %v775
    %v777 = vpop.f32.mrb[0].mxu0
    %v778 = vpop.f32.mrb[0].mxu0
    %v779 = vpop.f32.mrb[0].mxu0
    %780 = vdwg.mxu0
    %782 = vrot.lane.b32.xlu0 %v496, 120
    %v783 = vpop.permute.xlu0 %782
    %785 = vrot.lane.b32.xlu0 %v498, 120
    %v786 = vpop.permute.xlu0 %785
    %v788 = vsel %vm501, %v783, 0
    %v791 = vsel %vm501, %v786, 0
    %793 = vmatprep.subr.bf16.mxu0 0
    %794 = vmatpush1.bf16.xpose.msra.mxu0 %v791
    %795 = vmatprep.subr.bf16.mxu0 0
    %796 = vmatpush1.bf16.xpose.msra.mxu0 0
    %797 = vmatprep.subr.bf16.mxu0 0
    %798 = vmatpush1.bf16.xpose.msra.mxu0 0
    %799 = vmatprep.subr.bf16.mxu0 0
    %800 = vmatpush1.bf16.xpose.msra.mxu0 0
    %801 = vmatprep.subr.bf16.mxu0 0
    %802 = vmatpush1.bf16.xpose.msra.mxu0 0
    %803 = vmatprep.subr.bf16.mxu0 0
    %804 = vmatpush1.bf16.xpose.msra.mxu0 0
    %805 = vmatprep.subr.bf16.mxu0 0
    %806 = vmatpush1.bf16.xpose.msra.mxu0 0
    %807 = vmatprep.subr.bf16.mxu0 0
    %808 = vmatpush1.bf16.xpose.msra.mxu0 0
    %809 = vmatprep.subr.bf16.mxu0 0
    %810 = vmatpush1.bf16.xpose.msra.mxu0 0
    %811 = vmatprep.subr.bf16.mxu0 0
    %812 = vmatpush1.bf16.xpose.msra.mxu0 0
    %813 = vmatprep.subr.bf16.mxu0 0
    %814 = vmatpush1.bf16.xpose.msra.mxu0 0
    %815 = vmatprep.subr.bf16.mxu0 0
    %816 = vmatpush1.bf16.xpose.msra.mxu0 0
    %817 = vmatprep.subr.bf16.mxu0 0
    %818 = vmatpush1.bf16.xpose.msra.mxu0 0
    %819 = vmatprep.subr.bf16.mxu0 0
    %820 = vmatpush1.bf16.xpose.msra.mxu0 0
    %821 = vmatprep.subr.bf16.mxu0 0
    %822 = vmatpush1.bf16.xpose.msra.mxu0 0
    %823 = vmatprep.subr.bf16.mxu0 0
    %824 = vmatpush1.bf16.xpose.msra.mxu0 0
    %825 = vmatprep.mubr.bf16.mxu0 0
    %826 = vmatmul.mubr.bf16.gmra.mrb[0].mxu0 %v788
    %v827 = vpop.f32.mrb[0].mxu0
    %v828 = vadd.f32 0.0, %v827
    %v829 = vpop.f32.mrb[0].mxu0
    %v830 = vpop.f32.mrb[0].mxu0
    %v831 = vpop.f32.mrb[0].mxu0
    %832 = vdwg.mxu0
    %v833 = vmul.f32 %v776, 0.35355338
    %v834 = vmul.f32 %v828, 0.35355338
    %v835 = vadd.f32 %v833, %v601
    %v836 = vadd.f32 %v834, %v605
    %v837 = vsel %vm501, %v835, -inf
    %838 = vmax.xlane.f32.xlu0 %v837
    %v839 = vpop.xlane.xlu0 %838
    %v840 = vsel %vm501, %v836, -inf
    %841 = vmax.xlane.f32.xlu0 %v840
    %v842 = vpop.xlane.xlu0 %841
    %v843 = vsub.f32 %v835, %v839
    %v844 = vsub.f32 %v836, %v842
    %v845 = vmul.f32 %v843, 1.442695
    %v846 = vpow.pop %v845
    %v847 = vmul.f32 %v844, 1.442695
    %v848 = vpow.pop %v847
    %v849 = vsel %vm501, %v846, 0.0
    %850 = vadd.xlane.f32.xlu0 %v849
    %v851 = vpop.xlane.xlu0 %850
    %v852 = vsel %vm501, %v848, 0.0
    %853 = vadd.xlane.f32.xlu0 %v852
    %v854 = vpop.xlane.xlu0 %853
    %v855 = vrcp.pop %v851
    %v856 = vrcp.pop %v854
    %v857 = vmul.f32 %v846, %v855
    %v858 = vmul.f32 %v848, %v856
    %v859 = vpack.c.bf16 %v857, %v857
    %v860 = vpack.c.bf16 %v858, %v858
    %862 = vrot.lane.b32.xlu0 %v499, 120
    %v863 = vpop.permute.xlu0 %862
    %v865 = vsel %vm501, %v859, 0
    %v868 = vsel %vm637, %v863, 0
    %870 = vmatprep.subr.bf16.mxu0 0
    %871 = vmatpush1.bf16.msra.mxu0 %v868
    %872 = vmatprep.subr.bf16.mxu0 0
    %873 = vmatpush1.bf16.msra.mxu0 0
    %874 = vmatprep.subr.bf16.mxu0 0
    %875 = vmatpush1.bf16.msra.mxu0 0
    %876 = vmatprep.subr.bf16.mxu0 0
    %877 = vmatpush1.bf16.msra.mxu0 0
    %878 = vmatprep.subr.bf16.mxu0 0
    %879 = vmatpush1.bf16.msra.mxu0 0
    %880 = vmatprep.subr.bf16.mxu0 0
    %881 = vmatpush1.bf16.msra.mxu0 0
    %882 = vmatprep.subr.bf16.mxu0 0
    %883 = vmatpush1.bf16.msra.mxu0 0
    %884 = vmatprep.subr.bf16.mxu0 0
    %885 = vmatpush1.bf16.msra.mxu0 0
    %886 = vmatprep.subr.bf16.mxu0 0
    %887 = vmatpush1.bf16.msra.mxu0 0
    %888 = vmatprep.subr.bf16.mxu0 0
    %889 = vmatpush1.bf16.msra.mxu0 0
    %890 = vmatprep.subr.bf16.mxu0 0
    %891 = vmatpush1.bf16.msra.mxu0 0
    %892 = vmatprep.subr.bf16.mxu0 0
    %893 = vmatpush1.bf16.msra.mxu0 0
    %894 = vmatprep.subr.bf16.mxu0 0
    %895 = vmatpush1.bf16.msra.mxu0 0
    %896 = vmatprep.subr.bf16.mxu0 0
    %897 = vmatpush1.bf16.msra.mxu0 0
    %898 = vmatprep.subr.bf16.mxu0 0
    %899 = vmatpush1.bf16.msra.mxu0 0
    %900 = vmatprep.subr.bf16.mxu0 0
    %901 = vmatpush1.bf16.msra.mxu0 0
    %902 = vmatprep.mubr.bf16.mxu0 0
    %903 = vmatmul.mubr.bf16.gmra.mrb[0].mxu0 %v865
    %v904 = vpop.f32.mrb[0].mxu0
    %v905 = vadd.f32 0.0, %v904
    %v906 = vpop.f32.mrb[0].mxu0
    %v907 = vpop.f32.mrb[0].mxu0
    %v908 = vpop.f32.mrb[0].mxu0
    %909 = vdwg.mxu0
    %911 = vrot.lane.b32.xlu0 %v500, 120
    %v912 = vpop.permute.xlu0 %911
    %v914 = vsel %vm501, %v860, 0
    %v917 = vsel %vm637, %v912, 0
    %919 = vmatprep.subr.bf16.mxu0 0
    %920 = vmatpush1.bf16.msra.mxu0 %v917
    %921 = vmatprep.subr.bf16.mxu0 0
    %922 = vmatpush1.bf16.msra.mxu0 0
    %923 = vmatprep.subr.bf16.mxu0 0
    %924 = vmatpush1.bf16.msra.mxu0 0
    %925 = vmatprep.subr.bf16.mxu0 0
    %926 = vmatpush1.bf16.msra.mxu0 0
    %927 = vmatprep.subr.bf16.mxu0 0
    %928 = vmatpush1.bf16.msra.mxu0 0
    %929 = vmatprep.subr.bf16.mxu0 0
    %930 = vmatpush1.bf16.msra.mxu0 0
    %931 = vmatprep.subr.bf16.mxu0 0
    %932 = vmatpush1.bf16.msra.mxu0 0
    %933 = vmatprep.subr.bf16.mxu0 0
    %934 = vmatpush1.bf16.msra.mxu0 0
    %935 = vmatprep.subr.bf16.mxu0 0
    %936 = vmatpush1.bf16.msra.mxu0 0
    %937 = vmatprep.subr.bf16.mxu0 0
    %938 = vmatpush1.bf16.msra.mxu0 0
    %939 = vmatprep.subr.bf16.mxu0 0
    %940 = vmatpush1.bf16.msra.mxu0 0
    %941 = vmatprep.subr.bf16.mxu0 0
    %942 = vmatpush1.bf16.msra.mxu0 0
    %943 = vmatprep.subr.bf16.mxu0 0
    %944 = vmatpush1.bf16.msra.mxu0 0
    %945 = vmatprep.subr.bf16.mxu0 0
    %946 = vmatpush1.bf16.msra.mxu0 0
    %947 = vmatprep.subr.bf16.mxu0 0
    %948 = vmatpush1.bf16.msra.mxu0 0
    %949 = vmatprep.subr.bf16.mxu0 0
    %950 = vmatpush1.bf16.msra.mxu0 0
    %951 = vmatprep.mubr.bf16.mxu0 0
    %952 = vmatmul.mubr.bf16.gmra.mrb[0].mxu0 %v914
    %v953 = vpop.f32.mrb[0].mxu0
    %v954 = vadd.f32 0.0, %v953
    %v955 = vpop.f32.mrb[0].mxu0
    %v956 = vpop.f32.mrb[0].mxu0
    %v957 = vpop.f32.mrb[0].mxu0
    %958 = vdwg.mxu0
    %v959 = vpack.c.bf16 %v954, %v905
    %s960 = scalar_lea.vmem [#allocation11], 4
    %v961 = vld [vmem:[%s960] sm:$0xf]
    %v963 = vsel %vm501, %v959, 0
    %v966 = vsel %vm637, %v961, 0
    %968 = vmatprep.subr.bf16.mxu0 0
    %969 = vmatpush1.bf16.msra.mxu0 %v966
    %970 = vmatprep.subr.bf16.mxu0 0
    %971 = vmatpush1.bf16.msra.mxu0 0
    %972 = vmatprep.subr.bf16.mxu0 0
    %973 = vmatpush1.bf16.msra.mxu0 0
    %974 = vmatprep.subr.bf16.mxu0 0
    %975 = vmatpush1.bf16.msra.mxu0 0
    %976 = vmatprep.subr.bf16.mxu0 0
    %977 = vmatpush1.bf16.msra.mxu0 0
    %978 = vmatprep.subr.bf16.mxu0 0
    %979 = vmatpush1.bf16.msra.mxu0 0
    %980 = vmatprep.subr.bf16.mxu0 0
    %981 = vmatpush1.bf16.msra.mxu0 0
    %982 = vmatprep.subr.bf16.mxu0 0
    %983 = vmatpush1.bf16.msra.mxu0 0
    %984 = vmatprep.subr.bf16.mxu0 0
    %985 = vmatpush1.bf16.msra.mxu0 0
    %986 = vmatprep.subr.bf16.mxu0 0
    %987 = vmatpush1.bf16.msra.mxu0 0
    %988 = vmatprep.subr.bf16.mxu0 0
    %989 = vmatpush1.bf16.msra.mxu0 0
    %990 = vmatprep.subr.bf16.mxu0 0
    %991 = vmatpush1.bf16.msra.mxu0 0
    %992 = vmatprep.subr.bf16.mxu0 0
    %993 = vmatpush1.bf16.msra.mxu0 0
    %994 = vmatprep.subr.bf16.mxu0 0
    %995 = vmatpush1.bf16.msra.mxu0 0
    %996 = vmatprep.subr.bf16.mxu0 0
    %997 = vmatpush1.bf16.msra.mxu0 0
    %998 = vmatprep.subr.bf16.mxu0 0
    %999 = vmatpush1.bf16.msra.mxu0 0
    %1000 = vmatprep.mubr.bf16.mxu0 0
    %1001 = vmatmul.mubr.bf16.gmra.mrb[0].mxu0 %v963
    %v1002 = vpop.f32.mrb[0].mxu0
    %v1003 = vadd.f32 0.0, %v1002
    %v1004 = vpop.f32.mrb[0].mxu0
    %v1005 = vpop.f32.mrb[0].mxu0
    %v1006 = vadd.f32 0.0, %v1005
    %v1007 = vpop.f32.mrb[0].mxu0
    %1008 = vdwg.mxu0
    %v1010 = vsel %vm501, %v727, 0
    %v1013 = vsel %vm637, %v728, 0
    %1015 = vmatprep.subr.bf16.mxu0 0
    %1016 = vmatpush1.bf16.msra.mxu0 %v1013
    %1017 = vmatprep.subr.bf16.mxu0 0
    %1018 = vmatpush1.bf16.msra.mxu0 0
    %1019 = vmatprep.subr.bf16.mxu0 0
    %1020 = vmatpush1.bf16.msra.mxu0 0
    %1021 = vmatprep.subr.bf16.mxu0 0
    %1022 = vmatpush1.bf16.msra.mxu0 0
    %1023 = vmatprep.subr.bf16.mxu0 0
    %1024 = vmatpush1.bf16.msra.mxu0 0
    %1025 = vmatprep.subr.bf16.mxu0 0
    %1026 = vmatpush1.bf16.msra.mxu0 0
    %1027 = vmatprep.subr.bf16.mxu0 0
    %1028 = vmatpush1.bf16.msra.mxu0 0
    %1029 = vmatprep.subr.bf16.mxu0 0
    %1030 = vmatpush1.bf16.msra.mxu0 0
    %1031 = vmatprep.subr.bf16.mxu0 0
    %1032 = vmatpush1.bf16.msra.mxu0 0
    %1033 = vmatprep.subr.bf16.mxu0 0
    %1034 = vmatpush1.bf16.msra.mxu0 0
    %1035 = vmatprep.subr.bf16.mxu0 0
    %1036 = vmatpush1.bf16.msra.mxu0 0
    %1037 = vmatprep.subr.bf16.mxu0 0
    %1038 = vmatpush1.bf16.msra.mxu0 0
    %1039 = vmatprep.subr.bf16.mxu0 0
    %1040 = vmatpush1.bf16.msra.mxu0 0
    %1041 = vmatprep.subr.bf16.mxu0 0
    %1042 = vmatpush1.bf16.msra.mxu0 0
    %1043 = vmatprep.subr.bf16.mxu0 0
    %1044 = vmatpush1.bf16.msra.mxu0 0
    %1045 = vmatprep.subr.bf16.mxu0 0
    %1046 = vmatpush1.bf16.msra.mxu0 0
    %1047 = vmatprep.mubr.bf16.mxu0 0
    %1048 = vmatmul.mubr.bf16.gmra.mrb[0].mxu0 %v1010
    %v1049 = vpop.f32.mrb[0].mxu0
    %v1050 = vadd.f32 %v1003, %v1049
    %v1051 = vpop.f32.mrb[0].mxu0
    %v1052 = vpop.f32.mrb[0].mxu0
    %v1053 = vadd.f32 %v1006, %v1052
    %v1054 = vpop.f32.mrb[0].mxu0
    %1055 = vdwg.mxu0
    %1056 = vrot.lane.b32.xlu0 %v495, 112
    %v1057 = vpop.permute.xlu0 %1056
    %1058 = vrot.lane.b32.xlu0 %v497, 112
    %v1059 = vpop.permute.xlu0 %1058
    %v1061 = vsel %vm501, %v1057, 0
    %v1064 = vsel %vm501, %v1059, 0
    %1066 = vmatprep.subr.bf16.mxu0 0
    %1067 = vmatpush1.bf16.xpose.msra.mxu0 %v1064
    %1068 = vmatprep.subr.bf16.mxu0 0
    %1069 = vmatpush1.bf16.xpose.msra.mxu0 0
    %1070 = vmatprep.subr.bf16.mxu0 0
    %1071 = vmatpush1.bf16.xpose.msra.mxu0 0
    %1072 = vmatprep.subr.bf16.mxu0 0
    %1073 = vmatpush1.bf16.xpose.msra.mxu0 0
    %1074 = vmatprep.subr.bf16.mxu0 0
    %1075 = vmatpush1.bf16.xpose.msra.mxu0 0
    %1076 = vmatprep.subr.bf16.mxu0 0
    %1077 = vmatpush1.bf16.xpose.msra.mxu0 0
    %1078 = vmatprep.subr.bf16.mxu0 0
    %1079 = vmatpush1.bf16.xpose.msra.mxu0 0
    %1080 = vmatprep.subr.bf16.mxu0 0
    %1081 = vmatpush1.bf16.xpose.msra.mxu0 0
    %1082 = vmatprep.subr.bf16.mxu0 0
    %1083 = vmatpush1.bf16.xpose.msra.mxu0 0
    %1084 = vmatprep.subr.bf16.mxu0 0
    %1085 = vmatpush1.bf16.xpose.msra.mxu0 0
    %1086 = vmatprep.subr.bf16.mxu0 0
    %1087 = vmatpush1.bf16.xpose.msra.mxu0 0
    %1088 = vmatprep.subr.bf16.mxu0 0
    %1089 = vmatpush1.bf16.xpose.msra.mxu0 0
    %1090 = vmatprep.subr.bf16.mxu0 0
    %1091 = vmatpush1.bf16.xpose.msra.mxu0 0
    %1092 = vmatprep.subr.bf16.mxu0 0
    %1093 = vmatpush1.bf16.xpose.msra.mxu0 0
    %1094 = vmatprep.subr.bf16.mxu0 0
    %1095 = vmatpush1.bf16.xpose.msra.mxu0 0
    %1096 = vmatprep.subr.bf16.mxu0 0
    %1097 = vmatpush1.bf16.xpose.msra.mxu0 0
    %1098 = vmatprep.mubr.bf16.mxu0 0
    %1099 = vmatmul.mubr.bf16.gmra.mrb[0].mxu0 %v1061
    %v1100 = vpop.f32.mrb[0].mxu0
    %v1101 = vadd.f32 0.0, %v1100
    %v1102 = vpop.f32.mrb[0].mxu0
    %v1103 = vpop.f32.mrb[0].mxu0
    %v1104 = vpop.f32.mrb[0].mxu0
    %1105 = vdwg.mxu0
    %1106 = vrot.lane.b32.xlu0 %v496, 112
    %v1107 = vpop.permute.xlu0 %1106
    %1108 = vrot.lane.b32.xlu0 %v498, 112
    %v1109 = vpop.permute.xlu0 %1108
    %v1111 = vsel %vm501, %v1107, 0
    %v1114 = vsel %vm501, %v1109, 0
    %1116 = vmatprep.subr.bf16.mxu0 0
    %1117 = vmatpush1.bf16.xpose.msra.mxu0 %v1114
    %1118 = vmatprep.subr.bf16.mxu0 0
    %1119 = vmatpush1.bf16.xpose.msra.mxu0 0
    %1120 = vmatprep.subr.bf16.mxu0 0
    %1121 = vmatpush1.bf16.xpose.msra.mxu0 0
    %1122 = vmatprep.subr.bf16.mxu0 0
    %1123 = vmatpush1.bf16.xpose.msra.mxu0 0
    %1124 = vmatprep.subr.bf16.mxu0 0
    %1125 = vmatpush1.bf16.xpose.msra.mxu0 0
    %1126 = vmatprep.subr.bf16.mxu0 0
    %1127 = vmatpush1.bf16.xpose.msra.mxu0 0
    %1128 = vmatprep.subr.bf16.mxu0 0
    %1129 = vmatpush1.bf16.xpose.msra.mxu0 0
    %1130 = vmatprep.subr.bf16.mxu0 0
    %1131 = vmatpush1.bf16.xpose.msra.mxu0 0
    %1132 = vmatprep.subr.bf16.mxu0 0
    %1133 = vmatpush1.bf16.xpose.msra.mxu0 0
    %1134 = vmatprep.subr.bf16.mxu0 0
    %1135 = vmatpush1.bf16.xpose.msra.mxu0 0
    %1136 = vmatprep.subr.bf16.mxu0 0
    %1137 = vmatpush1.bf16.xpose.msra.mxu0 0
    %1138 = vmatprep.subr.bf16.mxu0 0
    %1139 = vmatpush1.bf16.xpose.msra.mxu0 0
    %1140 = vmatprep.subr.bf16.mxu0 0
    %1141 = vmatpush1.bf16.xpose.msra.mxu0 0
    %1142 = vmatprep.subr.bf16.mxu0 0
    %1143 = vmatpush1.bf16.xpose.msra.mxu0 0
    %1144 = vmatprep.subr.bf16.mxu0 0
    %1145 = vmatpush1.bf16.xpose.msra.mxu0 0
    %1146 = vmatprep.subr.bf16.mxu0 0
    %1147 = vmatpush1.bf16.xpose.msra.mxu0 0
    %1148 = vmatprep.mubr.bf16.mxu0 0
    %1149 = vmatmul.mubr.bf16.gmra.mrb[0].mxu0 %v1111
    %v1150 = vpop.f32.mrb[0].mxu0
    %v1151 = vadd.f32 0.0, %v1150
    %v1152 = vpop.f32.mrb[0].mxu0
    %v1153 = vpop.f32.mrb[0].mxu0
    %v1154 = vpop.f32.mrb[0].mxu0
    %1155 = vdwg.mxu0
    %v1156 = vmul.f32 %v1101, 0.35355338
    %v1157 = vmul.f32 %v1151, 0.35355338
    %v1158 = vadd.f32 %v1156, %v601
    %v1159 = vadd.f32 %v1157, %v605
    %v1160 = vsel %vm501, %v1158, -inf
    %1161 = vmax.xlane.f32.xlu0 %v1160
    %v1162 = vpop.xlane.xlu0 %1161
    %v1163 = vsel %vm501, %v1159, -inf
    %1164 = vmax.xlane.f32.xlu0 %v1163
    %v1165 = vpop.xlane.xlu0 %1164
    %v1166 = vsub.f32 %v1158, %v1162
    %v1167 = vsub.f32 %v1159, %v1165
    %v1168 = vmul.f32 %v1166, 1.442695
    %v1169 = vpow.pop %v1168
    %v1170 = vmul.f32 %v1167, 1.442695
    %v1171 = vpow.pop %v1170
    %v1172 = vsel %vm501, %v1169, 0.0
    %1173 = vadd.xlane.f32.xlu0 %v1172
    %v1174 = vpop.xlane.xlu0 %1173
    %v1175 = vsel %vm501, %v1171, 0.0
    %1176 = vadd.xlane.f32.xlu0 %v1175
    %v1177 = vpop.xlane.xlu0 %1176
    %v1178 = vrcp.pop %v1174
    %v1179 = vrcp.pop %v1177
    %v1180 = vmul.f32 %v1169, %v1178
    %v1181 = vmul.f32 %v1171, %v1179
    %v1182 = vpack.c.bf16 %v1180, %v1180
    %v1183 = vpack.c.bf16 %v1181, %v1181
    %1184 = vrot.lane.b32.xlu0 %v499, 112
    %v1185 = vpop.permute.xlu0 %1184
    %v1187 = vsel %vm501, %v1182, 0
    %v1190 = vsel %vm637, %v1185, 0
    %1192 = vmatprep.subr.bf16.mxu0 0
    %1193 = vmatpush1.bf16.msra.mxu0 %v1190
    %1194 = vmatprep.subr.bf16.mxu0 0
    %1195 = vmatpush1.bf16.msra.mxu0 0
    %1196 = vmatprep.subr.bf16.mxu0 0
    %1197 = vmatpush1.bf16.msra.mxu0 0
    %1198 = vmatprep.subr.bf16.mxu0 0
    %1199 = vmatpush1.bf16.msra.mxu0 0
    %1200 = vmatprep.subr.bf16.mxu0 0
    %1201 = vmatpush1.bf16.msra.mxu0 0
    %1202 = vmatprep.subr.bf16.mxu0 0
    %1203 = vmatpush1.bf16.msra.mxu0 0
    %1204 = vmatprep.subr.bf16.mxu0 0
    %1205 = vmatpush1.bf16.msra.mxu0 0
    %1206 = vmatprep.subr.bf16.mxu0 0
    %1207 = vmatpush1.bf16.msra.mxu0 0
    %1208 = vmatprep.subr.bf16.mxu0 0
    %1209 = vmatpush1.bf16.msra.mxu0 0
    %1210 = vmatprep.subr.bf16.mxu0 0
    %1211 = vmatpush1.bf16.msra.mxu0 0
    %1212 = vmatprep.subr.bf16.mxu0 0
    %1213 = vmatpush1.bf16.msra.mxu0 0
    %1214 = vmatprep.subr.bf16.mxu0 0
    %1215 = vmatpush1.bf16.msra.mxu0 0
    %1216 = vmatprep.subr.bf16.mxu0 0
    %1217 = vmatpush1.bf16.msra.mxu0 0
    %1218 = vmatprep.subr.bf16.mxu0 0
    %1219 = vmatpush1.bf16.msra.mxu0 0
    %1220 = vmatprep.subr.bf16.mxu0 0
    %1221 = vmatpush1.bf16.msra.mxu0 0
    %1222 = vmatprep.subr.bf16.mxu0 0
    %1223 = vmatpush1.bf16.msra.mxu0 0
    %1224 = vmatprep.mubr.bf16.mxu0 0
    %1225 = vmatmul.mubr.bf16.gmra.mrb[0].mxu0 %v1187
    %v1226 = vpop.f32.mrb[0].mxu0
    %v1227 = vadd.f32 0.0, %v1226
    %v1228 = vpop.f32.mrb[0].mxu0
    %v1229 = vpop.f32.mrb[0].mxu0
    %v1230 = vpop.f32.mrb[0].mxu0
    %1231 = vdwg.mxu0
    %1232 = vrot.lane.b32.xlu0 %v500, 112
    %v1233 = vpop.permute.xlu0 %1232
    %v1235 = vsel %vm501, %v1183, 0
    %v1238 = vsel %vm637, %v1233, 0
    %1240 = vmatprep.subr.bf16.mxu0 0
    %1241 = vmatpush1.bf16.msra.mxu0 %v1238
    %1242 = vmatprep.subr.bf16.mxu0 0
    %1243 = vmatpush1.bf16.msra.mxu0 0
    %1244 = vmatprep.subr.bf16.mxu0 0
    %1245 = vmatpush1.bf16.msra.mxu0 0
    %1246 = vmatprep.subr.bf16.mxu0 0
    %1247 = vmatpush1.bf16.msra.mxu0 0
    %1248 = vmatprep.subr.bf16.mxu0 0
    %1249 = vmatpush1.bf16.msra.mxu0 0
    %1250 = vmatprep.subr.bf16.mxu0 0
    %1251 = vmatpush1.bf16.msra.mxu0 0
    %1252 = vmatprep.subr.bf16.mxu0 0
    %1253 = vmatpush1.bf16.msra.mxu0 0
    %1254 = vmatprep.subr.bf16.mxu0 0
    %1255 = vmatpush1.bf16.msra.mxu0 0
    %1256 = vmatprep.subr.bf16.mxu0 0
    %1257 = vmatpush1.bf16.msra.mxu0 0
    %1258 = vmatprep.subr.bf16.mxu0 0
    %1259 = vmatpush1.bf16.msra.mxu0 0
    %1260 = vmatprep.subr.bf16.mxu0 0
    %1261 = vmatpush1.bf16.msra.mxu0 0
    %1262 = vmatprep.subr.bf16.mxu0 0
    %1263 = vmatpush1.bf16.msra.mxu0 0
    %1264 = vmatprep.subr.bf16.mxu0 0
    %1265 = vmatpush1.bf16.msra.mxu0 0
    %1266 = vmatprep.subr.bf16.mxu0 0
    %1267 = vmatpush1.bf16.msra.mxu0 0
    %1268 = vmatprep.subr.bf16.mxu0 0
    %1269 = vmatpush1.bf16.msra.mxu0 0
    %1270 = vmatprep.subr.bf16.mxu0 0
    %1271 = vmatpush1.bf16.msra.mxu0 0
    %1272 = vmatprep.mubr.bf16.mxu0 0
    %1273 = vmatmul.mubr.bf16.gmra.mrb[0].mxu0 %v1235
    %v1274 = vpop.f32.mrb[0].mxu0
    %v1275 = vadd.f32 0.0, %v1274
    %v1276 = vpop.f32.mrb[0].mxu0
    %v1277 = vpop.f32.mrb[0].mxu0
    %v1278 = vpop.f32.mrb[0].mxu0
    %1279 = vdwg.mxu0
    %v1280 = vpack.c.bf16 %v1275, %v1227
    %s1281 = scalar_lea.vmem [#allocation11], 8
    %v1282 = vld [vmem:[%s1281] sm:$0xf]
    %v1284 = vsel %vm501, %v1280, 0
    %v1287 = vsel %vm637, %v1282, 0
    %1289 = vmatprep.subr.bf16.mxu0 0
    %1290 = vmatpush1.bf16.msra.mxu0 %v1287
    %1291 = vmatprep.subr.bf16.mxu0 0
    %1292 = vmatpush1.bf16.msra.mxu0 0
    %1293 = vmatprep.subr.bf16.mxu0 0
    %1294 = vmatpush1.bf16.msra.mxu0 0
    %1295 = vmatprep.subr.bf16.mxu0 0
    %1296 = vmatpush1.bf16.msra.mxu0 0
    %1297 = vmatprep.subr.bf16.mxu0 0
    %1298 = vmatpush1.bf16.msra.mxu0 0
    %1299 = vmatprep.subr.bf16.mxu0 0
    %1300 = vmatpush1.bf16.msra.mxu0 0
    %1301 = vmatprep.subr.bf16.mxu0 0
    %1302 = vmatpush1.bf16.msra.mxu0 0
    %1303 = vmatprep.subr.bf16.mxu0 0
    %1304 = vmatpush1.bf16.msra.mxu0 0
    %1305 = vmatprep.subr.bf16.mxu0 0
    %1306 = vmatpush1.bf16.msra.mxu0 0
    %1307 = vmatprep.subr.bf16.mxu0 0
    %1308 = vmatpush1.bf16.msra.mxu0 0
    %1309 = vmatprep.subr.bf16.mxu0 0
    %1310 = vmatpush1.bf16.msra.mxu0 0
    %1311 = vmatprep.subr.bf16.mxu0 0
    %1312 = vmatpush1.bf16.msra.mxu0 0
    %1313 = vmatprep.subr.bf16.mxu0 0
    %1314 = vmatpush1.bf16.msra.mxu0 0
    %1315 = vmatprep.subr.bf16.mxu0 0
    %1316 = vmatpush1.bf16.msra.mxu0 0
    %1317 = vmatprep.subr.bf16.mxu0 0
    %1318 = vmatpush1.bf16.msra.mxu0 0
    %1319 = vmatprep.subr.bf16.mxu0 0
    %1320 = vmatpush1.bf16.msra.mxu0 0
    %1321 = vmatprep.mubr.bf16.mxu0 0
    %1322 = vmatmul.mubr.bf16.gmra.mrb[0].mxu0 %v1284
    %v1323 = vpop.f32.mrb[0].mxu0
    %v1324 = vadd.f32 0.0, %v1323
    %v1325 = vpop.f32.mrb[0].mxu0
    %v1326 = vpop.f32.mrb[0].mxu0
    %v1327 = vadd.f32 0.0, %v1326
    %v1328 = vpop.f32.mrb[0].mxu0
    %1329 = vdwg.mxu0
    %v1330 = vadd.f32 %v1050, %v1324
    %v1331 = vadd.f32 %v1053, %v1327
    %1332 = vrot.lane.b32.xlu0 %v495, 104
    %v1333 = vpop.permute.xlu0 %1332
    %1334 = vrot.lane.b32.xlu0 %v497, 104
    %v1335 = vpop.permute.xlu0 %1334
    %v1337 = vsel %vm501, %v1333, 0
    %v1340 = vsel %vm501, %v1335, 0
    %1342 = vmatprep.subr.bf16.mxu0 0
    %1343 = vmatpush1.bf16.xpose.msra.mxu0 %v1340
    %1344 = vmatprep.subr.bf16.mxu0 0
    %1345 = vmatpush1.bf16.xpose.msra.mxu0 0
    %1346 = vmatprep.subr.bf16.mxu0 0
    %1347 = vmatpush1.bf16.xpose.msra.mxu0 0
    %1348 = vmatprep.subr.bf16.mxu0 0
    %1349 = vmatpush1.bf16.xpose.msra.mxu0 0
    %1350 = vmatprep.subr.bf16.mxu0 0
    %1351 = vmatpush1.bf16.xpose.msra.mxu0 0
    %1352 = vmatprep.subr.bf16.mxu0 0
    %1353 = vmatpush1.bf16.xpose.msra.mxu0 0
    %1354 = vmatprep.subr.bf16.mxu0 0
    %1355 = vmatpush1.bf16.xpose.msra.mxu0 0
    %1356 = vmatprep.subr.bf16.mxu0 0
    %1357 = vmatpush1.bf16.xpose.msra.mxu0 0
    %1358 = vmatprep.subr.bf16.mxu0 0
    %1359 = vmatpush1.bf16.xpose.msra.mxu0 0
    %1360 = vmatprep.subr.bf16.mxu0 0
    %1361 = vmatpush1.bf16.xpose.msra.mxu0 0
    %1362 = vmatprep.subr.bf16.mxu0 0
    %1363 = vmatpush1.bf16.xpose.msra.mxu0 0
    %1364 = vmatprep.subr.bf16.mxu0 0
    %1365 = vmatpush1.bf16.xpose.msra.mxu0 0
    %1366 = vmatprep.subr.bf16.mxu0 0
    %1367 = vmatpush1.bf16.xpose.msra.mxu0 0
    %1368 = vmatprep.subr.bf16.mxu0 0
    %1369 = vmatpush1.bf16.xpose.msra.mxu0 0
    %1370 = vmatprep.subr.bf16.mxu0 0
    %1371 = vmatpush1.bf16.xpose.msra.mxu0 0
    %1372 = vmatprep.subr.bf16.mxu0 0
    %1373 = vmatpush1.bf16.xpose.msra.mxu0 0
    %1374 = vmatprep.mubr.bf16.mxu0 0
    %1375 = vmatmul.mubr.bf16.gmra.mrb[0].mxu0 %v1337
    %v1376 = vpop.f32.mrb[0].mxu0
    %v1377 = vadd.f32 0.0, %v1376
    %v1378 = vpop.f32.mrb[0].mxu0
    %v1379 = vpop.f32.mrb[0].mxu0
    %v1380 = vpop.f32.mrb[0].mxu0
    %1381 = vdwg.mxu0
    %1382 = vrot.lane.b32.xlu0 %v496, 104
    %v1383 = vpop.permute.xlu0 %1382
    %1384 = vrot.lane.b32.xlu0 %v498, 104
    %v1385 = vpop.permute.xlu0 %1384
    %v1387 = vsel %vm501, %v1383, 0
    %v1390 = vsel %vm501, %v1385, 0
    %1392 = vmatprep.subr.bf16.mxu0 0
    %1393 = vmatpush1.bf16.xpose.msra.mxu0 %v1390
    %1394 = vmatprep.subr.bf16.mxu0 0
    %1395 = vmatpush1.bf16.xpose.msra.mxu0 0
    %1396 = vmatprep.subr.bf16.mxu0 0
    %1397 = vmatpush1.bf16.xpose.msra.mxu0 0
    %1398 = vmatprep.subr.bf16.mxu0 0
    %1399 = vmatpush1.bf16.xpose.msra.mxu0 0
    %1400 = vmatprep.subr.bf16.mxu0 0
    %1401 = vmatpush1.bf16.xpose.msra.mxu0 0
    %1402 = vmatprep.subr.bf16.mxu0 0
    %1403 = vmatpush1.bf16.xpose.msra.mxu0 0
    %1404 = vmatprep.subr.bf16.mxu0 0
    %1405 = vmatpush1.bf16.xpose.msra.mxu0 0
    %1406 = vmatprep.subr.bf16.mxu0 0
    %1407 = vmatpush1.bf16.xpose.msra.mxu0 0
    %1408 = vmatprep.subr.bf16.mxu0 0
    %1409 = vmatpush1.bf16.xpose.msra.mxu0 0
    %1410 = vmatprep.subr.bf16.mxu0 0
    %1411 = vmatpush1.bf16.xpose.msra.mxu0 0
    %1412 = vmatprep.subr.bf16.mxu0 0
    %1413 = vmatpush1.bf16.xpose.msra.mxu0 0
    %1414 = vmatprep.subr.bf16.mxu0 0
    %1415 = vmatpush1.bf16.xpose.msra.mxu0 0
    %1416 = vmatprep.subr.bf16.mxu0 0
    %1417 = vmatpush1.bf16.xpose.msra.mxu0 0
    %1418 = vmatprep.subr.bf16.mxu0 0
    %1419 = vmatpush1.bf16.xpose.msra.mxu0 0
    %1420 = vmatprep.subr.bf16.mxu0 0
    %1421 = vmatpush1.bf16.xpose.msra.mxu0 0
    %1422 = vmatprep.subr.bf16.mxu0 0
    %1423 = vmatpush1.bf16.xpose.msra.mxu0 0
    %1424 = vmatprep.mubr.bf16.mxu0 0
    %1425 = vmatmul.mubr.bf16.gmra.mrb[0].mxu0 %v1387
    %v1426 = vpop.f32.mrb[0].mxu0
    %v1427 = vadd.f32 0.0, %v1426
    %v1428 = vpop.f32.mrb[0].mxu0
    %v1429 = vpop.f32.mrb[0].mxu0
    %v1430 = vpop.f32.mrb[0].mxu0
    %1431 = vdwg.mxu0
    %v1432 = vmul.f32 %v1377, 0.35355338
    %v1433 = vmul.f32 %v1427, 0.35355338
    %v1434 = vadd.f32 %v1432, %v601
    %v1435 = vadd.f32 %v1433, %v605
    %v1436 = vsel %vm501, %v1434, -inf
    %1437 = vmax.xlane.f32.xlu0 %v1436
    %v1438 = vpop.xlane.xlu0 %1437
    %v1439 = vsel %vm501, %v1435, -inf
    %1440 = vmax.xlane.f32.xlu0 %v1439
    %v1441 = vpop.xlane.xlu0 %1440
    %v1442 = vsub.f32 %v1434, %v1438
    %v1443 = vsub.f32 %v1435, %v1441
    %v1444 = vmul.f32 %v1442, 1.442695
    %v1445 = vpow.pop %v1444
    %v1446 = vmul.f32 %v1443, 1.442695
    %v1447 = vpow.pop %v1446
    %v1448 = vsel %vm501, %v1445, 0.0
    %1449 = vadd.xlane.f32.xlu0 %v1448
    %v1450 = vpop.xlane.xlu0 %1449
    %v1451 = vsel %vm501, %v1447, 0.0
    %1452 = vadd.xlane.f32.xlu0 %v1451
    %v1453 = vpop.xlane.xlu0 %1452
    %v1454 = vrcp.pop %v1450
    %v1455 = vrcp.pop %v1453
    %v1456 = vmul.f32 %v1445, %v1454
    %v1457 = vmul.f32 %v1447, %v1455
    %v1458 = vpack.c.bf16 %v1456, %v1456
    %v1459 = vpack.c.bf16 %v1457, %v1457
    %1460 = vrot.lane.b32.xlu0 %v499, 104
    %v1461 = vpop.permute.xlu0 %1460
    %v1463 = vsel %vm501, %v1458, 0
    %v1466 = vsel %vm637, %v1461, 0
    %1468 = vmatprep.subr.bf16.mxu0 0
    %1469 = vmatpush1.bf16.msra.mxu0 %v1466
    %1470 = vmatprep.subr.bf16.mxu0 0
    %1471 = vmatpush1.bf16.msra.mxu0 0
    %1472 = vmatprep.subr.bf16.mxu0 0
    %1473 = vmatpush1.bf16.msra.mxu0 0
    %1474 = vmatprep.subr.bf16.mxu0 0
    %1475 = vmatpush1.bf16.msra.mxu0 0
    %1476 = vmatprep.subr.bf16.mxu0 0
    %1477 = vmatpush1.bf16.msra.mxu0 0
    %1478 = vmatprep.subr.bf16.mxu0 0
    %1479 = vmatpush1.bf16.msra.mxu0 0
    %1480 = vmatprep.subr.bf16.mxu0 0
    %1481 = vmatpush1.bf16.msra.mxu0 0
    %1482 = vmatprep.subr.bf16.mxu0 0
    %1483 = vmatpush1.bf16.msra.mxu0 0
    %1484 = vmatprep.subr.bf16.mxu0 0
    %1485 = vmatpush1.bf16.msra.mxu0 0
    %1486 = vmatprep.subr.bf16.mxu0 0
    %1487 = vmatpush1.bf16.msra.mxu0 0
    %1488 = vmatprep.subr.bf16.mxu0 0
    %1489 = vmatpush1.bf16.msra.mxu0 0
    %1490 = vmatprep.subr.bf16.mxu0 0
    %1491 = vmatpush1.bf16.msra.mxu0 0
    %1492 = vmatprep.subr.bf16.mxu0 0
    %1493 = vmatpush1.bf16.msra.mxu0 0
    %1494 = vmatprep.subr.bf16.mxu0 0
    %1495 = vmatpush1.bf16.msra.mxu0 0
    %1496 = vmatprep.subr.bf16.mxu0 0
    %1497 = vmatpush1.bf16.msra.mxu0 0
    %1498 = vmatprep.subr.bf16.mxu0 0
    %1499 = vmatpush1.bf16.msra.mxu0 0
    %1500 = vmatprep.mubr.bf16.mxu0 0
    %1501 = vmatmul.mubr.bf16.gmra.mrb[0].mxu0 %v1463
    %v1502 = vpop.f32.mrb[0].mxu0
    %v1503 = vadd.f32 0.0, %v1502
    %v1504 = vpop.f32.mrb[0].mxu0
    %v1505 = vpop.f32.mrb[0].mxu0
    %v1506 = vpop.f32.mrb[0].mxu0
    %1507 = vdwg.mxu0
    %1508 = vrot.lane.b32.xlu0 %v500, 104
    %v1509 = vpop.permute.xlu0 %1508
    %v1511 = vsel %vm501, %v1459, 0
    %v1514 = vsel %vm637, %v1509, 0
    %1516 = vmatprep.subr.bf16.mxu0 0
    %1517 = vmatpush1.bf16.msra.mxu0 %v1514
    %1518 = vmatprep.subr.bf16.mxu0 0
    %1519 = vmatpush1.bf16.msra.mxu0 0
    %1520 = vmatprep.subr.bf16.mxu0 0
    %1521 = vmatpush1.bf16.msra.mxu0 0
    %1522 = vmatprep.subr.bf16.mxu0 0
    %1523 = vmatpush1.bf16.msra.mxu0 0
    %1524 = vmatprep.subr.bf16.mxu0 0
    %1525 = vmatpush1.bf16.msra.mxu0 0
    %1526 = vmatprep.subr.bf16.mxu0 0
    %1527 = vmatpush1.bf16.msra.mxu0 0
    %1528 = vmatprep.subr.bf16.mxu0 0
    %1529 = vmatpush1.bf16.msra.mxu0 0
    %1530 = vmatprep.subr.bf16.mxu0 0
    %1531 = vmatpush1.bf16.msra.mxu0 0
    %1532 = vmatprep.subr.bf16.mxu0 0
    %1533 = vmatpush1.bf16.msra.mxu0 0
    %1534 = vmatprep.subr.bf16.mxu0 0
    %1535 = vmatpush1.bf16.msra.mxu0 0
    %1536 = vmatprep.subr.bf16.mxu0 0
    %1537 = vmatpush1.bf16.msra.mxu0 0
    %1538 = vmatprep.subr.bf16.mxu0 0
    %1539 = vmatpush1.bf16.msra.mxu0 0
    %1540 = vmatprep.subr.bf16.mxu0 0
    %1541 = vmatpush1.bf16.msra.mxu0 0
    %1542 = vmatprep.subr.bf16.mxu0 0
    %1543 = vmatpush1.bf16.msra.mxu0 0
    %1544 = vmatprep.subr.bf16.mxu0 0
    %1545 = vmatpush1.bf16.msra.mxu0 0
    %1546 = vmatprep.subr.bf16.mxu0 0
    %1547 = vmatpush1.bf16.msra.mxu0 0
    %1548 = vmatprep.mubr.bf16.mxu0 0
    %1549 = vmatmul.mubr.bf16.gmra.mrb[0].mxu0 %v1511
    %v1550 = vpop.f32.mrb[0].mxu0
    %v1551 = vadd.f32 0.0, %v1550
    %v1552 = vpop.f32.mrb[0].mxu0
    %v1553 = vpop.f32.mrb[0].mxu0
    %v1554 = vpop.f32.mrb[0].mxu0
    %1555 = vdwg.mxu0
    %v1556 = vpack.c.bf16 %v1551, %v1503
    %s1557 = scalar_lea.vmem [#allocation11], 12
    %v1558 = vld [vmem:[%s1557] sm:$0xf]
    %v1560 = vsel %vm501, %v1556, 0
    %v1563 = vsel %vm637, %v1558, 0
    %1565 = vmatprep.subr.bf16.mxu0 0
    %1566 = vmatpush1.bf16.msra.mxu0 %v1563
    %1567 = vmatprep.subr.bf16.mxu0 0
    %1568 = vmatpush1.bf16.msra.mxu0 0
    %1569 = vmatprep.subr.bf16.mxu0 0
    %1570 = vmatpush1.bf16.msra.mxu0 0
    %1571 = vmatprep.subr.bf16.mxu0 0
    %1572 = vmatpush1.bf16.msra.mxu0 0
    %1573 = vmatprep.subr.bf16.mxu0 0
    %1574 = vmatpush1.bf16.msra.mxu0 0
    %1575 = vmatprep.subr.bf16.mxu0 0
    %1576 = vmatpush1.bf16.msra.mxu0 0
    %1577 = vmatprep.subr.bf16.mxu0 0
    %1578 = vmatpush1.bf16.msra.mxu0 0
    %1579 = vmatprep.subr.bf16.mxu0 0
    %1580 = vmatpush1.bf16.msra.mxu0 0
    %1581 = vmatprep.subr.bf16.mxu0 0
    %1582 = vmatpush1.bf16.msra.mxu0 0
    %1583 = vmatprep.subr.bf16.mxu0 0
    %1584 = vmatpush1.bf16.msra.mxu0 0
    %1585 = vmatprep.subr.bf16.mxu0 0
    %1586 = vmatpush1.bf16.msra.mxu0 0
    %1587 = vmatprep.subr.bf16.mxu0 0
    %1588 = vmatpush1.bf16.msra.mxu0 0
    %1589 = vmatprep.subr.bf16.mxu0 0
    %1590 = vmatpush1.bf16.msra.mxu0 0
    %1591 = vmatprep.subr.bf16.mxu0 0
    %1592 = vmatpush1.bf16.msra.mxu0 0
    %1593 = vmatprep.subr.bf16.mxu0 0
    %1594 = vmatpush1.bf16.msra.mxu0 0
    %1595 = vmatprep.subr.bf16.mxu0 0
    %1596 = vmatpush1.bf16.msra.mxu0 0
    %1597 = vmatprep.mubr.bf16.mxu0 0
    %1598 = vmatmul.mubr.bf16.gmra.mrb[0].mxu0 %v1560
    %v1599 = vpop.f32.mrb[0].mxu0
    %v1600 = vadd.f32 0.0, %v1599
    %v1601 = vpop.f32.mrb[0].mxu0
    %v1602 = vpop.f32.mrb[0].mxu0
    %v1603 = vadd.f32 0.0, %v1602
    %v1604 = vpop.f32.mrb[0].mxu0
    %1605 = vdwg.mxu0
    %v1606 = vadd.f32 %v1330, %v1600
    %v1607 = vadd.f32 %v1331, %v1603
    %v1608 = vld [vmem:[#allocation13] sm:$0x1]
    %v1610 = vlaneseq
    %v1611 = vshrl.u32 %v1610, 7
    %v1612 = vsub.s32 0, %v1611
    %v1613 = vrot.slane %v1608, %v1612
    %v1615 = vadd.f32 %v1606, %v1613
    %v1616 = vadd.f32 %v1607, %v1613
    %v1617 = vadd.f32 %v267, %v1615
    %v1618 = vadd.f32 %v268, %v1616
    %v1619 = vld [vmem:[#allocation14] sm:$0x1]
    %v1620 = vld [vmem:[#allocation16] sm:$0x1]
    %v1621 = vsel %vm322, %v1617, 0.0
    %1622 = vadd.xlane.f32.xlu0 %v1621
    %v1623 = vpop.xlane.xlu0 %1622
    %v1624 = vsel %vm322, %v1618, 0.0
    %1625 = vadd.xlane.f32.xlu0 %v1624
    %v1626 = vpop.xlane.xlu0 %1625
    %v1627 = vrcp.pop 32.0
    %v1628 = vmul.f32 %v1623, %v1627
    %v1629 = vmul.f32 %v1626, %v1627
    %v1630 = vsub.f32 %v1617, %v1628
    %v1631 = vsub.f32 %v1618, %v1629
    %v1632 = vmul.f32 %v1630, %v1630
    %v1633 = vmul.f32 %v1631, %v1631
    %v1634 = vsel %vm322, %v1632, 0.0
    %1635 = vadd.xlane.f32.xlu0 %v1634
    %v1636 = vpop.xlane.xlu0 %1635
    %v1637 = vsel %vm322, %v1633, 0.0
    %1638 = vadd.xlane.f32.xlu0 %v1637
    %v1639 = vpop.xlane.xlu0 %1638
    %v1640 = vmul.f32 %v1636, %v1627
    %v1641 = vmul.f32 %v1639, %v1627
    %v1642 = vadd.f32 %v1640, 1e-05
    %v1643 = vadd.f32 %v1641, 1e-05
    %v1644 = vrsqrt.pop %v1642
    %v1645 = vrsqrt.pop %v1643
    %v1646 = vmul.f32 %v1630, %v1644
    %v1647 = vmul.f32 %v1631, %v1645
    %v1649 = vlaneseq
    %v1650 = vshrl.u32 %v1649, 7
    %v1651 = vsub.s32 0, %v1650
    %v1652 = vrot.slane %v1619, %v1651
    %v1654 = vmul.f32 %v1646, %v1652
    %v1655 = vmul.f32 %v1647, %v1652
    %v1657 = vlaneseq
    %v1658 = vshrl.u32 %v1657, 7
    %v1659 = vsub.s32 0, %v1658
    %v1660 = vrot.slane %v1620, %v1659
    %v1662 = vadd.f32 %v1654, %v1660
    %v1663 = vadd.f32 %v1655, %v1660
    %v1664 = vpack.c.bf16 %v1663, %v1662
    %v1665 = vld [vmem:[#allocation17] sm:$0xf]
    %v1666 = vld [vmem:[#allocation17 + $0x4] sm:$0xf]
    %v1667 = vld [vmem:[#allocation17 + $0x8] sm:$0xf]
    %v1668 = vld [vmem:[#allocation17 + $0xc] sm:$0xf]
    %v1669 = vld [vmem:[#allocation19] sm:$0x1]
    %v1671 = vlaneseq
    %v1672 = vshrl.u32 %v1671, 7
    %v1673 = vsub.s32 0, %v1672
    %v1674 = vrot.slane %v1669, %v1673
    %v1680 = vunpack.c.l.b16 %v1665
    %v1681 = vunpack.c.l.b16 %v1666
    %v1682 = vunpack.c.l.b16 %v1667
    %v1683 = vunpack.c.l.b16 %v1668
    %v1684 = vpack.c.b16 %v1681, %v1680
    %v1685 = vpack.c.b16 %v1683, %v1682
    %v1689 = vsel %vm322, %v1664, 0
    %1691 = vmatprep.subr.bf16.mxu0 0
    %1692 = vmatpush1.bf16.msra.mxu0 %v1684
    %1693 = vmatprep.subr.bf16.mxu0 0
    %1694 = vmatpush1.bf16.msra.mxu0 %v1685
    %1695 = vmatprep.subr.bf16.mxu0 0
    %1696 = vmatpush1.bf16.msra.mxu0 0
    %1697 = vmatprep.subr.bf16.mxu0 0
    %1698 = vmatpush1.bf16.msra.mxu0 0
    %1699 = vmatprep.subr.bf16.mxu0 0
    %1700 = vmatpush1.bf16.msra.mxu0 0
    %1701 = vmatprep.subr.bf16.mxu0 0
    %1702 = vmatpush1.bf16.msra.mxu0 0
    %1703 = vmatprep.subr.bf16.mxu0 0
    %1704 = vmatpush1.bf16.msra.mxu0 0
    %1705 = vmatprep.subr.bf16.mxu0 0
    %1706 = vmatpush1.bf16.msra.mxu0 0
    %1707 = vmatprep.subr.bf16.mxu0 0
    %1708 = vmatpush1.bf16.msra.mxu0 0
    %1709 = vmatprep.subr.bf16.mxu0 0
    %1710 = vmatpush1.bf16.msra.mxu0 0
    %1711 = vmatprep.subr.bf16.mxu0 0
    %1712 = vmatpush1.bf16.msra.mxu0 0
    %1713 = vmatprep.subr.bf16.mxu0 0
    %1714 = vmatpush1.bf16.msra.mxu0 0
    %1715 = vmatprep.subr.bf16.mxu0 0
    %1716 = vmatpush1.bf16.msra.mxu0 0
    %1717 = vmatprep.subr.bf16.mxu0 0
    %1718 = vmatpush1.bf16.msra.mxu0 0
    %1719 = vmatprep.subr.bf16.mxu0 0
    %1720 = vmatpush1.bf16.msra.mxu0 0
    %1721 = vmatprep.subr.bf16.mxu0 0
    %1722 = vmatpush1.bf16.msra.mxu0 0
    %1723 = vmatprep.mubr.bf16.mxu0 0
    %1724 = vmatmul.mubr.bf16.gmra.mrb[0].mxu0 %v1689
    %v1725 = vpop.f32.mrb[0].mxu0
    %v1726 = vadd.f32 %v1674, %v1725
    %v1727 = vpop.f32.mrb[0].mxu0
    %v1728 = vpop.f32.mrb[0].mxu0
    %v1729 = vadd.f32 %v1674, %v1728
    %v1730 = vpop.f32.mrb[0].mxu0
    %1731 = vdwg.mxu0
    %v1732 = vmul.f32 %v1726, %v1726
    %v1733 = vmul.f32 %v1729, %v1729
    %v1734 = vmul.f32 %v1726, %v1732
    %v1735 = vmul.f32 %v1729, %v1733
    %v1736 = vmul.f32 %v1734, 0.044715
    %v1737 = vmul.f32 %v1735, 0.044715
    %v1738 = vadd.f32 %v1726, %v1736
    %v1739 = vadd.f32 %v1729, %v1737
    %v1740 = vmul.f32 %v1738, 0.7978846
    %v1741 = vmul.f32 %v1739, 0.7978846
    %v1742 = vtanh.pop %v1740
    %v1743 = vtanh.pop %v1741
    %v1744 = vadd.f32 %v1742, 1.0
    %v1745 = vadd.f32 %v1743, 1.0
    %v1746 = vmul.f32 %v1744, 0.5
    %v1747 = vmul.f32 %v1745, 0.5
    %v1748 = vmul.f32 %v1726, %v1746
    %v1749 = vmul.f32 %v1729, %v1747
    %v1750 = vpack.c.bf16 %v1749, %v1748
    %v1751 = vld [vmem:[%s14] sm:$0xf]
    %v1752 = vld [vmem:[%s14 + $0x4] sm:$0xf]
    %v1753 = vld [vmem:[%s14 + $0x8] sm:$0xf]
    %v1754 = vld [vmem:[%s14 + $0xc] sm:$0xf]
    %v1755 = vld [vmem:[%s14 + $0x10] sm:$0xf]
    %v1756 = vld [vmem:[%s14 + $0x14] sm:$0xf]
    %v1757 = vld [vmem:[%s14 + $0x18] sm:$0xf]
    %v1758 = vld [vmem:[%s14 + $0x1c] sm:$0xf]
    %v1759 = vld [vmem:[#allocation20] sm:$0x1]
    %v1761 = vlaneseq
    %v1762 = vshrl.u32 %v1761, 7
    %v1763 = vsub.s32 0, %v1762
    %v1764 = vrot.slane %v1759, %v1763
    %v1774 = vunpack.c.l.b16 %v1751
    %v1775 = vunpack.c.l.b16 %v1752
    %v1776 = vunpack.c.l.b16 %v1753
    %v1777 = vunpack.c.l.b16 %v1754
    %v1778 = vunpack.c.l.b16 %v1755
    %v1779 = vunpack.c.l.b16 %v1756
    %v1780 = vunpack.c.l.b16 %v1757
    %v1781 = vunpack.c.l.b16 %v1758
    %v1782 = vpack.c.b16 %v1775, %v1774
    %v1783 = vpack.c.b16 %v1777, %v1776
    %v1784 = vpack.c.b16 %v1779, %v1778
    %v1785 = vpack.c.b16 %v1781, %v1780
    %vm1790 = vcmask 523264
    %v1792 = vsel %vm1790, %v1750, 0
    %1794 = vmatprep.subr.bf16.mxu0 0
    %1795 = vmatpush1.bf16.msra.mxu0 %v1782
    %1796 = vmatprep.subr.bf16.mxu0 0
    %1797 = vmatpush1.bf16.msra.mxu0 %v1783
    %1798 = vmatprep.subr.bf16.mxu0 0
    %1799 = vmatpush1.bf16.msra.mxu0 %v1784
    %1800 = vmatprep.subr.bf16.mxu0 0
    %1801 = vmatpush1.bf16.msra.mxu0 %v1785
    %1802 = vmatprep.subr.bf16.mxu0 0
    %1803 = vmatpush1.bf16.msra.mxu0 0
    %1804 = vmatprep.subr.bf16.mxu0 0
    %1805 = vmatpush1.bf16.msra.mxu0 0
    %1806 = vmatprep.subr.bf16.mxu0 0
    %1807 = vmatpush1.bf16.msra.mxu0 0
    %1808 = vmatprep.subr.bf16.mxu0 0
    %1809 = vmatpush1.bf16.msra.mxu0 0
    %1810 = vmatprep.subr.bf16.mxu0 0
    %1811 = vmatpush1.bf16.msra.mxu0 0
    %1812 = vmatprep.subr.bf16.mxu0 0
    %1813 = vmatpush1.bf16.msra.mxu0 0
    %1814 = vmatprep.subr.bf16.mxu0 0
    %1815 = vmatpush1.bf16.msra.mxu0 0
    %1816 = vmatprep.subr.bf16.mxu0 0
    %1817 = vmatpush1.bf16.msra.mxu0 0
    %1818 = vmatprep.subr.bf16.mxu0 0
    %1819 = vmatpush1.bf16.msra.mxu0 0
    %1820 = vmatprep.subr.bf16.mxu0 0
    %1821 = vmatpush1.bf16.msra.mxu0 0
    %1822 = vmatprep.subr.bf16.mxu0 0
    %1823 = vmatpush1.bf16.msra.mxu0 0
    %1824 = vmatprep.subr.bf16.mxu0 0
    %1825 = vmatpush1.bf16.msra.mxu0 0
    %1826 = vmatprep.mubr.bf16.mxu0 0
    %1827 = vmatmul.mubr.bf16.gmra.mrb[0].mxu0 %v1792
    %v1828 = vpop.f32.mrb[0].mxu0
    %v1829 = vadd.f32 %v1764, %v1828
    %v1830 = vpop.f32.mrb[0].mxu0
    %v1831 = vpop.f32.mrb[0].mxu0
    %v1832 = vadd.f32 %v1764, %v1831
    %v1833 = vpop.f32.mrb[0].mxu0
    %1834 = vdwg.mxu0
    %v1835 = vadd.f32 %v1662, %v1829
    %v1836 = vadd.f32 %v1663, %v1832
    %v1837 = vld [vmem:[#allocation22] sm:$0x1]
    %v1838 = vld [vmem:[#allocation23] sm:$0x1]
    %v1839 = vsel %vm322, %v1835, 0.0
    %1840 = vadd.xlane.f32.xlu0 %v1839
    %v1841 = vpop.xlane.xlu0 %1840
    %v1842 = vsel %vm322, %v1836, 0.0
    %1843 = vadd.xlane.f32.xlu0 %v1842
    %v1844 = vpop.xlane.xlu0 %1843
    %v1845 = vmul.f32 %v1841, %v1627
    %v1846 = vmul.f32 %v1844, %v1627
    %v1847 = vsub.f32 %v1835, %v1845
    %v1848 = vsub.f32 %v1836, %v1846
    %v1849 = vmul.f32 %v1847, %v1847
    %v1850 = vmul.f32 %v1848, %v1848
    %v1851 = vsel %vm322, %v1849, 0.0
    %1852 = vadd.xlane.f32.xlu0 %v1851
    %v1853 = vpop.xlane.xlu0 %1852
    %v1854 = vsel %vm322, %v1850, 0.0
    %1855 = vadd.xlane.f32.xlu0 %v1854
    %v1856 = vpop.xlane.xlu0 %1855
    %v1857 = vmul.f32 %v1853, %v1627
    %v1858 = vmul.f32 %v1856, %v1627
    %v1859 = vadd.f32 %v1857, 1e-05
    %v1860 = vadd.f32 %v1858, 1e-05
    %v1861 = vrsqrt.pop %v1859
    %v1862 = vrsqrt.pop %v1860
    %v1863 = vmul.f32 %v1847, %v1861
    %v1864 = vmul.f32 %v1848, %v1862
    %v1866 = vlaneseq
    %v1867 = vshrl.u32 %v1866, 7
    %v1868 = vsub.s32 0, %v1867
    %v1869 = vrot.slane %v1837, %v1868
    %v1871 = vmul.f32 %v1863, %v1869
    %v1872 = vmul.f32 %v1864, %v1869
    %v1874 = vlaneseq
    %v1875 = vshrl.u32 %v1874, 7
    %v1876 = vsub.s32 0, %v1875
    %v1877 = vrot.slane %v1838, %v1876
    %v1879 = vadd.f32 %v1871, %v1877
    %v1880 = vadd.f32 %v1872, %v1877
    %v1881 = vpack.c.bf16 %v1880, %v1879
    %s1882 = scalar_lea.vmem %s2, 16
    %v1883 = vld [vmem:[%s1882] sm:$0xf]
    %v1884 = vld [vmem:[%s1882 + $0x4] sm:$0xf]
    %v1885 = vld [vmem:[%s1882 + $0x8] sm:$0xf]
    %v1886 = vld [vmem:[%s1882 + $0xc] sm:$0xf]
    %s1887 = scalar_lea.vmem [#allocation7], 1
    %v1888 = vld [vmem:[%s1887] sm:$0x1]
    %v1890 = vlaneseq
    %v1891 = vshrl.u32 %v1890, 7
    %v1892 = vsub.s32 0, %v1891
    %v1893 = vrot.slane %v1888, %v1892
    %v1899 = vunpack.c.l.b16 %v1883
    %v1900 = vunpack.c.l.b16 %v1884
    %v1901 = vunpack.c.l.b16 %v1885
    %v1902 = vunpack.c.l.b16 %v1886
    %v1903 = vpack.c.b16 %v1900, %v1899
    %v1904 = vpack.c.b16 %v1902, %v1901
    %v1908 = vsel %vm322, %v1881, 0
    %1910 = vmatprep.subr.bf16.mxu0 0
    %1911 = vmatpush1.bf16.msra.mxu0 %v1903
    %1912 = vmatprep.subr.bf16.mxu0 0
    %1913 = vmatpush1.bf16.msra.mxu0 %v1904
    %1914 = vmatprep.subr.bf16.mxu0 0
    %1915 = vmatpush1.bf16.msra.mxu0 0
    %1916 = vmatprep.subr.bf16.mxu0 0
    %1917 = vmatpush1.bf16.msra.mxu0 0
    %1918 = vmatprep.subr.bf16.mxu0 0
    %1919 = vmatpush1.bf16.msra.mxu0 0
    %1920 = vmatprep.subr.bf16.mxu0 0
    %1921 = vmatpush1.bf16.msra.mxu0 0
    %1922 = vmatprep.subr.bf16.mxu0 0
    %1923 = vmatpush1.bf16.msra.mxu0 0
    %1924 = vmatprep.subr.bf16.mxu0 0
    %1925 = vmatpush1.bf16.msra.mxu0 0
    %1926 = vmatprep.subr.bf16.mxu0 0
    %1927 = vmatpush1.bf16.msra.mxu0 0
    %1928 = vmatprep.subr.bf16.mxu0 0
    %1929 = vmatpush1.bf16.msra.mxu0 0
    %1930 = vmatprep.subr.bf16.mxu0 0
    %1931 = vmatpush1.bf16.msra.mxu0 0
    %1932 = vmatprep.subr.bf16.mxu0 0
    %1933 = vmatpush1.bf16.msra.mxu0 0
    %1934 = vmatprep.subr.bf16.mxu0 0
    %1935 = vmatpush1.bf16.msra.mxu0 0
    %1936 = vmatprep.subr.bf16.mxu0 0
    %1937 = vmatpush1.bf16.msra.mxu0 0
    %1938 = vmatprep.subr.bf16.mxu0 0
    %1939 = vmatpush1.bf16.msra.mxu0 0
    %1940 = vmatprep.subr.bf16.mxu0 0
    %1941 = vmatpush1.bf16.msra.mxu0 0
    %1942 = vmatprep.mubr.bf16.mxu0 0
    %1943 = vmatmul.mubr.bf16.gmra.mrb[0].mxu0 %v1908
    %v1944 = vpop.f32.mrb[0].mxu0
    %v1945 = vadd.f32 %v1893, %v1944
    %v1946 = vpop.f32.mrb[0].mxu0
    %v1947 = vpop.f32.mrb[0].mxu0
    %v1948 = vadd.f32 %v1893, %v1947
    %v1949 = vpop.f32.mrb[0].mxu0
    %1950 = vdwg.mxu0
    %s1951 = scalar_lea.vmem %s4, 16
    %v1952 = vld [vmem:[%s1951] sm:$0xf]
    %v1953 = vld [vmem:[%s1951 + $0x4] sm:$0xf]
    %v1954 = vld [vmem:[%s1951 + $0x8] sm:$0xf]
    %v1955 = vld [vmem:[%s1951 + $0xc] sm:$0xf]
    %s1956 = scalar_lea.vmem [#allocation8], 1
    %v1957 = vld [vmem:[%s1956] sm:$0x1]
    %v1959 = vlaneseq
    %v1960 = vshrl.u32 %v1959, 7
    %v1961 = vsub.s32 0, %v1960
    %v1962 = vrot.slane %v1957, %v1961
    %v1968 = vunpack.c.l.b16 %v1952
    %v1969 = vunpack.c.l.b16 %v1953
    %v1970 = vunpack.c.l.b16 %v1954
    %v1971 = vunpack.c.l.b16 %v1955
    %v1972 = vpack.c.b16 %v1969, %v1968
    %v1973 = vpack.c.b16 %v1971, %v1970
    %1976 = vmatprep.subr.bf16.mxu0 0
    %1977 = vmatpush1.bf16.msra.mxu0 %v1972
    %1978 = vmatprep.subr.bf16.mxu0 0
    %1979 = vmatpush1.bf16.msra.mxu0 %v1973
    %1980 = vmatprep.subr.bf16.mxu0 0
    %1981 = vmatpush1.bf16.msra.mxu0 0
    %1982 = vmatprep.subr.bf16.mxu0 0
    %1983 = vmatpush1.bf16.msra.mxu0 0
    %1984 = vmatprep.subr.bf16.mxu0 0
    %1985 = vmatpush1.bf16.msra.mxu0 0
    %1986 = vmatprep.subr.bf16.mxu0 0
    %1987 = vmatpush1.bf16.msra.mxu0 0
    %1988 = vmatprep.subr.bf16.mxu0 0
    %1989 = vmatpush1.bf16.msra.mxu0 0
    %1990 = vmatprep.subr.bf16.mxu0 0
    %1991 = vmatpush1.bf16.msra.mxu0 0
    %1992 = vmatprep.subr.bf16.mxu0 0
    %1993 = vmatpush1.bf16.msra.mxu0 0
    %1994 = vmatprep.subr.bf16.mxu0 0
    %1995 = vmatpush1.bf16.msra.mxu0 0
    %1996 = vmatprep.subr.bf16.mxu0 0
    %1997 = vmatpush1.bf16.msra.mxu0 0
    %1998 = vmatprep.subr.bf16.mxu0 0
    %1999 = vmatpush1.bf16.msra.mxu0 0
    %2000 = vmatprep.subr.bf16.mxu0 0
    %2001 = vmatpush1.bf16.msra.mxu0 0
    %2002 = vmatprep.subr.bf16.mxu0 0
    %2003 = vmatpush1.bf16.msra.mxu0 0
    %2004 = vmatprep.subr.bf16.mxu0 0
    %2005 = vmatpush1.bf16.msra.mxu0 0
    %2006 = vmatprep.subr.bf16.mxu0 0
    %2007 = vmatpush1.bf16.msra.mxu0 0
    %2008 = vmatprep.mubr.bf16.mxu0 0
    %2009 = vmatmul.mubr.bf16.gmra.mrb[0].mxu0 %v1908
    %v2010 = vpop.f32.mrb[0].mxu0
    %v2011 = vadd.f32 %v1962, %v2010
    %v2012 = vpop.f32.mrb[0].mxu0
    %v2013 = vpop.f32.mrb[0].mxu0
    %v2014 = vadd.f32 %v1962, %v2013
    %v2015 = vpop.f32.mrb[0].mxu0
    %2016 = vdwg.mxu0
    %s2017 = scalar_lea.vmem %s6, 16
    %v2018 = vld [vmem:[%s2017] sm:$0xf]
    %v2019 = vld [vmem:[%s2017 + $0x4] sm:$0xf]
    %v2020 = vld [vmem:[%s2017 + $0x8] sm:$0xf]
    %v2021 = vld [vmem:[%s2017 + $0xc] sm:$0xf]
    %s2022 = scalar_lea.vmem [#allocation10], 1
    %v2023 = vld [vmem:[%s2022] sm:$0x1]
    %v2025 = vlaneseq
    %v2026 = vshrl.u32 %v2025, 7
    %v2027 = vsub.s32 0, %v2026
    %v2028 = vrot.slane %v2023, %v2027
    %v2034 = vunpack.c.l.b16 %v2018
    %v2035 = vunpack.c.l.b16 %v2019
    %v2036 = vunpack.c.l.b16 %v2020
    %v2037 = vunpack.c.l.b16 %v2021
    %v2038 = vpack.c.b16 %v2035, %v2034
    %v2039 = vpack.c.b16 %v2037, %v2036
    %2042 = vmatprep.subr.bf16.mxu0 0
    %2043 = vmatpush1.bf16.msra.mxu0 %v2038
    %2044 = vmatprep.subr.bf16.mxu0 0
    %2045 = vmatpush1.bf16.msra.mxu0 %v2039
    %2046 = vmatprep.subr.bf16.mxu0 0
    %2047 = vmatpush1.bf16.msra.mxu0 0
    %2048 = vmatprep.subr.bf16.mxu0 0
    %2049 = vmatpush1.bf16.msra.mxu0 0
    %2050 = vmatprep.subr.bf16.mxu0 0
    %2051 = vmatpush1.bf16.msra.mxu0 0
    %2052 = vmatprep.subr.bf16.mxu0 0
    %2053 = vmatpush1.bf16.msra.mxu0 0
    %2054 = vmatprep.subr.bf16.mxu0 0
    %2055 = vmatpush1.bf16.msra.mxu0 0
    %2056 = vmatprep.subr.bf16.mxu0 0
    %2057 = vmatpush1.bf16.msra.mxu0 0
    %2058 = vmatprep.subr.bf16.mxu0 0
    %2059 = vmatpush1.bf16.msra.mxu0 0
    %2060 = vmatprep.subr.bf16.mxu0 0
    %2061 = vmatpush1.bf16.msra.mxu0 0
    %2062 = vmatprep.subr.bf16.mxu0 0
    %2063 = vmatpush1.bf16.msra.mxu0 0
    %2064 = vmatprep.subr.bf16.mxu0 0
    %2065 = vmatpush1.bf16.msra.mxu0 0
    %2066 = vmatprep.subr.bf16.mxu0 0
    %2067 = vmatpush1.bf16.msra.mxu0 0
    %2068 = vmatprep.subr.bf16.mxu0 0
    %2069 = vmatpush1.bf16.msra.mxu0 0
    %2070 = vmatprep.subr.bf16.mxu0 0
    %2071 = vmatpush1.bf16.msra.mxu0 0
    %2072 = vmatprep.subr.bf16.mxu0 0
    %2073 = vmatpush1.bf16.msra.mxu0 0
    %2074 = vmatprep.mubr.bf16.mxu0 0
    %2075 = vmatmul.mubr.bf16.gmra.mrb[0].mxu0 %v1908
    %v2076 = vpop.f32.mrb[0].mxu0
    %v2077 = vadd.f32 %v2028, %v2076
    %v2078 = vpop.f32.mrb[0].mxu0
    %v2079 = vpop.f32.mrb[0].mxu0
    %v2080 = vadd.f32 %v2028, %v2079
    %v2081 = vpop.f32.mrb[0].mxu0
    %2082 = vdwg.mxu0
    %v2083 = vpack.c.bf16 %v1945, %v1945
    %v2084 = vpack.c.bf16 %v1948, %v1948
    %v2085 = vpack.c.bf16 %v2011, %v2011
    %v2086 = vpack.c.bf16 %v2014, %v2014
    %v2087 = vpack.c.bf16 %v2077, %v2077
    %v2088 = vpack.c.bf16 %v2080, %v2080
    %v2090 = vsel %vm501, %v2083, 0
    %v2093 = vsel %vm501, %v2085, 0
    %2095 = vmatprep.subr.bf16.mxu0 0
    %2096 = vmatpush1.bf16.xpose.msra.mxu0 %v2093
    %2097 = vmatprep.subr.bf16.mxu0 0
    %2098 = vmatpush1.bf16.xpose.msra.mxu0 0
    %2099 = vmatprep.subr.bf16.mxu0 0
    %2100 = vmatpush1.bf16.xpose.msra.mxu0 0
    %2101 = vmatprep.subr.bf16.mxu0 0
    %2102 = vmatpush1.bf16.xpose.msra.mxu0 0
    %2103 = vmatprep.subr.bf16.mxu0 0
    %2104 = vmatpush1.bf16.xpose.msra.mxu0 0
    %2105 = vmatprep.subr.bf16.mxu0 0
    %2106 = vmatpush1.bf16.xpose.msra.mxu0 0
    %2107 = vmatprep.subr.bf16.mxu0 0
    %2108 = vmatpush1.bf16.xpose.msra.mxu0 0
    %2109 = vmatprep.subr.bf16.mxu0 0
    %2110 = vmatpush1.bf16.xpose.msra.mxu0 0
    %2111 = vmatprep.subr.bf16.mxu0 0
    %2112 = vmatpush1.bf16.xpose.msra.mxu0 0
    %2113 = vmatprep.subr.bf16.mxu0 0
    %2114 = vmatpush1.bf16.xpose.msra.mxu0 0
    %2115 = vmatprep.subr.bf16.mxu0 0
    %2116 = vmatpush1.bf16.xpose.msra.mxu0 0
    %2117 = vmatprep.subr.bf16.mxu0 0
    %2118 = vmatpush1.bf16.xpose.msra.mxu0 0
    %2119 = vmatprep.subr.bf16.mxu0 0
    %2120 = vmatpush1.bf16.xpose.msra.mxu0 0
    %2121 = vmatprep.subr.bf16.mxu0 0
    %2122 = vmatpush1.bf16.xpose.msra.mxu0 0
    %2123 = vmatprep.subr.bf16.mxu0 0
    %2124 = vmatpush1.bf16.xpose.msra.mxu0 0
    %2125 = vmatprep.subr.bf16.mxu0 0
    %2126 = vmatpush1.bf16.xpose.msra.mxu0 0
    %2127 = vmatprep.mubr.bf16.mxu0 0
    %2128 = vmatmul.mubr.bf16.gmra.mrb[0].mxu0 %v2090
    %v2129 = vpop.f32.mrb[0].mxu0
    %v2130 = vadd.f32 0.0, %v2129
    %v2131 = vpop.f32.mrb[0].mxu0
    %v2132 = vpop.f32.mrb[0].mxu0
    %v2133 = vpop.f32.mrb[0].mxu0
    %2134 = vdwg.mxu0
    %v2136 = vsel %vm501, %v2084, 0
    %v2139 = vsel %vm501, %v2086, 0
    %2141 = vmatprep.subr.bf16.mxu0 0
    %2142 = vmatpush1.bf16.xpose.msra.mxu0 %v2139
    %2143 = vmatprep.subr.bf16.mxu0 0
    %2144 = vmatpush1.bf16.xpose.msra.mxu0 0
    %2145 = vmatprep.subr.bf16.mxu0 0
    %2146 = vmatpush1.bf16.xpose.msra.mxu0 0
    %2147 = vmatprep.subr.bf16.mxu0 0
    %2148 = vmatpush1.bf16.xpose.msra.mxu0 0
    %2149 = vmatprep.subr.bf16.mxu0 0
    %2150 = vmatpush1.bf16.xpose.msra.mxu0 0
    %2151 = vmatprep.subr.bf16.mxu0 0
    %2152 = vmatpush1.bf16.xpose.msra.mxu0 0
    %2153 = vmatprep.subr.bf16.mxu0 0
    %2154 = vmatpush1.bf16.xpose.msra.mxu0 0
    %2155 = vmatprep.subr.bf16.mxu0 0
    %2156 = vmatpush1.bf16.xpose.msra.mxu0 0
    %2157 = vmatprep.subr.bf16.mxu0 0
    %2158 = vmatpush1.bf16.xpose.msra.mxu0 0
    %2159 = vmatprep.subr.bf16.mxu0 0
    %2160 = vmatpush1.bf16.xpose.msra.mxu0 0
    %2161 = vmatprep.subr.bf16.mxu0 0
    %2162 = vmatpush1.bf16.xpose.msra.mxu0 0
    %2163 = vmatprep.subr.bf16.mxu0 0
    %2164 = vmatpush1.bf16.xpose.msra.mxu0 0
    %2165 = vmatprep.subr.bf16.mxu0 0
    %2166 = vmatpush1.bf16.xpose.msra.mxu0 0
    %2167 = vmatprep.subr.bf16.mxu0 0
    %2168 = vmatpush1.bf16.xpose.msra.mxu0 0
    %2169 = vmatprep.subr.bf16.mxu0 0
    %2170 = vmatpush1.bf16.xpose.msra.mxu0 0
    %2171 = vmatprep.subr.bf16.mxu0 0
    %2172 = vmatpush1.bf16.xpose.msra.mxu0 0
    %2173 = vmatprep.mubr.bf16.mxu0 0
    %2174 = vmatmul.mubr.bf16.gmra.mrb[0].mxu0 %v2136
    %v2175 = vpop.f32.mrb[0].mxu0
    %v2176 = vadd.f32 0.0, %v2175
    %v2177 = vpop.f32.mrb[0].mxu0
    %v2178 = vpop.f32.mrb[0].mxu0
    %v2179 = vpop.f32.mrb[0].mxu0
    %2180 = vdwg.mxu0
    %v2181 = vmul.f32 %v2130, 0.35355338
    %v2182 = vmul.f32 %v2176, 0.35355338
    %v2183 = vadd.f32 %v2181, %v601
    %v2184 = vadd.f32 %v2182, %v605
    %v2185 = vsel %vm501, %v2183, -inf
    %2186 = vmax.xlane.f32.xlu0 %v2185
    %v2187 = vpop.xlane.xlu0 %2186
    %v2188 = vsel %vm501, %v2184, -inf
    %2189 = vmax.xlane.f32.xlu0 %v2188
    %v2190 = vpop.xlane.xlu0 %2189
    %v2191 = vsub.f32 %v2183, %v2187
    %v2192 = vsub.f32 %v2184, %v2190
    %v2193 = vmul.f32 %v2191, 1.442695
    %v2194 = vpow.pop %v2193
    %v2195 = vmul.f32 %v2192, 1.442695
    %v2196 = vpow.pop %v2195
    %v2197 = vsel %vm501, %v2194, 0.0
    %2198 = vadd.xlane.f32.xlu0 %v2197
    %v2199 = vpop.xlane.xlu0 %2198
    %v2200 = vsel %vm501, %v2196, 0.0
    %2201 = vadd.xlane.f32.xlu0 %v2200
    %v2202 = vpop.xlane.xlu0 %2201
    %v2203 = vrcp.pop %v2199
    %v2204 = vrcp.pop %v2202
    %v2205 = vmul.f32 %v2194, %v2203
    %v2206 = vmul.f32 %v2196, %v2204
    %v2207 = vpack.c.bf16 %v2205, %v2205
    %v2208 = vpack.c.bf16 %v2206, %v2206
    %v2210 = vsel %vm501, %v2207, 0
    %v2213 = vsel %vm637, %v2087, 0
    %2215 = vmatprep.subr.bf16.mxu0 0
    %2216 = vmatpush1.bf16.msra.mxu0 %v2213
    %2217 = vmatprep.subr.bf16.mxu0 0
    %2218 = vmatpush1.bf16.msra.mxu0 0
    %2219 = vmatprep.subr.bf16.mxu0 0
    %2220 = vmatpush1.bf16.msra.mxu0 0
    %2221 = vmatprep.subr.bf16.mxu0 0
    %2222 = vmatpush1.bf16.msra.mxu0 0
    %2223 = vmatprep.subr.bf16.mxu0 0
    %2224 = vmatpush1.bf16.msra.mxu0 0
    %2225 = vmatprep.subr.bf16.mxu0 0
    %2226 = vmatpush1.bf16.msra.mxu0 0
    %2227 = vmatprep.subr.bf16.mxu0 0
    %2228 = vmatpush1.bf16.msra.mxu0 0
    %2229 = vmatprep.subr.bf16.mxu0 0
    %2230 = vmatpush1.bf16.msra.mxu0 0
    %2231 = vmatprep.subr.bf16.mxu0 0
    %2232 = vmatpush1.bf16.msra.mxu0 0
    %2233 = vmatprep.subr.bf16.mxu0 0
    %2234 = vmatpush1.bf16.msra.mxu0 0
    %2235 = vmatprep.subr.bf16.mxu0 0
    %2236 = vmatpush1.bf16.msra.mxu0 0
    %2237 = vmatprep.subr.bf16.mxu0 0
    %2238 = vmatpush1.bf16.msra.mxu0 0
    %2239 = vmatprep.subr.bf16.mxu0 0
    %2240 = vmatpush1.bf16.msra.mxu0 0
    %2241 = vmatprep.subr.bf16.mxu0 0
    %2242 = vmatpush1.bf16.msra.mxu0 0
    %2243 = vmatprep.subr.bf16.mxu0 0
    %2244 = vmatpush1.bf16.msra.mxu0 0
    %2245 = vmatprep.subr.bf16.mxu0 0
    %2246 = vmatpush1.bf16.msra.mxu0 0
    %2247 = vmatprep.mubr.bf16.mxu0 0
    %2248 = vmatmul.mubr.bf16.gmra.mrb[0].mxu0 %v2210
    %v2249 = vpop.f32.mrb[0].mxu0
    %v2250 = vadd.f32 0.0, %v2249
    %v2251 = vpop.f32.mrb[0].mxu0
    %v2252 = vpop.f32.mrb[0].mxu0
    %v2253 = vpop.f32.mrb[0].mxu0
    %2254 = vdwg.mxu0
    %v2256 = vsel %vm501, %v2208, 0
    %v2259 = vsel %vm637, %v2088, 0
    %2261 = vmatprep.subr.bf16.mxu0 0
    %2262 = vmatpush1.bf16.msra.mxu0 %v2259
    %2263 = vmatprep.subr.bf16.mxu0 0
    %2264 = vmatpush1.bf16.msra.mxu0 0
    %2265 = vmatprep.subr.bf16.mxu0 0
    %2266 = vmatpush1.bf16.msra.mxu0 0
    %2267 = vmatprep.subr.bf16.mxu0 0
    %2268 = vmatpush1.bf16.msra.mxu0 0
    %2269 = vmatprep.subr.bf16.mxu0 0
    %2270 = vmatpush1.bf16.msra.mxu0 0
    %2271 = vmatprep.subr.bf16.mxu0 0
    %2272 = vmatpush1.bf16.msra.mxu0 0
    %2273 = vmatprep.subr.bf16.mxu0 0
    %2274 = vmatpush1.bf16.msra.mxu0 0
    %2275 = vmatprep.subr.bf16.mxu0 0
    %2276 = vmatpush1.bf16.msra.mxu0 0
    %2277 = vmatprep.subr.bf16.mxu0 0
    %2278 = vmatpush1.bf16.msra.mxu0 0
    %2279 = vmatprep.subr.bf16.mxu0 0
    %2280 = vmatpush1.bf16.msra.mxu0 0
    %2281 = vmatprep.subr.bf16.mxu0 0
    %2282 = vmatpush1.bf16.msra.mxu0 0
    %2283 = vmatprep.subr.bf16.mxu0 0
    %2284 = vmatpush1.bf16.msra.mxu0 0
    %2285 = vmatprep.subr.bf16.mxu0 0
    %2286 = vmatpush1.bf16.msra.mxu0 0
    %2287 = vmatprep.subr.bf16.mxu0 0
    %2288 = vmatpush1.bf16.msra.mxu0 0
    %2289 = vmatprep.subr.bf16.mxu0 0
    %2290 = vmatpush1.bf16.msra.mxu0 0
    %2291 = vmatprep.subr.bf16.mxu0 0
    %2292 = vmatpush1.bf16.msra.mxu0 0
    %2293 = vmatprep.mubr.bf16.mxu0 0
    %2294 = vmatmul.mubr.bf16.gmra.mrb[0].mxu0 %v2256
    %v2295 = vpop.f32.mrb[0].mxu0
    %v2296 = vadd.f32 0.0, %v2295
    %v2297 = vpop.f32.mrb[0].mxu0
    %v2298 = vpop.f32.mrb[0].mxu0
    %v2299 = vpop.f32.mrb[0].mxu0
    %2300 = vdwg.mxu0
    %v2301 = vpack.c.bf16 %v2296, %v2250
    %s2302 = scalar_lea.vmem [#allocation11], 16
    %v2303 = vld [vmem:[%s2302] sm:$0xf]
    %2305 = vrot.lane.b32.xlu0 %v2083, 120
    %v2306 = vpop.permute.xlu0 %2305
    %2308 = vrot.lane.b32.xlu0 %v2085, 120
    %v2309 = vpop.permute.xlu0 %2308
    %v2311 = vsel %vm501, %v2306, 0
    %v2314 = vsel %vm501, %v2309, 0
    %2316 = vmatprep.subr.bf16.mxu0 0
    %2317 = vmatpush1.bf16.xpose.msra.mxu0 %v2314
    %2318 = vmatprep.subr.bf16.mxu0 0
    %2319 = vmatpush1.bf16.xpose.msra.mxu0 0
    %2320 = vmatprep.subr.bf16.mxu0 0
    %2321 = vmatpush1.bf16.xpose.msra.mxu0 0
    %2322 = vmatprep.subr.bf16.mxu0 0
    %2323 = vmatpush1.bf16.xpose.msra.mxu0 0
    %2324 = vmatprep.subr.bf16.mxu0 0
    %2325 = vmatpush1.bf16.xpose.msra.mxu0 0
    %2326 = vmatprep.subr.bf16.mxu0 0
    %2327 = vmatpush1.bf16.xpose.msra.mxu0 0
    %2328 = vmatprep.subr.bf16.mxu0 0
    %2329 = vmatpush1.bf16.xpose.msra.mxu0 0
    %2330 = vmatprep.subr.bf16.mxu0 0
    %2331 = vmatpush1.bf16.xpose.msra.mxu0 0
    %2332 = vmatprep.subr.bf16.mxu0 0
    %2333 = vmatpush1.bf16.xpose.msra.mxu0 0
    %2334 = vmatprep.subr.bf16.mxu0 0
    %2335 = vmatpush1.bf16.xpose.msra.mxu0 0
    %2336 = vmatprep.subr.bf16.mxu0 0
    %2337 = vmatpush1.bf16.xpose.msra.mxu0 0
    %2338 = vmatprep.subr.bf16.mxu0 0
    %2339 = vmatpush1.bf16.xpose.msra.mxu0 0
    %2340 = vmatprep.subr.bf16.mxu0 0
    %2341 = vmatpush1.bf16.xpose.msra.mxu0 0
    %2342 = vmatprep.subr.bf16.mxu0 0
    %2343 = vmatpush1.bf16.xpose.msra.mxu0 0
    %2344 = vmatprep.subr.bf16.mxu0 0
    %2345 = vmatpush1.bf16.xpose.msra.mxu0 0
    %2346 = vmatprep.subr.bf16.mxu0 0
    %2347 = vmatpush1.bf16.xpose.msra.mxu0 0
    %2348 = vmatprep.mubr.bf16.mxu0 0
    %2349 = vmatmul.mubr.bf16.gmra.mrb[0].mxu0 %v2311
    %v2350 = vpop.f32.mrb[0].mxu0
    %v2351 = vadd.f32 0.0, %v2350
    %v2352 = vpop.f32.mrb[0].mxu0
    %v2353 = vpop.f32.mrb[0].mxu0
    %v2354 = vpop.f32.mrb[0].mxu0
    %2355 = vdwg.mxu0
    %2357 = vrot.lane.b32.xlu0 %v2084, 120
    %v2358 = vpop.permute.xlu0 %2357
    %2360 = vrot.lane.b32.xlu0 %v2086, 120
    %v2361 = vpop.permute.xlu0 %2360
    %v2363 = vsel %vm501, %v2358, 0
    %v2366 = vsel %vm501, %v2361, 0
    %2368 = vmatprep.subr.bf16.mxu0 0
    %2369 = vmatpush1.bf16.xpose.msra.mxu0 %v2366
    %2370 = vmatprep.subr.bf16.mxu0 0
    %2371 = vmatpush1.bf16.xpose.msra.mxu0 0
    %2372 = vmatprep.subr.bf16.mxu0 0
    %2373 = vmatpush1.bf16.xpose.msra.mxu0 0
    %2374 = vmatprep.subr.bf16.mxu0 0
    %2375 = vmatpush1.bf16.xpose.msra.mxu0 0
    %2376 = vmatprep.subr.bf16.mxu0 0
    %2377 = vmatpush1.bf16.xpose.msra.mxu0 0
    %2378 = vmatprep.subr.bf16.mxu0 0
    %2379 = vmatpush1.bf16.xpose.msra.mxu0 0
    %2380 = vmatprep.subr.bf16.mxu0 0
    %2381 = vmatpush1.bf16.xpose.msra.mxu0 0
    %2382 = vmatprep.subr.bf16.mxu0 0
    %2383 = vmatpush1.bf16.xpose.msra.mxu0 0
    %2384 = vmatprep.subr.bf16.mxu0 0
    %2385 = vmatpush1.bf16.xpose.msra.mxu0 0
    %2386 = vmatprep.subr.bf16.mxu0 0
    %2387 = vmatpush1.bf16.xpose.msra.mxu0 0
    %2388 = vmatprep.subr.bf16.mxu0 0
    %2389 = vmatpush1.bf16.xpose.msra.mxu0 0
    %2390 = vmatprep.subr.bf16.mxu0 0
    %2391 = vmatpush1.bf16.xpose.msra.mxu0 0
    %2392 = vmatprep.subr.bf16.mxu0 0
    %2393 = vmatpush1.bf16.xpose.msra.mxu0 0
    %2394 = vmatprep.subr.bf16.mxu0 0
    %2395 = vmatpush1.bf16.xpose.msra.mxu0 0
    %2396 = vmatprep.subr.bf16.mxu0 0
    %2397 = vmatpush1.bf16.xpose.msra.mxu0 0
    %2398 = vmatprep.subr.bf16.mxu0 0
    %2399 = vmatpush1.bf16.xpose.msra.mxu0 0
    %2400 = vmatprep.mubr.bf16.mxu0 0
    %2401 = vmatmul.mubr.bf16.gmra.mrb[0].mxu0 %v2363
    %v2402 = vpop.f32.mrb[0].mxu0
    %v2403 = vadd.f32 0.0, %v2402
    %v2404 = vpop.f32.mrb[0].mxu0
    %v2405 = vpop.f32.mrb[0].mxu0
    %v2406 = vpop.f32.mrb[0].mxu0
    %2407 = vdwg.mxu0
    %v2408 = vmul.f32 %v2351, 0.35355338
    %v2409 = vmul.f32 %v2403, 0.35355338
    %v2410 = vadd.f32 %v2408, %v601
    %v2411 = vadd.f32 %v2409, %v605
    %v2412 = vsel %vm501, %v2410, -inf
    %2413 = vmax.xlane.f32.xlu0 %v2412
    %v2414 = vpop.xlane.xlu0 %2413
    %v2415 = vsel %vm501, %v2411, -inf
    %2416 = vmax.xlane.f32.xlu0 %v2415
    %v2417 = vpop.xlane.xlu0 %2416
    %v2418 = vsub.f32 %v2410, %v2414
    %v2419 = vsub.f32 %v2411, %v2417
    %v2420 = vmul.f32 %v2418, 1.442695
    %v2421 = vpow.pop %v2420
    %v2422 = vmul.f32 %v2419, 1.442695
    %v2423 = vpow.pop %v2422
    %v2424 = vsel %vm501, %v2421, 0.0
    %2425 = vadd.xlane.f32.xlu0 %v2424
    %v2426 = vpop.xlane.xlu0 %2425
    %v2427 = vsel %vm501, %v2423, 0.0
    %2428 = vadd.xlane.f32.xlu0 %v2427
    %v2429 = vpop.xlane.xlu0 %2428
    %v2430 = vrcp.pop %v2426
    %v2431 = vrcp.pop %v2429
    %v2432 = vmul.f32 %v2421, %v2430
    %v2433 = vmul.f32 %v2423, %v2431
    %v2434 = vpack.c.bf16 %v2432, %v2432
    %v2435 = vpack.c.bf16 %v2433, %v2433
    %2437 = vrot.lane.b32.xlu0 %v2087, 120
    %v2438 = vpop.permute.xlu0 %2437
    %v2440 = vsel %vm501, %v2434, 0
    %v2443 = vsel %vm637, %v2438, 0
    %2445 = vmatprep.subr.bf16.mxu0 0
    %2446 = vmatpush1.bf16.msra.mxu0 %v2443
    %2447 = vmatprep.subr.bf16.mxu0 0
    %2448 = vmatpush1.bf16.msra.mxu0 0
    %2449 = vmatprep.subr.bf16.mxu0 0
    %2450 = vmatpush1.bf16.msra.mxu0 0
    %2451 = vmatprep.subr.bf16.mxu0 0
    %2452 = vmatpush1.bf16.msra.mxu0 0
    %2453 = vmatprep.subr.bf16.mxu0 0
    %2454 = vmatpush1.bf16.msra.mxu0 0
    %2455 = vmatprep.subr.bf16.mxu0 0
    %2456 = vmatpush1.bf16.msra.mxu0 0
    %2457 = vmatprep.subr.bf16.mxu0 0
    %2458 = vmatpush1.bf16.msra.mxu0 0
    %2459 = vmatprep.subr.bf16.mxu0 0
    %2460 = vmatpush1.bf16.msra.mxu0 0
    %2461 = vmatprep.subr.bf16.mxu0 0
    %2462 = vmatpush1.bf16.msra.mxu0 0
    %2463 = vmatprep.subr.bf16.mxu0 0
    %2464 = vmatpush1.bf16.msra.mxu0 0
    %2465 = vmatprep.subr.bf16.mxu0 0
    %2466 = vmatpush1.bf16.msra.mxu0 0
    %2467 = vmatprep.subr.bf16.mxu0 0
    %2468 = vmatpush1.bf16.msra.mxu0 0
    %2469 = vmatprep.subr.bf16.mxu0 0
    %2470 = vmatpush1.bf16.msra.mxu0 0
    %2471 = vmatprep.subr.bf16.mxu0 0
    %2472 = vmatpush1.bf16.msra.mxu0 0
    %2473 = vmatprep.subr.bf16.mxu0 0
    %2474 = vmatpush1.bf16.msra.mxu0 0
    %2475 = vmatprep.subr.bf16.mxu0 0
    %2476 = vmatpush1.bf16.msra.mxu0 0
    %2477 = vmatprep.mubr.bf16.mxu0 0
    %2478 = vmatmul.mubr.bf16.gmra.mrb[0].mxu0 %v2440
    %v2479 = vpop.f32.mrb[0].mxu0
    %v2480 = vadd.f32 0.0, %v2479
    %v2481 = vpop.f32.mrb[0].mxu0
    %v2482 = vpop.f32.mrb[0].mxu0
    %v2483 = vpop.f32.mrb[0].mxu0
    %2484 = vdwg.mxu0
    %2486 = vrot.lane.b32.xlu0 %v2088, 120
    %v2487 = vpop.permute.xlu0 %2486
    %v2489 = vsel %vm501, %v2435, 0
    %v2492 = vsel %vm637, %v2487, 0
    %2494 = vmatprep.subr.bf16.mxu0 0
    %2495 = vmatpush1.bf16.msra.mxu0 %v2492
    %2496 = vmatprep.subr.bf16.mxu0 0
    %2497 = vmatpush1.bf16.msra.mxu0 0
    %2498 = vmatprep.subr.bf16.mxu0 0
    %2499 = vmatpush1.bf16.msra.mxu0 0
    %2500 = vmatprep.subr.bf16.mxu0 0
    %2501 = vmatpush1.bf16.msra.mxu0 0
    %2502 = vmatprep.subr.bf16.mxu0 0
    %2503 = vmatpush1.bf16.msra.mxu0 0
    %2504 = vmatprep.subr.bf16.mxu0 0
    %2505 = vmatpush1.bf16.msra.mxu0 0
    %2506 = vmatprep.subr.bf16.mxu0 0
    %2507 = vmatpush1.bf16.msra.mxu0 0
    %2508 = vmatprep.subr.bf16.mxu0 0
    %2509 = vmatpush1.bf16.msra.mxu0 0
    %2510 = vmatprep.subr.bf16.mxu0 0
    %2511 = vmatpush1.bf16.msra.mxu0 0
    %2512 = vmatprep.subr.bf16.mxu0 0
    %2513 = vmatpush1.bf16.msra.mxu0 0
    %2514 = vmatprep.subr.bf16.mxu0 0
    %2515 = vmatpush1.bf16.msra.mxu0 0
    %2516 = vmatprep.subr.bf16.mxu0 0
    %2517 = vmatpush1.bf16.msra.mxu0 0
    %2518 = vmatprep.subr.bf16.mxu0 0
    %2519 = vmatpush1.bf16.msra.mxu0 0
    %2520 = vmatprep.subr.bf16.mxu0 0
    %2521 = vmatpush1.bf16.msra.mxu0 0
    %2522 = vmatprep.subr.bf16.mxu0 0
    %2523 = vmatpush1.bf16.msra.mxu0 0
    %2524 = vmatprep.subr.bf16.mxu0 0
    %2525 = vmatpush1.bf16.msra.mxu0 0
    %2526 = vmatprep.mubr.bf16.mxu0 0
    %2527 = vmatmul.mubr.bf16.gmra.mrb[0].mxu0 %v2489
    %v2528 = vpop.f32.mrb[0].mxu0
    %v2529 = vadd.f32 0.0, %v2528
    %v2530 = vpop.f32.mrb[0].mxu0
    %v2531 = vpop.f32.mrb[0].mxu0
    %v2532 = vpop.f32.mrb[0].mxu0
    %2533 = vdwg.mxu0
    %v2534 = vpack.c.bf16 %v2529, %v2480
    %s2535 = scalar_lea.vmem [#allocation11], 20
    %v2536 = vld [vmem:[%s2535] sm:$0xf]
    %v2538 = vsel %vm501, %v2534, 0
    %v2541 = vsel %vm637, %v2536, 0
    %2543 = vmatprep.subr.bf16.mxu0 0
    %2544 = vmatpush1.bf16.msra.mxu0 %v2541
    %2545 = vmatprep.subr.bf16.mxu0 0
    %2546 = vmatpush1.bf16.msra.mxu0 0
    %2547 = vmatprep.subr.bf16.mxu0 0
    %2548 = vmatpush1.bf16.msra.mxu0 0
    %2549 = vmatprep.subr.bf16.mxu0 0
    %2550 = vmatpush1.bf16.msra.mxu0 0
    %2551 = vmatprep.subr.bf16.mxu0 0
    %2552 = vmatpush1.bf16.msra.mxu0 0
    %2553 = vmatprep.subr.bf16.mxu0 0
    %2554 = vmatpush1.bf16.msra.mxu0 0
    %2555 = vmatprep.subr.bf16.mxu0 0
    %2556 = vmatpush1.bf16.msra.mxu0 0
    %2557 = vmatprep.subr.bf16.mxu0 0
    %2558 = vmatpush1.bf16.msra.mxu0 0
    %2559 = vmatprep.subr.bf16.mxu0 0
    %2560 = vmatpush1.bf16.msra.mxu0 0
    %2561 = vmatprep.subr.bf16.mxu0 0
    %2562 = vmatpush1.bf16.msra.mxu0 0
    %2563 = vmatprep.subr.bf16.mxu0 0
    %2564 = vmatpush1.bf16.msra.mxu0 0
    %2565 = vmatprep.subr.bf16.mxu0 0
    %2566 = vmatpush1.bf16.msra.mxu0 0
    %2567 = vmatprep.subr.bf16.mxu0 0
    %2568 = vmatpush1.bf16.msra.mxu0 0
    %2569 = vmatprep.subr.bf16.mxu0 0
    %2570 = vmatpush1.bf16.msra.mxu0 0
    %2571 = vmatprep.subr.bf16.mxu0 0
    %2572 = vmatpush1.bf16.msra.mxu0 0
    %2573 = vmatprep.subr.bf16.mxu0 0
    %2574 = vmatpush1.bf16.msra.mxu0 0
    %2575 = vmatprep.mubr.bf16.mxu0 0
    %2576 = vmatmul.mubr.bf16.gmra.mrb[0].mxu0 %v2538
    %v2577 = vpop.f32.mrb[0].mxu0
    %v2578 = vadd.f32 0.0, %v2577
    %v2579 = vpop.f32.mrb[0].mxu0
    %v2580 = vpop.f32.mrb[0].mxu0
    %v2581 = vadd.f32 0.0, %v2580
    %v2582 = vpop.f32.mrb[0].mxu0
    %2583 = vdwg.mxu0
    %v2585 = vsel %vm501, %v2301, 0
    %v2588 = vsel %vm637, %v2303, 0
    %2590 = vmatprep.subr.bf16.mxu0 0
    %2591 = vmatpush1.bf16.msra.mxu0 %v2588
    %2592 = vmatprep.subr.bf16.mxu0 0
    %2593 = vmatpush1.bf16.msra.mxu0 0
    %2594 = vmatprep.subr.bf16.mxu0 0
    %2595 = vmatpush1.bf16.msra.mxu0 0
    %2596 = vmatprep.subr.bf16.mxu0 0
    %2597 = vmatpush1.bf16.msra.mxu0 0
    %2598 = vmatprep.subr.bf16.mxu0 0
    %2599 = vmatpush1.bf16.msra.mxu0 0
    %2600 = vmatprep.subr.bf16.mxu0 0
    %2601 = vmatpush1.bf16.msra.mxu0 0
    %2602 = vmatprep.subr.bf16.mxu0 0
    %2603 = vmatpush1.bf16.msra.mxu0 0
    %2604 = vmatprep.subr.bf16.mxu0 0
    %2605 = vmatpush1.bf16.msra.mxu0 0
    %2606 = vmatprep.subr.bf16.mxu0 0
    %2607 = vmatpush1.bf16.msra.mxu0 0
    %2608 = vmatprep.subr.bf16.mxu0 0
    %2609 = vmatpush1.bf16.msra.mxu0 0
    %2610 = vmatprep.subr.bf16.mxu0 0
    %2611 = vmatpush1.bf16.msra.mxu0 0
    %2612 = vmatprep.subr.bf16.mxu0 0
    %2613 = vmatpush1.bf16.msra.mxu0 0
    %2614 = vmatprep.subr.bf16.mxu0 0
    %2615 = vmatpush1.bf16.msra.mxu0 0
    %2616 = vmatprep.subr.bf16.mxu0 0
    %2617 = vmatpush1.bf16.msra.mxu0 0
    %2618 = vmatprep.subr.bf16.mxu0 0
    %2619 = vmatpush1.bf16.msra.mxu0 0
    %2620 = vmatprep.subr.bf16.mxu0 0
    %2621 = vmatpush1.bf16.msra.mxu0 0
    %2622 = vmatprep.mubr.bf16.mxu0 0
    %2623 = vmatmul.mubr.bf16.gmra.mrb[0].mxu0 %v2585
    %v2624 = vpop.f32.mrb[0].mxu0
    %v2625 = vadd.f32 %v2578, %v2624
    %v2626 = vpop.f32.mrb[0].mxu0
    %v2627 = vpop.f32.mrb[0].mxu0
    %v2628 = vadd.f32 %v2581, %v2627
    %v2629 = vpop.f32.mrb[0].mxu0
    %2630 = vdwg.mxu0
    %2631 = vrot.lane.b32.xlu0 %v2083, 112
    %v2632 = vpop.permute.xlu0 %2631
    %2633 = vrot.lane.b32.xlu0 %v2085, 112
    %v2634 = vpop.permute.xlu0 %2633
    %v2636 = vsel %vm501, %v2632, 0
    %v2639 = vsel %vm501, %v2634, 0
    %2641 = vmatprep.subr.bf16.mxu0 0
    %2642 = vmatpush1.bf16.xpose.msra.mxu0 %v2639
    %2643 = vmatprep.subr.bf16.mxu0 0
    %2644 = vmatpush1.bf16.xpose.msra.mxu0 0
    %2645 = vmatprep.subr.bf16.mxu0 0
    %2646 = vmatpush1.bf16.xpose.msra.mxu0 0
    %2647 = vmatprep.subr.bf16.mxu0 0
    %2648 = vmatpush1.bf16.xpose.msra.mxu0 0
    %2649 = vmatprep.subr.bf16.mxu0 0
    %2650 = vmatpush1.bf16.xpose.msra.mxu0 0
    %2651 = vmatprep.subr.bf16.mxu0 0
    %2652 = vmatpush1.bf16.xpose.msra.mxu0 0
    %2653 = vmatprep.subr.bf16.mxu0 0
    %2654 = vmatpush1.bf16.xpose.msra.mxu0 0
    %2655 = vmatprep.subr.bf16.mxu0 0
    %2656 = vmatpush1.bf16.xpose.msra.mxu0 0
    %2657 = vmatprep.subr.bf16.mxu0 0
    %2658 = vmatpush1.bf16.xpose.msra.mxu0 0
    %2659 = vmatprep.subr.bf16.mxu0 0
    %2660 = vmatpush1.bf16.xpose.msra.mxu0 0
    %2661 = vmatprep.subr.bf16.mxu0 0
    %2662 = vmatpush1.bf16.xpose.msra.mxu0 0
    %2663 = vmatprep.subr.bf16.mxu0 0
    %2664 = vmatpush1.bf16.xpose.msra.mxu0 0
    %2665 = vmatprep.subr.bf16.mxu0 0
    %2666 = vmatpush1.bf16.xpose.msra.mxu0 0
    %2667 = vmatprep.subr.bf16.mxu0 0
    %2668 = vmatpush1.bf16.xpose.msra.mxu0 0
    %2669 = vmatprep.subr.bf16.mxu0 0
    %2670 = vmatpush1.bf16.xpose.msra.mxu0 0
    %2671 = vmatprep.subr.bf16.mxu0 0
    %2672 = vmatpush1.bf16.xpose.msra.mxu0 0
    %2673 = vmatprep.mubr.bf16.mxu0 0
    %2674 = vmatmul.mubr.bf16.gmra.mrb[0].mxu0 %v2636
    %v2675 = vpop.f32.mrb[0].mxu0
    %v2676 = vadd.f32 0.0, %v2675
    %v2677 = vpop.f32.mrb[0].mxu0
    %v2678 = vpop.f32.mrb[0].mxu0
    %v2679 = vpop.f32.mrb[0].mxu0
    %2680 = vdwg.mxu0
    %2681 = vrot.lane.b32.xlu0 %v2084, 112
    %v2682 = vpop.permute.xlu0 %2681
    %2683 = vrot.lane.b32.xlu0 %v2086, 112
    %v2684 = vpop.permute.xlu0 %2683
    %v2686 = vsel %vm501, %v2682, 0
    %v2689 = vsel %vm501, %v2684, 0
    %2691 = vmatprep.subr.bf16.mxu0 0
    %2692 = vmatpush1.bf16.xpose.msra.mxu0 %v2689
    %2693 = vmatprep.subr.bf16.mxu0 0
    %2694 = vmatpush1.bf16.xpose.msra.mxu0 0
    %2695 = vmatprep.subr.bf16.mxu0 0
    %2696 = vmatpush1.bf16.xpose.msra.mxu0 0
    %2697 = vmatprep.subr.bf16.mxu0 0
    %2698 = vmatpush1.bf16.xpose.msra.mxu0 0
    %2699 = vmatprep.subr.bf16.mxu0 0
    %2700 = vmatpush1.bf16.xpose.msra.mxu0 0
    %2701 = vmatprep.subr.bf16.mxu0 0
    %2702 = vmatpush1.bf16.xpose.msra.mxu0 0
    %2703 = vmatprep.subr.bf16.mxu0 0
    %2704 = vmatpush1.bf16.xpose.msra.mxu0 0
    %2705 = vmatprep.subr.bf16.mxu0 0
    %2706 = vmatpush1.bf16.xpose.msra.mxu0 0
    %2707 = vmatprep.subr.bf16.mxu0 0
    %2708 = vmatpush1.bf16.xpose.msra.mxu0 0
    %2709 = vmatprep.subr.bf16.mxu0 0
    %2710 = vmatpush1.bf16.xpose.msra.mxu0 0
    %2711 = vmatprep.subr.bf16.mxu0 0
    %2712 = vmatpush1.bf16.xpose.msra.mxu0 0
    %2713 = vmatprep.subr.bf16.mxu0 0
    %2714 = vmatpush1.bf16.xpose.msra.mxu0 0
    %2715 = vmatprep.subr.bf16.mxu0 0
    %2716 = vmatpush1.bf16.xpose.msra.mxu0 0
    %2717 = vmatprep.subr.bf16.mxu0 0
    %2718 = vmatpush1.bf16.xpose.msra.mxu0 0
    %2719 = vmatprep.subr.bf16.mxu0 0
    %2720 = vmatpush1.bf16.xpose.msra.mxu0 0
    %2721 = vmatprep.subr.bf16.mxu0 0
    %2722 = vmatpush1.bf16.xpose.msra.mxu0 0
    %2723 = vmatprep.mubr.bf16.mxu0 0
    %2724 = vmatmul.mubr.bf16.gmra.mrb[0].mxu0 %v2686
    %v2725 = vpop.f32.mrb[0].mxu0
    %v2726 = vadd.f32 0.0, %v2725
    %v2727 = vpop.f32.mrb[0].mxu0
    %v2728 = vpop.f32.mrb[0].mxu0
    %v2729 = vpop.f32.mrb[0].mxu0
    %2730 = vdwg.mxu0
    %v2731 = vmul.f32 %v2676, 0.35355338
    %v2732 = vmul.f32 %v2726, 0.35355338
    %v2733 = vadd.f32 %v2731, %v601
    %v2734 = vadd.f32 %v2732, %v605
    %v2735 = vsel %vm501, %v2733, -inf
    %2736 = vmax.xlane.f32.xlu0 %v2735
    %v2737 = vpop.xlane.xlu0 %2736
    %v2738 = vsel %vm501, %v2734, -inf
    %2739 = vmax.xlane.f32.xlu0 %v2738
    %v2740 = vpop.xlane.xlu0 %2739
    %v2741 = vsub.f32 %v2733, %v2737
    %v2742 = vsub.f32 %v2734, %v2740
    %v2743 = vmul.f32 %v2741, 1.442695
    %v2744 = vpow.pop %v2743
    %v2745 = vmul.f32 %v2742, 1.442695
    %v2746 = vpow.pop %v2745
    %v2747 = vsel %vm501, %v2744, 0.0
    %2748 = vadd.xlane.f32.xlu0 %v2747
    %v2749 = vpop.xlane.xlu0 %2748
    %v2750 = vsel %vm501, %v2746, 0.0
    %2751 = vadd.xlane.f32.xlu0 %v2750
    %v2752 = vpop.xlane.xlu0 %2751
    %v2753 = vrcp.pop %v2749
    %v2754 = vrcp.pop %v2752
    %v2755 = vmul.f32 %v2744, %v2753
    %v2756 = vmul.f32 %v2746, %v2754
    %v2757 = vpack.c.bf16 %v2755, %v2755
    %v2758 = vpack.c.bf16 %v2756, %v2756
    %2759 = vrot.lane.b32.xlu0 %v2087, 112
    %v2760 = vpop.permute.xlu0 %2759
    %v2762 = vsel %vm501, %v2757, 0
    %v2765 = vsel %vm637, %v2760, 0
    %2767 = vmatprep.subr.bf16.mxu0 0
    %2768 = vmatpush1.bf16.msra.mxu0 %v2765
    %2769 = vmatprep.subr.bf16.mxu0 0
    %2770 = vmatpush1.bf16.msra.mxu0 0
    %2771 = vmatprep.subr.bf16.mxu0 0
    %2772 = vmatpush1.bf16.msra.mxu0 0
    %2773 = vmatprep.subr.bf16.mxu0 0
    %2774 = vmatpush1.bf16.msra.mxu0 0
    %2775 = vmatprep.subr.bf16.mxu0 0
    %2776 = vmatpush1.bf16.msra.mxu0 0
    %2777 = vmatprep.subr.bf16.mxu0 0
    %2778 = vmatpush1.bf16.msra.mxu0 0
    %2779 = vmatprep.subr.bf16.mxu0 0
    %2780 = vmatpush1.bf16.msra.mxu0 0
    %2781 = vmatprep.subr.bf16.mxu0 0
    %2782 = vmatpush1.bf16.msra.mxu0 0
    %2783 = vmatprep.subr.bf16.mxu0 0
    %2784 = vmatpush1.bf16.msra.mxu0 0
    %2785 = vmatprep.subr.bf16.mxu0 0
    %2786 = vmatpush1.bf16.msra.mxu0 0
    %2787 = vmatprep.subr.bf16.mxu0 0
    %2788 = vmatpush1.bf16.msra.mxu0 0
    %2789 = vmatprep.subr.bf16.mxu0 0
    %2790 = vmatpush1.bf16.msra.mxu0 0
    %2791 = vmatprep.subr.bf16.mxu0 0
    %2792 = vmatpush1.bf16.msra.mxu0 0
    %2793 = vmatprep.subr.bf16.mxu0 0
    %2794 = vmatpush1.bf16.msra.mxu0 0
    %2795 = vmatprep.subr.bf16.mxu0 0
    %2796 = vmatpush1.bf16.msra.mxu0 0
    %2797 = vmatprep.subr.bf16.mxu0 0
    %2798 = vmatpush1.bf16.msra.mxu0 0
    %2799 = vmatprep.mubr.bf16.mxu0 0
    %2800 = vmatmul.mubr.bf16.gmra.mrb[0].mxu0 %v2762
    %v2801 = vpop.f32.mrb[0].mxu0
    %v2802 = vadd.f32 0.0, %v2801
    %v2803 = vpop.f32.mrb[0].mxu0
    %v2804 = vpop.f32.mrb[0].mxu0
    %v2805 = vpop.f32.mrb[0].mxu0
    %2806 = vdwg.mxu0
    %2807 = vrot.lane.b32.xlu0 %v2088, 112
    %v2808 = vpop.permute.xlu0 %2807
    %v2810 = vsel %vm501, %v2758, 0
    %v2813 = vsel %vm637, %v2808, 0
    %2815 = vmatprep.subr.bf16.mxu0 0
    %2816 = vmatpush1.bf16.msra.mxu0 %v2813
    %2817 = vmatprep.subr.bf16.mxu0 0
    %2818 = vmatpush1.bf16.msra.mxu0 0
    %2819 = vmatprep.subr.bf16.mxu0 0
    %2820 = vmatpush1.bf16.msra.mxu0 0
    %2821 = vmatprep.subr.bf16.mxu0 0
    %2822 = vmatpush1.bf16.msra.mxu0 0
    %2823 = vmatprep.subr.bf16.mxu0 0
    %2824 = vmatpush1.bf16.msra.mxu0 0
    %2825 = vmatprep.subr.bf16.mxu0 0
    %2826 = vmatpush1.bf16.msra.mxu0 0
    %2827 = vmatprep.subr.bf16.mxu0 0
    %2828 = vmatpush1.bf16.msra.mxu0 0
    %2829 = vmatprep.subr.bf16.mxu0 0
    %2830 = vmatpush1.bf16.msra.mxu0 0
    %2831 = vmatprep.subr.bf16.mxu0 0
    %2832 = vmatpush1.bf16.msra.mxu0 0
    %2833 = vmatprep.subr.bf16.mxu0 0
    %2834 = vmatpush1.bf16.msra.mxu0 0
    %2835 = vmatprep.subr.bf16.mxu0 0
    %2836 = vmatpush1.bf16.msra.mxu0 0
    %2837 = vmatprep.subr.bf16.mxu0 0
    %2838 = vmatpush1.bf16.msra.mxu0 0
    %2839 = vmatprep.subr.bf16.mxu0 0
    %2840 = vmatpush1.bf16.msra.mxu0 0
    %2841 = vmatprep.subr.bf16.mxu0 0
    %2842 = vmatpush1.bf16.msra.mxu0 0
    %2843 = vmatprep.subr.bf16.mxu0 0
    %2844 = vmatpush1.bf16.msra.mxu0 0
    %2845 = vmatprep.subr.bf16.mxu0 0
    %2846 = vmatpush1.bf16.msra.mxu0 0
    %2847 = vmatprep.mubr.bf16.mxu0 0
    %2848 = vmatmul.mubr.bf16.gmra.mrb[0].mxu0 %v2810
    %v2849 = vpop.f32.mrb[0].mxu0
    %v2850 = vadd.f32 0.0, %v2849
    %v2851 = vpop.f32.mrb[0].mxu0
    %v2852 = vpop.f32.mrb[0].mxu0
    %v2853 = vpop.f32.mrb[0].mxu0
    %2854 = vdwg.mxu0
    %v2855 = vpack.c.bf16 %v2850, %v2802
    %s2856 = scalar_lea.vmem [#allocation11], 24
    %v2857 = vld [vmem:[%s2856] sm:$0xf]
    %v2859 = vsel %vm501, %v2855, 0
    %v2862 = vsel %vm637, %v2857, 0
    %2864 = vmatprep.subr.bf16.mxu0 0
    %2865 = vmatpush1.bf16.msra.mxu0 %v2862
    %2866 = vmatprep.subr.bf16.mxu0 0
    %2867 = vmatpush1.bf16.msra.mxu0 0
    %2868 = vmatprep.subr.bf16.mxu0 0
    %2869 = vmatpush1.bf16.msra.mxu0 0
    %2870 = vmatprep.subr.bf16.mxu0 0
    %2871 = vmatpush1.bf16.msra.mxu0 0
    %2872 = vmatprep.subr.bf16.mxu0 0
    %2873 = vmatpush1.bf16.msra.mxu0 0
    %2874 = vmatprep.subr.bf16.mxu0 0
    %2875 = vmatpush1.bf16.msra.mxu0 0
    %2876 = vmatprep.subr.bf16.mxu0 0
    %2877 = vmatpush1.bf16.msra.mxu0 0
    %2878 = vmatprep.subr.bf16.mxu0 0
    %2879 = vmatpush1.bf16.msra.mxu0 0
    %2880 = vmatprep.subr.bf16.mxu0 0
    %2881 = vmatpush1.bf16.msra.mxu0 0
    %2882 = vmatprep.subr.bf16.mxu0 0
    %2883 = vmatpush1.bf16.msra.mxu0 0
    %2884 = vmatprep.subr.bf16.mxu0 0
    %2885 = vmatpush1.bf16.msra.mxu0 0
    %2886 = vmatprep.subr.bf16.mxu0 0
    %2887 = vmatpush1.bf16.msra.mxu0 0
    %2888 = vmatprep.subr.bf16.mxu0 0
    %2889 = vmatpush1.bf16.msra.mxu0 0
    %2890 = vmatprep.subr.bf16.mxu0 0
    %2891 = vmatpush1.bf16.msra.mxu0 0
    %2892 = vmatprep.subr.bf16.mxu0 0
    %2893 = vmatpush1.bf16.msra.mxu0 0
    %2894 = vmatprep.subr.bf16.mxu0 0
    %2895 = vmatpush1.bf16.msra.mxu0 0
    %2896 = vmatprep.mubr.bf16.mxu0 0
    %2897 = vmatmul.mubr.bf16.gmra.mrb[0].mxu0 %v2859
    %v2898 = vpop.f32.mrb[0].mxu0
    %v2899 = vadd.f32 0.0, %v2898
    %v2900 = vpop.f32.mrb[0].mxu0
    %v2901 = vpop.f32.mrb[0].mxu0
    %v2902 = vadd.f32 0.0, %v2901
    %v2903 = vpop.f32.mrb[0].mxu0
    %2904 = vdwg.mxu0
    %v2905 = vadd.f32 %v2625, %v2899
    %v2906 = vadd.f32 %v2628, %v2902
    %2907 = vrot.lane.b32.xlu0 %v2083, 104
    %v2908 = vpop.permute.xlu0 %2907
    %2909 = vrot.lane.b32.xlu0 %v2085, 104
    %v2910 = vpop.permute.xlu0 %2909
    %v2912 = vsel %vm501, %v2908, 0
    %v2915 = vsel %vm501, %v2910, 0
    %2917 = vmatprep.subr.bf16.mxu0 0
    %2918 = vmatpush1.bf16.xpose.msra.mxu0 %v2915
    %2919 = vmatprep.subr.bf16.mxu0 0
    %2920 = vmatpush1.bf16.xpose.msra.mxu0 0
    %2921 = vmatprep.subr.bf16.mxu0 0
    %2922 = vmatpush1.bf16.xpose.msra.mxu0 0
    %2923 = vmatprep.subr.bf16.mxu0 0
    %2924 = vmatpush1.bf16.xpose.msra.mxu0 0
    %2925 = vmatprep.subr.bf16.mxu0 0
    %2926 = vmatpush1.bf16.xpose.msra.mxu0 0
    %2927 = vmatprep.subr.bf16.mxu0 0
    %2928 = vmatpush1.bf16.xpose.msra.mxu0 0
    %2929 = vmatprep.subr.bf16.mxu0 0
    %2930 = vmatpush1.bf16.xpose.msra.mxu0 0
    %2931 = vmatprep.subr.bf16.mxu0 0
    %2932 = vmatpush1.bf16.xpose.msra.mxu0 0
    %2933 = vmatprep.subr.bf16.mxu0 0
    %2934 = vmatpush1.bf16.xpose.msra.mxu0 0
    %2935 = vmatprep.subr.bf16.mxu0 0
    %2936 = vmatpush1.bf16.xpose.msra.mxu0 0
    %2937 = vmatprep.subr.bf16.mxu0 0
    %2938 = vmatpush1.bf16.xpose.msra.mxu0 0
    %2939 = vmatprep.subr.bf16.mxu0 0
    %2940 = vmatpush1.bf16.xpose.msra.mxu0 0
    %2941 = vmatprep.subr.bf16.mxu0 0
    %2942 = vmatpush1.bf16.xpose.msra.mxu0 0
    %2943 = vmatprep.subr.bf16.mxu0 0
    %2944 = vmatpush1.bf16.xpose.msra.mxu0 0
    %2945 = vmatprep.subr.bf16.mxu0 0
    %2946 = vmatpush1.bf16.xpose.msra.mxu0 0
    %2947 = vmatprep.subr.bf16.mxu0 0
    %2948 = vmatpush1.bf16.xpose.msra.mxu0 0
    %2949 = vmatprep.mubr.bf16.mxu0 0
    %2950 = vmatmul.mubr.bf16.gmra.mrb[0].mxu0 %v2912
    %v2951 = vpop.f32.mrb[0].mxu0
    %v2952 = vadd.f32 0.0, %v2951
    %v2953 = vpop.f32.mrb[0].mxu0
    %v2954 = vpop.f32.mrb[0].mxu0
    %v2955 = vpop.f32.mrb[0].mxu0
    %2956 = vdwg.mxu0
    %2957 = vrot.lane.b32.xlu0 %v2084, 104
    %v2958 = vpop.permute.xlu0 %2957
    %2959 = vrot.lane.b32.xlu0 %v2086, 104
    %v2960 = vpop.permute.xlu0 %2959
    %v2962 = vsel %vm501, %v2958, 0
    %v2965 = vsel %vm501, %v2960, 0
    %2967 = vmatprep.subr.bf16.mxu0 0
    %2968 = vmatpush1.bf16.xpose.msra.mxu0 %v2965
    %2969 = vmatprep.subr.bf16.mxu0 0
    %2970 = vmatpush1.bf16.xpose.msra.mxu0 0
    %2971 = vmatprep.subr.bf16.mxu0 0
    %2972 = vmatpush1.bf16.xpose.msra.mxu0 0
    %2973 = vmatprep.subr.bf16.mxu0 0
    %2974 = vmatpush1.bf16.xpose.msra.mxu0 0
    %2975 = vmatprep.subr.bf16.mxu0 0
    %2976 = vmatpush1.bf16.xpose.msra.mxu0 0
    %2977 = vmatprep.subr.bf16.mxu0 0
    %2978 = vmatpush1.bf16.xpose.msra.mxu0 0
    %2979 = vmatprep.subr.bf16.mxu0 0
    %2980 = vmatpush1.bf16.xpose.msra.mxu0 0
    %2981 = vmatprep.subr.bf16.mxu0 0
    %2982 = vmatpush1.bf16.xpose.msra.mxu0 0
    %2983 = vmatprep.subr.bf16.mxu0 0
    %2984 = vmatpush1.bf16.xpose.msra.mxu0 0
    %2985 = vmatprep.subr.bf16.mxu0 0
    %2986 = vmatpush1.bf16.xpose.msra.mxu0 0
    %2987 = vmatprep.subr.bf16.mxu0 0
    %2988 = vmatpush1.bf16.xpose.msra.mxu0 0
    %2989 = vmatprep.subr.bf16.mxu0 0
    %2990 = vmatpush1.bf16.xpose.msra.mxu0 0
    %2991 = vmatprep.subr.bf16.mxu0 0
    %2992 = vmatpush1.bf16.xpose.msra.mxu0 0
    %2993 = vmatprep.subr.bf16.mxu0 0
    %2994 = vmatpush1.bf16.xpose.msra.mxu0 0
    %2995 = vmatprep.subr.bf16.mxu0 0
    %2996 = vmatpush1.bf16.xpose.msra.mxu0 0
    %2997 = vmatprep.subr.bf16.mxu0 0
    %2998 = vmatpush1.bf16.xpose.msra.mxu0 0
    %2999 = vmatprep.mubr.bf16.mxu0 0
    %3000 = vmatmul.mubr.bf16.gmra.mrb[0].mxu0 %v2962
    %v3001 = vpop.f32.mrb[0].mxu0
    %v3002 = vadd.f32 0.0, %v3001
    %v3003 = vpop.f32.mrb[0].mxu0
    %v3004 = vpop.f32.mrb[0].mxu0
    %v3005 = vpop.f32.mrb[0].mxu0
    %3006 = vdwg.mxu0
    %v3007 = vmul.f32 %v2952, 0.35355338
    %v3008 = vmul.f32 %v3002, 0.35355338
    %v3009 = vadd.f32 %v3007, %v601
    %v3010 = vadd.f32 %v3008, %v605
    %v3011 = vsel %vm501, %v3009, -inf
    %3012 = vmax.xlane.f32.xlu0 %v3011
    %v3013 = vpop.xlane.xlu0 %3012
    %v3014 = vsel %vm501, %v3010, -inf
    %3015 = vmax.xlane.f32.xlu0 %v3014
    %v3016 = vpop.xlane.xlu0 %3015
    %v3017 = vsub.f32 %v3009, %v3013
    %v3018 = vsub.f32 %v3010, %v3016
    %v3019 = vmul.f32 %v3017, 1.442695
    %v3020 = vpow.pop %v3019
    %v3021 = vmul.f32 %v3018, 1.442695
    %v3022 = vpow.pop %v3021
    %v3023 = vsel %vm501, %v3020, 0.0
    %3024 = vadd.xlane.f32.xlu0 %v3023
    %v3025 = vpop.xlane.xlu0 %3024
    %v3026 = vsel %vm501, %v3022, 0.0
    %3027 = vadd.xlane.f32.xlu0 %v3026
    %v3028 = vpop.xlane.xlu0 %3027
    %v3029 = vrcp.pop %v3025
    %v3030 = vrcp.pop %v3028
    %v3031 = vmul.f32 %v3020, %v3029
    %v3032 = vmul.f32 %v3022, %v3030
    %v3033 = vpack.c.bf16 %v3031, %v3031
    %v3034 = vpack.c.bf16 %v3032, %v3032
    %3035 = vrot.lane.b32.xlu0 %v2087, 104
    %v3036 = vpop.permute.xlu0 %3035
    %v3038 = vsel %vm501, %v3033, 0
    %v3041 = vsel %vm637, %v3036, 0
    %3043 = vmatprep.subr.bf16.mxu0 0
    %3044 = vmatpush1.bf16.msra.mxu0 %v3041
    %3045 = vmatprep.subr.bf16.mxu0 0
    %3046 = vmatpush1.bf16.msra.mxu0 0
    %3047 = vmatprep.subr.bf16.mxu0 0
    %3048 = vmatpush1.bf16.msra.mxu0 0
    %3049 = vmatprep.subr.bf16.mxu0 0
    %3050 = vmatpush1.bf16.msra.mxu0 0
    %3051 = vmatprep.subr.bf16.mxu0 0
    %3052 = vmatpush1.bf16.msra.mxu0 0
    %3053 = vmatprep.subr.bf16.mxu0 0
    %3054 = vmatpush1.bf16.msra.mxu0 0
    %3055 = vmatprep.subr.bf16.mxu0 0
    %3056 = vmatpush1.bf16.msra.mxu0 0
    %3057 = vmatprep.subr.bf16.mxu0 0
    %3058 = vmatpush1.bf16.msra.mxu0 0
    %3059 = vmatprep.subr.bf16.mxu0 0
    %3060 = vmatpush1.bf16.msra.mxu0 0
    %3061 = vmatprep.subr.bf16.mxu0 0
    %3062 = vmatpush1.bf16.msra.mxu0 0
    %3063 = vmatprep.subr.bf16.mxu0 0
    %3064 = vmatpush1.bf16.msra.mxu0 0
    %3065 = vmatprep.subr.bf16.mxu0 0
    %3066 = vmatpush1.bf16.msra.mxu0 0
    %3067 = vmatprep.subr.bf16.mxu0 0
    %3068 = vmatpush1.bf16.msra.mxu0 0
    %3069 = vmatprep.subr.bf16.mxu0 0
    %3070 = vmatpush1.bf16.msra.mxu0 0
    %3071 = vmatprep.subr.bf16.mxu0 0
    %3072 = vmatpush1.bf16.msra.mxu0 0
    %3073 = vmatprep.subr.bf16.mxu0 0
    %3074 = vmatpush1.bf16.msra.mxu0 0
    %3075 = vmatprep.mubr.bf16.mxu0 0
    %3076 = vmatmul.mubr.bf16.gmra.mrb[0].mxu0 %v3038
    %v3077 = vpop.f32.mrb[0].mxu0
    %v3078 = vadd.f32 0.0, %v3077
    %v3079 = vpop.f32.mrb[0].mxu0
    %v3080 = vpop.f32.mrb[0].mxu0
    %v3081 = vpop.f32.mrb[0].mxu0
    %3082 = vdwg.mxu0
    %3083 = vrot.lane.b32.xlu0 %v2088, 104
    %v3084 = vpop.permute.xlu0 %3083
    %v3086 = vsel %vm501, %v3034, 0
    %v3089 = vsel %vm637, %v3084, 0
    %3091 = vmatprep.subr.bf16.mxu0 0
    %3092 = vmatpush1.bf16.msra.mxu0 %v3089
    %3093 = vmatprep.subr.bf16.mxu0 0
    %3094 = vmatpush1.bf16.msra.mxu0 0
    %3095 = vmatprep.subr.bf16.mxu0 0
    %3096 = vmatpush1.bf16.msra.mxu0 0
    %3097 = vmatprep.subr.bf16.mxu0 0
    %3098 = vmatpush1.bf16.msra.mxu0 0
    %3099 = vmatprep.subr.bf16.mxu0 0
    %3100 = vmatpush1.bf16.msra.mxu0 0
    %3101 = vmatprep.subr.bf16.mxu0 0
    %3102 = vmatpush1.bf16.msra.mxu0 0
    %3103 = vmatprep.subr.bf16.mxu0 0
    %3104 = vmatpush1.bf16.msra.mxu0 0
    %3105 = vmatprep.subr.bf16.mxu0 0
    %3106 = vmatpush1.bf16.msra.mxu0 0
    %3107 = vmatprep.subr.bf16.mxu0 0
    %3108 = vmatpush1.bf16.msra.mxu0 0
    %3109 = vmatprep.subr.bf16.mxu0 0
    %3110 = vmatpush1.bf16.msra.mxu0 0
    %3111 = vmatprep.subr.bf16.mxu0 0
    %3112 = vmatpush1.bf16.msra.mxu0 0
    %3113 = vmatprep.subr.bf16.mxu0 0
    %3114 = vmatpush1.bf16.msra.mxu0 0
    %3115 = vmatprep.subr.bf16.mxu0 0
    %3116 = vmatpush1.bf16.msra.mxu0 0
    %3117 = vmatprep.subr.bf16.mxu0 0
    %3118 = vmatpush1.bf16.msra.mxu0 0
    %3119 = vmatprep.subr.bf16.mxu0 0
    %3120 = vmatpush1.bf16.msra.mxu0 0
    %3121 = vmatprep.subr.bf16.mxu0 0
    %3122 = vmatpush1.bf16.msra.mxu0 0
    %3123 = vmatprep.mubr.bf16.mxu0 0
    %3124 = vmatmul.mubr.bf16.gmra.mrb[0].mxu0 %v3086
    %v3125 = vpop.f32.mrb[0].mxu0
    %v3126 = vadd.f32 0.0, %v3125
    %v3127 = vpop.f32.mrb[0].mxu0
    %v3128 = vpop.f32.mrb[0].mxu0
    %v3129 = vpop.f32.mrb[0].mxu0
    %3130 = vdwg.mxu0
    %v3131 = vpack.c.bf16 %v3126, %v3078
    %s3132 = scalar_lea.vmem [#allocation11], 28
    %v3133 = vld [vmem:[%s3132] sm:$0xf]
    %v3135 = vsel %vm501, %v3131, 0
    %v3138 = vsel %vm637, %v3133, 0
    %3140 = vmatprep.subr.bf16.mxu0 0
    %3141 = vmatpush1.bf16.msra.mxu0 %v3138
    %3142 = vmatprep.subr.bf16.mxu0 0
    %3143 = vmatpush1.bf16.msra.mxu0 0
    %3144 = vmatprep.subr.bf16.mxu0 0
    %3145 = vmatpush1.bf16.msra.mxu0 0
    %3146 = vmatprep.subr.bf16.mxu0 0
    %3147 = vmatpush1.bf16.msra.mxu0 0
    %3148 = vmatprep.subr.bf16.mxu0 0
    %3149 = vmatpush1.bf16.msra.mxu0 0
    %3150 = vmatprep.subr.bf16.mxu0 0
    %3151 = vmatpush1.bf16.msra.mxu0 0
    %3152 = vmatprep.subr.bf16.mxu0 0
    %3153 = vmatpush1.bf16.msra.mxu0 0
    %3154 = vmatprep.subr.bf16.mxu0 0
    %3155 = vmatpush1.bf16.msra.mxu0 0
    %3156 = vmatprep.subr.bf16.mxu0 0
    %3157 = vmatpush1.bf16.msra.mxu0 0
    %3158 = vmatprep.subr.bf16.mxu0 0
    %3159 = vmatpush1.bf16.msra.mxu0 0
    %3160 = vmatprep.subr.bf16.mxu0 0
    %3161 = vmatpush1.bf16.msra.mxu0 0
    %3162 = vmatprep.subr.bf16.mxu0 0
    %3163 = vmatpush1.bf16.msra.mxu0 0
    %3164 = vmatprep.subr.bf16.mxu0 0
    %3165 = vmatpush1.bf16.msra.mxu0 0
    %3166 = vmatprep.subr.bf16.mxu0 0
    %3167 = vmatpush1.bf16.msra.mxu0 0
    %3168 = vmatprep.subr.bf16.mxu0 0
    %3169 = vmatpush1.bf16.msra.mxu0 0
    %3170 = vmatprep.subr.bf16.mxu0 0
    %3171 = vmatpush1.bf16.msra.mxu0 0
    %3172 = vmatprep.mubr.bf16.mxu0 0
    %3173 = vmatmul.mubr.bf16.gmra.mrb[0].mxu0 %v3135
    %v3174 = vpop.f32.mrb[0].mxu0
    %v3175 = vadd.f32 0.0, %v3174
    %v3176 = vpop.f32.mrb[0].mxu0
    %v3177 = vpop.f32.mrb[0].mxu0
    %v3178 = vadd.f32 0.0, %v3177
    %v3179 = vpop.f32.mrb[0].mxu0
    %3180 = vdwg.mxu0
    %v3181 = vadd.f32 %v2905, %v3175
    %v3182 = vadd.f32 %v2906, %v3178
    %s3183 = scalar_lea.vmem [#allocation13], 1
    %v3184 = vld [vmem:[%s3183] sm:$0x1]
    %v3186 = vlaneseq
    %v3187 = vshrl.u32 %v3186, 7
    %v3188 = vsub.s32 0, %v3187
    %v3189 = vrot.slane %v3184, %v3188
    %v3191 = vadd.f32 %v3181, %v3189
    %v3192 = vadd.f32 %v3182, %v3189
    %v3193 = vadd.f32 %v1879, %v3191
    %v3194 = vadd.f32 %v1880, %v3192
    %s3195 = scalar_lea.vmem [#allocation14], 1
    %v3196 = vld [vmem:[%s3195] sm:$0x1]
    %s3197 = scalar_lea.vmem [#allocation16], 1
    %v3198 = vld [vmem:[%s3197] sm:$0x1]
    %v3199 = vsel %vm322, %v3193, 0.0
    %3200 = vadd.xlane.f32.xlu0 %v3199
    %v3201 = vpop.xlane.xlu0 %3200
    %v3202 = vsel %vm322, %v3194, 0.0
    %3203 = vadd.xlane.f32.xlu0 %v3202
    %v3204 = vpop.xlane.xlu0 %3203
    %v3205 = vmul.f32 %v3201, %v1627
    %v3206 = vmul.f32 %v3204, %v1627
    %v3207 = vsub.f32 %v3193, %v3205
    %v3208 = vsub.f32 %v3194, %v3206
    %v3209 = vmul.f32 %v3207, %v3207
    %v3210 = vmul.f32 %v3208, %v3208
    %v3211 = vsel %vm322, %v3209, 0.0
    %3212 = vadd.xlane.f32.xlu0 %v3211
    %v3213 = vpop.xlane.xlu0 %3212
    %v3214 = vsel %vm322, %v3210, 0.0
    %3215 = vadd.xlane.f32.xlu0 %v3214
    %v3216 = vpop.xlane.xlu0 %3215
    %v3217 = vmul.f32 %v3213, %v1627
    %v3218 = vmul.f32 %v3216, %v1627
    %v3219 = vadd.f32 %v3217, 1e-05
    %v3220 = vadd.f32 %v3218, 1e-05
    %v3221 = vrsqrt.pop %v3219
    %v3222 = vrsqrt.pop %v3220
    %v3223 = vmul.f32 %v3207, %v3221
    %v3224 = vmul.f32 %v3208, %v3222
    %v3226 = vlaneseq
    %v3227 = vshrl.u32 %v3226, 7
    %v3228 = vsub.s32 0, %v3227
    %v3229 = vrot.slane %v3196, %v3228
    %v3231 = vmul.f32 %v3223, %v3229
    %v3232 = vmul.f32 %v3224, %v3229
    %v3234 = vlaneseq
    %v3235 = vshrl.u32 %v3234, 7
    %v3236 = vsub.s32 0, %v3235
    %v3237 = vrot.slane %v3198, %v3236
    %v3239 = vadd.f32 %v3231, %v3237
    %v3240 = vadd.f32 %v3232, %v3237
    %v3241 = vpack.c.bf16 %v3240, %v3239
    %s3242 = scalar_lea.vmem [#allocation17], 16
    %v3243 = vld [vmem:[%s3242] sm:$0xf]
    %v3244 = vld [vmem:[%s3242 + $0x4] sm:$0xf]
    %v3245 = vld [vmem:[%s3242 + $0x8] sm:$0xf]
    %v3246 = vld [vmem:[%s3242 + $0xc] sm:$0xf]
    %s3247 = scalar_lea.vmem [#allocation19], 1
    %v3248 = vld [vmem:[%s3247] sm:$0x1]
    %v3250 = vlaneseq
    %v3251 = vshrl.u32 %v3250, 7
    %v3252 = vsub.s32 0, %v3251
    %v3253 = vrot.slane %v3248, %v3252
    %v3259 = vunpack.c.l.b16 %v3243
    %v3260 = vunpack.c.l.b16 %v3244
    %v3261 = vunpack.c.l.b16 %v3245
    %v3262 = vunpack.c.l.b16 %v3246
    %v3263 = vpack.c.b16 %v3260, %v3259
    %v3264 = vpack.c.b16 %v3262, %v3261
    %v3268 = vsel %vm322, %v3241, 0
    %3270 = vmatprep.subr.bf16.mxu0 0
    %3271 = vmatpush1.bf16.msra.mxu0 %v3263
    %3272 = vmatprep.subr.bf16.mxu0 0
    %3273 = vmatpush1.bf16.msra.mxu0 %v3264
    %3274 = vmatprep.subr.bf16.mxu0 0
    %3275 = vmatpush1.bf16.msra.mxu0 0
    %3276 = vmatprep.subr.bf16.mxu0 0
    %3277 = vmatpush1.bf16.msra.mxu0 0
    %3278 = vmatprep.subr.bf16.mxu0 0
    %3279 = vmatpush1.bf16.msra.mxu0 0
    %3280 = vmatprep.subr.bf16.mxu0 0
    %3281 = vmatpush1.bf16.msra.mxu0 0
    %3282 = vmatprep.subr.bf16.mxu0 0
    %3283 = vmatpush1.bf16.msra.mxu0 0
    %3284 = vmatprep.subr.bf16.mxu0 0
    %3285 = vmatpush1.bf16.msra.mxu0 0
    %3286 = vmatprep.subr.bf16.mxu0 0
    %3287 = vmatpush1.bf16.msra.mxu0 0
    %3288 = vmatprep.subr.bf16.mxu0 0
    %3289 = vmatpush1.bf16.msra.mxu0 0
    %3290 = vmatprep.subr.bf16.mxu0 0
    %3291 = vmatpush1.bf16.msra.mxu0 0
    %3292 = vmatprep.subr.bf16.mxu0 0
    %3293 = vmatpush1.bf16.msra.mxu0 0
    %3294 = vmatprep.subr.bf16.mxu0 0
    %3295 = vmatpush1.bf16.msra.mxu0 0
    %3296 = vmatprep.subr.bf16.mxu0 0
    %3297 = vmatpush1.bf16.msra.mxu0 0
    %3298 = vmatprep.subr.bf16.mxu0 0
    %3299 = vmatpush1.bf16.msra.mxu0 0
    %3300 = vmatprep.subr.bf16.mxu0 0
    %3301 = vmatpush1.bf16.msra.mxu0 0
    %3302 = vmatprep.mubr.bf16.mxu0 0
    %3303 = vmatmul.mubr.bf16.gmra.mrb[0].mxu0 %v3268
    %v3304 = vpop.f32.mrb[0].mxu0
    %v3305 = vadd.f32 %v3253, %v3304
    %v3306 = vpop.f32.mrb[0].mxu0
    %v3307 = vpop.f32.mrb[0].mxu0
    %v3308 = vadd.f32 %v3253, %v3307
    %v3309 = vpop.f32.mrb[0].mxu0
    %3310 = vdwg.mxu0
    %v3311 = vmul.f32 %v3305, %v3305
    %v3312 = vmul.f32 %v3308, %v3308
    %v3313 = vmul.f32 %v3305, %v3311
    %v3314 = vmul.f32 %v3308, %v3312
    %v3315 = vmul.f32 %v3313, 0.044715
    %v3316 = vmul.f32 %v3314, 0.044715
    %v3317 = vadd.f32 %v3305, %v3315
    %v3318 = vadd.f32 %v3308, %v3316
    %v3319 = vmul.f32 %v3317, 0.7978846
    %v3320 = vmul.f32 %v3318, 0.7978846
    %v3321 = vtanh.pop %v3319
    %v3322 = vtanh.pop %v3320
    %v3323 = vadd.f32 %v3321, 1.0
    %v3324 = vadd.f32 %v3322, 1.0
    %v3325 = vmul.f32 %v3323, 0.5
    %v3326 = vmul.f32 %v3324, 0.5
    %v3327 = vmul.f32 %v3305, %v3325
    %v3328 = vmul.f32 %v3308, %v3326
    %v3329 = vpack.c.bf16 %v3328, %v3327
    %s3330 = scalar_lea.vmem %s14, 32
    %v3331 = vld [vmem:[%s3330] sm:$0xf]
    %v3332 = vld [vmem:[%s3330 + $0x4] sm:$0xf]
    %v3333 = vld [vmem:[%s3330 + $0x8] sm:$0xf]
    %v3334 = vld [vmem:[%s3330 + $0xc] sm:$0xf]
    %v3335 = vld [vmem:[%s3330 + $0x10] sm:$0xf]
    %v3336 = vld [vmem:[%s3330 + $0x14] sm:$0xf]
    %v3337 = vld [vmem:[%s3330 + $0x18] sm:$0xf]
    %v3338 = vld [vmem:[%s3330 + $0x1c] sm:$0xf]
    %s3339 = scalar_lea.vmem [#allocation20], 1
    %v3340 = vld [vmem:[%s3339] sm:$0x1]
    %v3342 = vlaneseq
    %v3343 = vshrl.u32 %v3342, 7
    %v3344 = vsub.s32 0, %v3343
    %v3345 = vrot.slane %v3340, %v3344
    %v3355 = vunpack.c.l.b16 %v3331
    %v3356 = vunpack.c.l.b16 %v3332
    %v3357 = vunpack.c.l.b16 %v3333
    %v3358 = vunpack.c.l.b16 %v3334
    %v3359 = vunpack.c.l.b16 %v3335
    %v3360 = vunpack.c.l.b16 %v3336
    %v3361 = vunpack.c.l.b16 %v3337
    %v3362 = vunpack.c.l.b16 %v3338
    %v3363 = vpack.c.b16 %v3356, %v3355
    %v3364 = vpack.c.b16 %v3358, %v3357
    %v3365 = vpack.c.b16 %v3360, %v3359
    %v3366 = vpack.c.b16 %v3362, %v3361
    %v3372 = vsel %vm1790, %v3329, 0
    %3374 = vmatprep.subr.bf16.mxu0 0
    %3375 = vmatpush1.bf16.msra.mxu0 %v3363
    %3376 = vmatprep.subr.bf16.mxu0 0
    %3377 = vmatpush1.bf16.msra.mxu0 %v3364
    %3378 = vmatprep.subr.bf16.mxu0 0
    %3379 = vmatpush1.bf16.msra.mxu0 %v3365
    %3380 = vmatprep.subr.bf16.mxu0 0
    %3381 = vmatpush1.bf16.msra.mxu0 %v3366
    %3382 = vmatprep.subr.bf16.mxu0 0
    %3383 = vmatpush1.bf16.msra.mxu0 0
    %3384 = vmatprep.subr.bf16.mxu0 0
    %3385 = vmatpush1.bf16.msra.mxu0 0
    %3386 = vmatprep.subr.bf16.mxu0 0
    %3387 = vmatpush1.bf16.msra.mxu0 0
    %3388 = vmatprep.subr.bf16.mxu0 0
    %3389 = vmatpush1.bf16.msra.mxu0 0
    %3390 = vmatprep.subr.bf16.mxu0 0
    %3391 = vmatpush1.bf16.msra.mxu0 0
    %3392 = vmatprep.subr.bf16.mxu0 0
    %3393 = vmatpush1.bf16.msra.mxu0 0
    %3394 = vmatprep.subr.bf16.mxu0 0
    %3395 = vmatpush1.bf16.msra.mxu0 0
    %3396 = vmatprep.subr.bf16.mxu0 0
    %3397 = vmatpush1.bf16.msra.mxu0 0
    %3398 = vmatprep.subr.bf16.mxu0 0
    %3399 = vmatpush1.bf16.msra.mxu0 0
    %3400 = vmatprep.subr.bf16.mxu0 0
    %3401 = vmatpush1.bf16.msra.mxu0 0
    %3402 = vmatprep.subr.bf16.mxu0 0
    %3403 = vmatpush1.bf16.msra.mxu0 0
    %3404 = vmatprep.subr.bf16.mxu0 0
    %3405 = vmatpush1.bf16.msra.mxu0 0
    %3406 = vmatprep.mubr.bf16.mxu0 0
    %3407 = vmatmul.mubr.bf16.gmra.mrb[0].mxu0 %v3372
    %v3408 = vpop.f32.mrb[0].mxu0
    %v3409 = vadd.f32 %v3345, %v3408
    %v3410 = vpop.f32.mrb[0].mxu0
    %v3411 = vpop.f32.mrb[0].mxu0
    %v3412 = vadd.f32 %v3345, %v3411
    %v3413 = vpop.f32.mrb[0].mxu0
    %3414 = vdwg.mxu0
    %v3415 = vadd.f32 %v3239, %v3409
    %v3416 = vadd.f32 %v3240, %v3412
    %s3417 = scalar_lea.vmem [#allocation22], 1
    %v3418 = vld [vmem:[%s3417] sm:$0x1]
    %s3419 = scalar_lea.vmem [#allocation23], 1
    %v3420 = vld [vmem:[%s3419] sm:$0x1]
    %v3421 = vsel %vm322, %v3415, 0.0
    %3422 = vadd.xlane.f32.xlu0 %v3421
    %v3423 = vpop.xlane.xlu0 %3422
    %v3424 = vsel %vm322, %v3416, 0.0
    %3425 = vadd.xlane.f32.xlu0 %v3424
    %v3426 = vpop.xlane.xlu0 %3425
    %v3427 = vmul.f32 %v3423, %v1627
    %v3428 = vmul.f32 %v3426, %v1627
    %v3429 = vsub.f32 %v3415, %v3427
    %v3430 = vsub.f32 %v3416, %v3428
    %v3431 = vmul.f32 %v3429, %v3429
    %v3432 = vmul.f32 %v3430, %v3430
    %v3433 = vsel %vm322, %v3431, 0.0
    %3434 = vadd.xlane.f32.xlu0 %v3433
    %v3435 = vpop.xlane.xlu0 %3434
    %v3436 = vsel %vm322, %v3432, 0.0
    %3437 = vadd.xlane.f32.xlu0 %v3436
    %v3438 = vpop.xlane.xlu0 %3437
    %v3439 = vmul.f32 %v3435, %v1627
    %v3440 = vmul.f32 %v3438, %v1627
    %v3441 = vadd.f32 %v3439, 1e-05
    %v3442 = vadd.f32 %v3440, 1e-05
    %v3443 = vrsqrt.pop %v3441
    %v3444 = vrsqrt.pop %v3442
    %v3445 = vmul.f32 %v3429, %v3443
    %v3446 = vmul.f32 %v3430, %v3444
    %v3448 = vlaneseq
    %v3449 = vshrl.u32 %v3448, 7
    %v3450 = vsub.s32 0, %v3449
    %v3451 = vrot.slane %v3418, %v3450
    %v3453 = vmul.f32 %v3445, %v3451
    %v3454 = vmul.f32 %v3446, %v3451
    %v3456 = vlaneseq
    %v3457 = vshrl.u32 %v3456, 7
    %v3458 = vsub.s32 0, %v3457
    %v3459 = vrot.slane %v3420, %v3458
    %v3461 = vadd.f32 %v3453, %v3459
    %v3462 = vadd.f32 %v3454, %v3459
    %v3463 = vlaneseq
    %v3464 = vshrl.u32 %v3463, 7
    %v3465 = vsub.s32 0, %v3464
    %v3466 = vrot.slane %v269, %v3465
    %3468 = vbcast.lane.b32.xlu0 %v3466, 256
    %v3469 = vpop.permute.xlu0 %3468
    %v3470 = vlaneseq
    %v3471 = vshrl.u32 %v3470, 7
    %v3472 = vsub.s32 1, %v3471
    %v3473 = vrot.slane %v269, %v3472
    %3475 = vbcast.lane.b32.xlu0 %v3473, 256
    %v3476 = vpop.permute.xlu0 %3475
    %v3477 = vmul.f32 %v3461, %v3469
    %v3478 = vmul.f32 %v3462, %v3476
    %v3479 = vsel %vm322, %v3477, 0.0
    %v3480 = vrot.slane %v3479, 4
    %v3481 = vadd.f32 %v3479, %v3480
    %v3482 = vrot.slane %v3481, 2
    %v3483 = vadd.f32 %v3481, %v3482
    %v3484 = vrot.slane %v3483, 1
    %v3485 = vadd.f32 %v3483, %v3484
    %v3486 = vsel %vm322, %v3478, 0.0
    %v3487 = vrot.slane %v3486, 4
    %v3488 = vadd.f32 %v3486, %v3487
    %v3489 = vrot.slane %v3488, 2
    %v3490 = vadd.f32 %v3488, %v3489
    %v3491 = vrot.slane %v3490, 1
    %v3492 = vadd.f32 %v3490, %v3491
    %vm3493 = vcmask 58368
    %v3494 = vsel %vm3493, %v269, 0.0
    %3495 = vadd.xlane.f32.xlu0 %v3494
    %v3496 = vpop.xlane.xlu0 %3495
    %v3498 = vrot.slane %v3496, 1
    %v3501 = vrcp.pop %v3496
    %v3502 = vmul.f32 %v3485, %v3501
    %v3503 = vrcp.pop %v3498
    %v3504 = vmul.f32 %v3492, %v3503
    %v3505 = vpack.c.bf16 %v3502, %v3502
    %v3506 = vpack.c.bf16 %v3504, %v3504
    %v3507 = vld [vmem:[%s18] sm:$0xf]
    %v3508 = vld [vmem:[%s18 + $0x4] sm:$0xf]
    %v3509 = vld [vmem:[%s18 + $0x8] sm:$0xf]
    %v3510 = vld [vmem:[%s18 + $0xc] sm:$0xf]
    %v3511 = vld [vmem:[%s19] sm:$0x1]
    %v3513 = vlaneseq
    %v3514 = vshrl.u32 %v3513, 7
    %v3515 = vsub.s32 0, %v3514
    %v3516 = vrot.slane %v3511, %v3515
    %v3520 = vunpack.c.l.b16 %v3505
    %v3521 = vunpack.c.l.b16 %v3506
    %v3522 = vrot.slane %v3521, 7
    %vm3523 = vcmask 1041409
    %v3524 = vsel %vm3523, %v3522, %v3520
    %v3525 = vpack.c.b16 %v3524, %v3524
    %v3530 = vunpack.c.l.b16 %v3507
    %v3531 = vunpack.c.l.b16 %v3508
    %v3532 = vunpack.c.l.b16 %v3509
    %v3533 = vunpack.c.l.b16 %v3510
    %v3534 = vpack.c.b16 %v3531, %v3530
    %v3535 = vpack.c.b16 %v3533, %v3532
    %v3539 = vsel %vm322, %v3525, 0
    %3541 = vmatprep.subr.bf16.mxu0 0
    %3542 = vmatpush1.bf16.msra.mxu0 %v3534
    %3543 = vmatprep.subr.bf16.mxu0 0
    %3544 = vmatpush1.bf16.msra.mxu0 %v3535
    %3545 = vmatprep.subr.bf16.mxu0 0
    %3546 = vmatpush1.bf16.msra.mxu0 0
    %3547 = vmatprep.subr.bf16.mxu0 0
    %3548 = vmatpush1.bf16.msra.mxu0 0
    %3549 = vmatprep.subr.bf16.mxu0 0
    %3550 = vmatpush1.bf16.msra.mxu0 0
    %3551 = vmatprep.subr.bf16.mxu0 0
    %3552 = vmatpush1.bf16.msra.mxu0 0
    %3553 = vmatprep.subr.bf16.mxu0 0
    %3554 = vmatpush1.bf16.msra.mxu0 0
    %3555 = vmatprep.subr.bf16.mxu0 0
    %3556 = vmatpush1.bf16.msra.mxu0 0
    %3557 = vmatprep.subr.bf16.mxu0 0
    %3558 = vmatpush1.bf16.msra.mxu0 0
    %3559 = vmatprep.subr.bf16.mxu0 0
    %3560 = vmatpush1.bf16.msra.mxu0 0
    %3561 = vmatprep.subr.bf16.mxu0 0
    %3562 = vmatpush1.bf16.msra.mxu0 0
    %3563 = vmatprep.subr.bf16.mxu0 0
    %3564 = vmatpush1.bf16.msra.mxu0 0
    %3565 = vmatprep.subr.bf16.mxu0 0
    %3566 = vmatpush1.bf16.msra.mxu0 0
    %3567 = vmatprep.subr.bf16.mxu0 0
    %3568 = vmatpush1.bf16.msra.mxu0 0
    %3569 = vmatprep.subr.bf16.mxu0 0
    %3570 = vmatpush1.bf16.msra.mxu0 0
    %3571 = vmatprep.subr.bf16.mxu0 0
    %3572 = vmatpush1.bf16.msra.mxu0 0
    %3573 = vmatprep.mubr.bf16.mxu0 0
    %3574 = vmatmul.mubr.bf16.gmra.mrb[0].mxu0 %v3539
    %v3575 = vpop.f32.mrb[0].mxu0
    %v3576 = vadd.f32 %v3516, %v3575
    %v3577 = vpop.f32.mrb[0].mxu0
    %v3578 = vpop.f32.mrb[0].mxu0
    %v3579 = vpop.f32.mrb[0].mxu0
    %3580 = vdwg.mxu0
    %v3581 = vmax.f32 %v3576, 0.0
    %v3582 = vpack.c.bf16 %v3581, %v3581
    %v3583 = vld [vmem:[%s20] sm:$0xf]
    %v3584 = vld [vmem:[%s20 + $0x4] sm:$0xf]
    %v3585 = vld [vmem:[%s20 + $0x8] sm:$0xf]
    %v3586 = vld [vmem:[%s20 + $0xc] sm:$0xf]
    %v3587 = vld [vmem:[%s21] sm:$0x1]
    %v3589 = vlaneseq
    %v3590 = vshrl.u32 %v3589, 7
    %v3591 = vsub.s32 0, %v3590
    %v3592 = vrot.slane %v3587, %v3591
    %v3598 = vunpack.c.l.b16 %v3583
    %v3599 = vunpack.c.l.b16 %v3584
    %v3600 = vunpack.c.l.b16 %v3585
    %v3601 = vunpack.c.l.b16 %v3586
    %v3602 = vpack.c.b16 %v3599, %v3598
    %v3603 = vpack.c.b16 %v3601, %v3600
    %v3607 = vsel %vm322, %v3582, 0
    %3609 = vmatprep.subr.bf16.mxu0 0
    %3610 = vmatpush1.bf16.msra.mxu0 %v3602
    %3611 = vmatprep.subr.bf16.mxu0 0
    %3612 = vmatpush1.bf16.msra.mxu0 %v3603
    %3613 = vmatprep.subr.bf16.mxu0 0
    %3614 = vmatpush1.bf16.msra.mxu0 0
    %3615 = vmatprep.subr.bf16.mxu0 0
    %3616 = vmatpush1.bf16.msra.mxu0 0
    %3617 = vmatprep.subr.bf16.mxu0 0
    %3618 = vmatpush1.bf16.msra.mxu0 0
    %3619 = vmatprep.subr.bf16.mxu0 0
    %3620 = vmatpush1.bf16.msra.mxu0 0
    %3621 = vmatprep.subr.bf16.mxu0 0
    %3622 = vmatpush1.bf16.msra.mxu0 0
    %3623 = vmatprep.subr.bf16.mxu0 0
    %3624 = vmatpush1.bf16.msra.mxu0 0
    %3625 = vmatprep.subr.bf16.mxu0 0
    %3626 = vmatpush1.bf16.msra.mxu0 0
    %3627 = vmatprep.subr.bf16.mxu0 0
    %3628 = vmatpush1.bf16.msra.mxu0 0
    %3629 = vmatprep.subr.bf16.mxu0 0
    %3630 = vmatpush1.bf16.msra.mxu0 0
    %3631 = vmatprep.subr.bf16.mxu0 0
    %3632 = vmatpush1.bf16.msra.mxu0 0
    %3633 = vmatprep.subr.bf16.mxu0 0
    %3634 = vmatpush1.bf16.msra.mxu0 0
    %3635 = vmatprep.subr.bf16.mxu0 0
    %3636 = vmatpush1.bf16.msra.mxu0 0
    %3637 = vmatprep.subr.bf16.mxu0 0
    %3638 = vmatpush1.bf16.msra.mxu0 0
    %3639 = vmatprep.subr.bf16.mxu0 0
    %3640 = vmatpush1.bf16.msra.mxu0 0
    %3641 = vmatprep.mubr.bf16.mxu0 0
    %3642 = vmatmul.mubr.bf16.gmra.mrb[0].mxu0 %v3607
    %v3643 = vpop.f32.mrb[0].mxu0
    %v3644 = vadd.f32 %v3592, %v3643
    %v3645 = vpop.f32.mrb[0].mxu0
    %v3646 = vpop.f32.mrb[0].mxu0
    %v3647 = vpop.f32.mrb[0].mxu0
    %3648 = vdwg.mxu0
    %v3649 = vmax.f32 %v3644, 0.0
    %v3650 = vpack.c.bf16 %v3649, %v3649
    %v3651 = vld [vmem:[%s22] sm:$0xf]
    %v3652 = vld [vmem:[%s22 + $0x4] sm:$0xf]
    %v3653 = vld [vmem:[%s22 + $0x8] sm:$0xf]
    %v3654 = vld [vmem:[%s22 + $0xc] sm:$0xf]
    %v3655 = vld [vmem:[%s23] sm:$0x1]
    %v3657 = vlaneseq
    %v3658 = vshrl.u32 %v3657, 7
    %v3659 = vsub.s32 0, %v3658
    %v3660 = vrot.slane %v3655, %v3659
    %v3666 = vunpack.c.l.b16 %v3651
    %v3667 = vunpack.c.l.b16 %v3652
    %v3668 = vunpack.c.l.b16 %v3653
    %v3669 = vunpack.c.l.b16 %v3654
    %v3670 = vpack.c.b16 %v3667, %v3666
    %v3671 = vpack.c.b16 %v3669, %v3668
    %v3675 = vsel %vm322, %v3650, 0
    %3677 = vmatprep.subr.bf16.mxu0 0
    %3678 = vmatpush1.bf16.msra.mxu0 %v3670
    %3679 = vmatprep.subr.bf16.mxu0 0
    %3680 = vmatpush1.bf16.msra.mxu0 %v3671
    %3681 = vmatprep.subr.bf16.mxu0 0
    %3682 = vmatpush1.bf16.msra.mxu0 0
    %3683 = vmatprep.subr.bf16.mxu0 0
    %3684 = vmatpush1.bf16.msra.mxu0 0
    %3685 = vmatprep.subr.bf16.mxu0 0
    %3686 = vmatpush1.bf16.msra.mxu0 0
    %3687 = vmatprep.subr.bf16.mxu0 0
    %3688 = vmatpush1.bf16.msra.mxu0 0
    %3689 = vmatprep.subr.bf16.mxu0 0
    %3690 = vmatpush1.bf16.msra.mxu0 0
    %3691 = vmatprep.subr.bf16.mxu0 0
    %3692 = vmatpush1.bf16.msra.mxu0 0
    %3693 = vmatprep.subr.bf16.mxu0 0
    %3694 = vmatpush1.bf16.msra.mxu0 0
    %3695 = vmatprep.subr.bf16.mxu0 0
    %3696 = vmatpush1.bf16.msra.mxu0 0
    %3697 = vmatprep.subr.bf16.mxu0 0
    %3698 = vmatpush1.bf16.msra.mxu0 0
    %3699 = vmatprep.subr.bf16.mxu0 0
    %3700 = vmatpush1.bf16.msra.mxu0 0
    %3701 = vmatprep.subr.bf16.mxu0 0
    %3702 = vmatpush1.bf16.msra.mxu0 0
    %3703 = vmatprep.subr.bf16.mxu0 0
    %3704 = vmatpush1.bf16.msra.mxu0 0
    %3705 = vmatprep.subr.bf16.mxu0 0
    %3706 = vmatpush1.bf16.msra.mxu0 0
    %3707 = vmatprep.subr.bf16.mxu0 0
    %3708 = vmatpush1.bf16.msra.mxu0 0
    %3709 = vmatprep.mubr.bf16.mxu0 0
    %3710 = vmatmul.mubr.bf16.gmra.mrb[0].mxu0 %v3675
    %v3711 = vpop.f32.mrb[0].mxu0
    %v3712 = vadd.f32 %v3660, %v3711
    %v3713 = vpop.f32.mrb[0].mxu0
    %v3714 = vpop.f32.mrb[0].mxu0
    %v3715 = vpop.f32.mrb[0].mxu0
    %3716 = vdwg.mxu0
    %3717 = vst [vmem:[#allocation25] sm:$0x3] %v3712
    // Predicated region
    $region154: #{tpu_custom_call.1} parent=1 // pred_check
      _
    $region155: #{tpu_custom_call.1} parent=1 // pred_check_branch
      %3719 = sbr.rel (0) target = $region157
    $region156: #{tpu_custom_call.1} parent=1 // pred_region
      %s3721 = ssub.s32 32, 32
      %3722 = vsyncadd [#allocation4], %s3721
      %s3724 = sshll.u32 [#allocation25], 4
      %s3725 = int_to_ptr.vmem [resolvable:$true] %s3724
      %3727 = dma.vmem_to_hbm [thread:$0]  %s3725, 32, %s24, [#allocation4]
    $region157: #{tpu_custom_call.1} parent=1 // pred_fallthru
      _
    // Predicated region
    $region158: #{tpu_custom_call.1} parent=1 // pred_check
      _
    $region159: #{tpu_custom_call.1} parent=1 // pred_check_branch
      %3729 = sbr.rel (0) target = $region161
    $region160: #{tpu_custom_call.1} parent=1 // pred_region
      %3730 = dma.done [#allocation4], 32
    $region161: #{tpu_custom_call.1} parent=1 // pred_fallthru
      _
    %3731 = vsyncpa [#allocation3], 1
    %3732 = vsyncpa [#allocation6], 1
    %3733 = vsyncpa [#allocation9], 1
    %3734 = vsyncpa [#allocation12], 1
    %3735 = vsyncpa [#allocation15], 1
    %3736 = vsyncpa [#allocation18], 1
    %3737 = vsyncpa [#allocation21], 1
    %3738 = vsyncpa [#allocation24], 1
    %3739 = vsyncpa [#allocation4], 1

</llo_original>
